<compile_context>
chip_gen: v5e
topology: v5e:2x2
jax: 0.10.0
libtpu: 0.0.40
codegen_flags: <defaults>
</compile_context>

<pallas_src>
import math

import jax
import jax.numpy as jnp
from jax.experimental import pallas as pl
from jax.experimental.pallas import tpu as pltpu

IMAGE_SIZE = 28 * 28     # 784
OUT_PAD = 896            # 7 * 128, lane-dense padded output width
Z_DIM = 100
Z_PAD = 128              # padded contraction dim for the first layer
DIMS = [Z_DIM, 256, 512, 1024, IMAGE_SIZE]
PAD_IN = [Z_PAD, 256, 512, 1024]
PAD_OUT = [256, 512, 1024, OUT_PAD]


# ----------------------------------------------------------------------------
# Fused 4-layer MLP kernel. Weights arrive as raw HBM refs; we start all four
# weight DMAs immediately and wait per-layer, overlapping DMA with compute.
# Activations stay in registers/VMEM for the whole forward pass.
# ----------------------------------------------------------------------------
def _generator_kernel(x_ref,
                      w1_hbm, b1_ref,
                      w2_hbm, b2_ref,
                      w3_hbm, b3_ref,
                      w4_hbm, b4_ref,
                      o_ref,
                      w1v, w2v, w3v, w4v, sems):
    cp1 = pltpu.make_async_copy(w1_hbm, w1v, sems.at[0])
    cp2 = pltpu.make_async_copy(w2_hbm, w2v, sems.at[1])
    cp3 = pltpu.make_async_copy(w3_hbm, w3v, sems.at[2])
    cp4 = pltpu.make_async_copy(w4_hbm, w4v, sems.at[3])
    cp1.start()
    cp2.start()
    cp3.start()
    cp4.start()

    x = x_ref[...]                                             # (B, 128) bf16

    cp1.wait()
    h = jnp.dot(x, w1v[...], preferred_element_type=jnp.float32) + b1_ref[...]
    h = jnp.maximum(h, 0.0)                                    # f32 ReLU (VPU)

    cp2.wait()
    h = jnp.dot(h.astype(jnp.bfloat16), w2v[...],
                preferred_element_type=jnp.float32) + b2_ref[...]
    h = jnp.maximum(h, 0.0)

    cp3.wait()
    h = jnp.dot(h.astype(jnp.bfloat16), w3v[...],
                preferred_element_type=jnp.float32) + b3_ref[...]
    h = jnp.maximum(h, 0.0)

    cp4.wait()
    h = jnp.dot(h.astype(jnp.bfloat16), w4v[...],
                preferred_element_type=jnp.float32) + b4_ref[...]
    o_ref[...] = jnp.tanh(h)                                   # f32 tanh (EUP)


def _fused_generator_call(x_pad, w1, b1, w2, b2, w3, b3, w4, b4):
    B = x_pad.shape[0]
    vmem = pl.BlockSpec(memory_space=pltpu.MemorySpace.VMEM)
    hbm = pl.BlockSpec(memory_space=pl.ANY)
    return pl.pallas_call(
        _generator_kernel,
        out_shape=jax.ShapeDtypeStruct((B, OUT_PAD), jnp.float32),
        in_specs=[vmem, hbm, vmem, hbm, vmem, hbm, vmem, hbm, vmem],
        out_specs=vmem,
        scratch_shapes=[
            pltpu.VMEM((Z_PAD, 256), jnp.bfloat16),
            pltpu.VMEM((256, 512), jnp.bfloat16),
            pltpu.VMEM((512, 1024), jnp.bfloat16),
            pltpu.VMEM((1024, OUT_PAD), jnp.bfloat16),
            pltpu.SemaphoreType.DMA((4,)),
        ],
        compiler_params=pltpu.CompilerParams(
            vmem_limit_bytes=32 * 1024 * 1024,
        ),
    )(x_pad, w1, b1, w2, b2, w3, b3, w4, b4)


# ----------------------------------------------------------------------------
# Parameter init (mimics nn.Linear's U(-1/sqrt(fan_in), 1/sqrt(fan_in))).
# Weights are stored as (in, out) so the kernel computes x @ W (PyTorch stores
# (out, in) and does x @ W.T — identical math). Weights are zero-padded to
# tile-friendly shapes and cast to bf16; biases stay f32 (negligible bytes).
# ----------------------------------------------------------------------------
def init_generator_params(key):
    params = []
    for i in range(4):
        fan_in, fan_out = DIMS[i], DIMS[i + 1]
        key, kw, kb = jax.random.split(key, 3)
        bound = 1.0 / math.sqrt(fan_in)
        w = jax.random.uniform(kw, (fan_in, fan_out), jnp.float32, -bound, bound)
        b = jax.random.uniform(kb, (1, fan_out), jnp.float32, -bound, bound)
        w_pad = (jnp.zeros((PAD_IN[i], PAD_OUT[i]), jnp.float32)
                 .at[:fan_in, :fan_out].set(w).astype(jnp.bfloat16))
        b_pad = jnp.zeros((1, PAD_OUT[i]), jnp.float32).at[:, :fan_out].set(b)
        params.append((w_pad, b_pad))
    return params


@jax.jit
def generator_forward(params, z):
    """z: (B, 100) f32 -> images (B, 1, 28, 28) f32 (PyTorch semantics)."""
    (w1, b1), (w2, b2), (w3, b3), (w4, b4) = params
    B = z.shape[0]
    # Zero-pad the contraction dim 100 -> 128 and cast input to bf16.
    x_pad = (jnp.zeros((B, Z_PAD), jnp.bfloat16)
             .at[:, :Z_DIM].set(z.astype(jnp.bfloat16)))
    out_pad = _fused_generator_call(x_pad, w1, b1, w2, b2, w3, b3, w4, b4)
    return out_pad[:, :IMAGE_SIZE].reshape(-1, 1, 28, 28)


# Pure-JAX reference doing the same bf16-input / f32-accumulate math.
def ref_forward(params, z):
    (w1, b1), (w2, b2), (w3, b3), (w4, b4) = params
    B = z.shape[0]
    h = (jnp.zeros((B, Z_PAD), jnp.bfloat16)
         .at[:, :Z_DIM].set(z.astype(jnp.bfloat16)))
    h = jnp.maximum(jnp.dot(h, w1, preferred_element_type=jnp.float32) + b1, 0.0)
    h = jnp.maximum(
        jnp.dot(h.astype(jnp.bfloat16), w2, preferred_element_type=jnp.float32) + b2, 0.0)
    h = jnp.maximum(
        jnp.dot(h.astype(jnp.bfloat16), w3, preferred_element_type=jnp.float32) + b3, 0.0)
    h = jnp.tanh(
        jnp.dot(h.astype(jnp.bfloat16), w4, preferred_element_type=jnp.float32) + b4)
    return h[:, :IMAGE_SIZE].reshape(-1, 1, 28, 28)


if __name__ == "__main__":
    key = jax.random.PRNGKey(0)
    pkey, zkey = jax.random.split(key)

    params = init_generator_params(pkey)

    batch = 8
    z = jax.random.normal(zkey, (batch, Z_DIM), dtype=jnp.float32)

    imgs = generator_forward(params, z)
    jax.block_until_ready(imgs)

    assert imgs.shape == (batch, 1, 28, 28), imgs.shape
    assert imgs.dtype == jnp.float32

    # sanity: tanh output must lie in [-1, 1]
    assert bool(jnp.all(jnp.abs(imgs) <= 1.0 + 1e-6))

    # cross-check against a pure-JAX reference of the same (bf16-weight) math
    ref = ref_forward(params, z)
    assert bool(jnp.allclose(imgs, ref, atol=2e-2, rtol=2e-2)), (
        float(jnp.max(jnp.abs(imgs - ref))))

    print("KERNEL_OK")
</pallas_src>

<mosaic_0001>
module attributes {stable_mosaic.version = 11 : i64} {
  func.func @_generator_kernel(%arg0: memref<8x128xbf16, #tpu.memory_space<vmem>>, %arg1: memref<128x256xbf16, #tpu.memory_space<any>>, %arg2: memref<1x256xf32, #tpu.memory_space<vmem>>, %arg3: memref<256x512xbf16, #tpu.memory_space<any>>, %arg4: memref<1x512xf32, #tpu.memory_space<vmem>>, %arg5: memref<512x1024xbf16, #tpu.memory_space<any>>, %arg6: memref<1x1024xf32, #tpu.memory_space<vmem>>, %arg7: memref<1024x896xbf16, #tpu.memory_space<any>>, %arg8: memref<1x896xf32, #tpu.memory_space<vmem>>, %arg9: memref<8x896xf32, #tpu.memory_space<vmem>>, %arg10: memref<128x256xbf16, #tpu.memory_space<vmem>>, %arg11: memref<256x512xbf16, #tpu.memory_space<vmem>>, %arg12: memref<512x1024xbf16, #tpu.memory_space<vmem>>, %arg13: memref<1024x896xbf16, #tpu.memory_space<vmem>>, %arg14: memref<4x!tpu.dma_semaphore, #tpu.memory_space<semaphore_mem>>) attributes {dimension_semantics = [], scalar_prefetch = 0 : i64, scratch_operands = 5 : i64, tpu.core_type = #tpu.core_type<tc>} {
    %c0_i32 = arith.constant 0 : i32
    %0 = tpu.memref_slice %arg14[%c0_i32] : memref<4x!tpu.dma_semaphore, #tpu.memory_space<semaphore_mem>> -> memref<1x!tpu.dma_semaphore, #tpu.memory_space<semaphore_mem>>
    %1 = tpu.memref_squeeze %0 : memref<1x!tpu.dma_semaphore, #tpu.memory_space<semaphore_mem>> -> memref<!tpu.dma_semaphore, #tpu.memory_space<semaphore_mem>>
    tpu.enqueue_dma source(%arg1 : memref<128x256xbf16, #tpu.memory_space<any>>) target(%arg10 : memref<128x256xbf16, #tpu.memory_space<vmem>>) target_semaphore(%1 : memref<!tpu.dma_semaphore, #tpu.memory_space<semaphore_mem>>)
    %c1_i32 = arith.constant 1 : i32
    %2 = tpu.memref_slice %arg14[%c1_i32] : memref<4x!tpu.dma_semaphore, #tpu.memory_space<semaphore_mem>> -> memref<1x!tpu.dma_semaphore, #tpu.memory_space<semaphore_mem>>
    %3 = tpu.memref_squeeze %2 : memref<1x!tpu.dma_semaphore, #tpu.memory_space<semaphore_mem>> -> memref<!tpu.dma_semaphore, #tpu.memory_space<semaphore_mem>>
    tpu.enqueue_dma source(%arg3 : memref<256x512xbf16, #tpu.memory_space<any>>) target(%arg11 : memref<256x512xbf16, #tpu.memory_space<vmem>>) target_semaphore(%3 : memref<!tpu.dma_semaphore, #tpu.memory_space<semaphore_mem>>)
    %c2_i32 = arith.constant 2 : i32
    %4 = tpu.memref_slice %arg14[%c2_i32] : memref<4x!tpu.dma_semaphore, #tpu.memory_space<semaphore_mem>> -> memref<1x!tpu.dma_semaphore, #tpu.memory_space<semaphore_mem>>
    %5 = tpu.memref_squeeze %4 : memref<1x!tpu.dma_semaphore, #tpu.memory_space<semaphore_mem>> -> memref<!tpu.dma_semaphore, #tpu.memory_space<semaphore_mem>>
    tpu.enqueue_dma source(%arg5 : memref<512x1024xbf16, #tpu.memory_space<any>>) target(%arg12 : memref<512x1024xbf16, #tpu.memory_space<vmem>>) target_semaphore(%5 : memref<!tpu.dma_semaphore, #tpu.memory_space<semaphore_mem>>)
    %c3_i32 = arith.constant 3 : i32
    %6 = tpu.memref_slice %arg14[%c3_i32] : memref<4x!tpu.dma_semaphore, #tpu.memory_space<semaphore_mem>> -> memref<1x!tpu.dma_semaphore, #tpu.memory_space<semaphore_mem>>
    %7 = tpu.memref_squeeze %6 : memref<1x!tpu.dma_semaphore, #tpu.memory_space<semaphore_mem>> -> memref<!tpu.dma_semaphore, #tpu.memory_space<semaphore_mem>>
    tpu.enqueue_dma source(%arg7 : memref<1024x896xbf16, #tpu.memory_space<any>>) target(%arg13 : memref<1024x896xbf16, #tpu.memory_space<vmem>>) target_semaphore(%7 : memref<!tpu.dma_semaphore, #tpu.memory_space<semaphore_mem>>)
    %c0 = arith.constant 0 : index
    %c0_0 = arith.constant 0 : index
    %8 = vector.load %arg0[%c0, %c0_0] : memref<8x128xbf16, #tpu.memory_space<vmem>>, vector<8x128xbf16>
    %c0_i32_1 = arith.constant 0 : i32
    %9 = tpu.memref_slice %arg14[%c0_i32_1] : memref<4x!tpu.dma_semaphore, #tpu.memory_space<semaphore_mem>> -> memref<1x!tpu.dma_semaphore, #tpu.memory_space<semaphore_mem>>
    %10 = tpu.memref_squeeze %9 : memref<1x!tpu.dma_semaphore, #tpu.memory_space<semaphore_mem>> -> memref<!tpu.dma_semaphore, #tpu.memory_space<semaphore_mem>>
    tpu.wait_dma2 semaphore(%10 : memref<!tpu.dma_semaphore, #tpu.memory_space<semaphore_mem>>) src(%arg1 : memref<128x256xbf16, #tpu.memory_space<any>>) dst(%arg10 : memref<128x256xbf16, #tpu.memory_space<vmem>>)
    %c0_2 = arith.constant 0 : index
    %c0_3 = arith.constant 0 : index
    %11 = vector.load %arg10[%c0_2, %c0_3] : memref<128x256xbf16, #tpu.memory_space<vmem>>, vector<128x256xbf16>
    %cst = arith.constant dense<0.000000e+00> : vector<8x256xf32>
    %12 = tpu.matmul %8, %11, %cst {dimension_numbers = #tpu.dot_dimension_numbers<[1], [0], [0], [1], [0, 0, 1, 1], [], []>} : vector<8x128xbf16>, vector<128x256xbf16>, vector<8x256xf32> -> vector<8x256xf32>
    %c0_4 = arith.constant 0 : index
    %c0_5 = arith.constant 0 : index
    %13 = vector.load %arg2[%c0_4, %c0_5] : memref<1x256xf32, #tpu.memory_space<vmem>>, vector<1x256xf32>
    %14 = vector.broadcast %13 : vector<1x256xf32> to vector<8x256xf32>
    %15 = arith.addf %12, %14 : vector<8x256xf32>
    %cst_6 = arith.constant 0.000000e+00 : f32
    %16 = vector.broadcast %cst_6 : f32 to vector<8x256xf32>
    %17 = arith.maximumf %15, %16 : vector<8x256xf32>
    %c1_i32_7 = arith.constant 1 : i32
    %18 = tpu.memref_slice %arg14[%c1_i32_7] : memref<4x!tpu.dma_semaphore, #tpu.memory_space<semaphore_mem>> -> memref<1x!tpu.dma_semaphore, #tpu.memory_space<semaphore_mem>>
    %19 = tpu.memref_squeeze %18 : memref<1x!tpu.dma_semaphore, #tpu.memory_space<semaphore_mem>> -> memref<!tpu.dma_semaphore, #tpu.memory_space<semaphore_mem>>
    tpu.wait_dma2 semaphore(%19 : memref<!tpu.dma_semaphore, #tpu.memory_space<semaphore_mem>>) src(%arg3 : memref<256x512xbf16, #tpu.memory_space<any>>) dst(%arg11 : memref<256x512xbf16, #tpu.memory_space<vmem>>)
    %20 = arith.truncf %17 : vector<8x256xf32> to vector<8x256xbf16>
    %c0_8 = arith.constant 0 : index
    %c0_9 = arith.constant 0 : index
    %21 = vector.load %arg11[%c0_8, %c0_9] : memref<256x512xbf16, #tpu.memory_space<vmem>>, vector<256x512xbf16>
    %cst_10 = arith.constant dense<0.000000e+00> : vector<8x512xf32>
    %22 = tpu.matmul %20, %21, %cst_10 {dimension_numbers = #tpu.dot_dimension_numbers<[1], [0], [0], [1], [0, 0, 1, 1], [], []>} : vector<8x256xbf16>, vector<256x512xbf16>, vector<8x512xf32> -> vector<8x512xf32>
    %c0_11 = arith.constant 0 : index
    %c0_12 = arith.constant 0 : index
    %23 = vector.load %arg4[%c0_11, %c0_12] : memref<1x512xf32, #tpu.memory_space<vmem>>, vector<1x512xf32>
    %24 = vector.broadcast %23 : vector<1x512xf32> to vector<8x512xf32>
    %25 = arith.addf %22, %24 : vector<8x512xf32>
    %cst_13 = arith.constant 0.000000e+00 : f32
    %26 = vector.broadcast %cst_13 : f32 to vector<8x512xf32>
    %27 = arith.maximumf %25, %26 : vector<8x512xf32>
    %c2_i32_14 = arith.constant 2 : i32
    %28 = tpu.memref_slice %arg14[%c2_i32_14] : memref<4x!tpu.dma_semaphore, #tpu.memory_space<semaphore_mem>> -> memref<1x!tpu.dma_semaphore, #tpu.memory_space<semaphore_mem>>
    %29 = tpu.memref_squeeze %28 : memref<1x!tpu.dma_semaphore, #tpu.memory_space<semaphore_mem>> -> memref<!tpu.dma_semaphore, #tpu.memory_space<semaphore_mem>>
    tpu.wait_dma2 semaphore(%29 : memref<!tpu.dma_semaphore, #tpu.memory_space<semaphore_mem>>) src(%arg5 : memref<512x1024xbf16, #tpu.memory_space<any>>) dst(%arg12 : memref<512x1024xbf16, #tpu.memory_space<vmem>>)
    %30 = arith.truncf %27 : vector<8x512xf32> to vector<8x512xbf16>
    %c0_15 = arith.constant 0 : index
    %c0_16 = arith.constant 0 : index
    %31 = vector.load %arg12[%c0_15, %c0_16] : memref<512x1024xbf16, #tpu.memory_space<vmem>>, vector<512x1024xbf16>
    %cst_17 = arith.constant dense<0.000000e+00> : vector<8x1024xf32>
    %32 = tpu.matmul %30, %31, %cst_17 {dimension_numbers = #tpu.dot_dimension_numbers<[1], [0], [0], [1], [0, 0, 1, 1], [], []>} : vector<8x512xbf16>, vector<512x1024xbf16>, vector<8x1024xf32> -> vector<8x1024xf32>
    %c0_18 = arith.constant 0 : index
    %c0_19 = arith.constant 0 : index
    %33 = vector.load %arg6[%c0_18, %c0_19] : memref<1x1024xf32, #tpu.memory_space<vmem>>, vector<1x1024xf32>
    %34 = vector.broadcast %33 : vector<1x1024xf32> to vector<8x1024xf32>
    %35 = arith.addf %32, %34 : vector<8x1024xf32>
    %cst_20 = arith.constant 0.000000e+00 : f32
    %36 = vector.broadcast %cst_20 : f32 to vector<8x1024xf32>
    %37 = arith.maximumf %35, %36 : vector<8x1024xf32>
    %c3_i32_21 = arith.constant 3 : i32
    %38 = tpu.memref_slice %arg14[%c3_i32_21] : memref<4x!tpu.dma_semaphore, #tpu.memory_space<semaphore_mem>> -> memref<1x!tpu.dma_semaphore, #tpu.memory_space<semaphore_mem>>
    %39 = tpu.memref_squeeze %38 : memref<1x!tpu.dma_semaphore, #tpu.memory_space<semaphore_mem>> -> memref<!tpu.dma_semaphore, #tpu.memory_space<semaphore_mem>>
    tpu.wait_dma2 semaphore(%39 : memref<!tpu.dma_semaphore, #tpu.memory_space<semaphore_mem>>) src(%arg7 : memref<1024x896xbf16, #tpu.memory_space<any>>) dst(%arg13 : memref<1024x896xbf16, #tpu.memory_space<vmem>>)
    %40 = arith.truncf %37 : vector<8x1024xf32> to vector<8x1024xbf16>
    %c0_22 = arith.constant 0 : index
    %c0_23 = arith.constant 0 : index
    %41 = vector.load %arg13[%c0_22, %c0_23] : memref<1024x896xbf16, #tpu.memory_space<vmem>>, vector<1024x896xbf16>
    %cst_24 = arith.constant dense<0.000000e+00> : vector<8x896xf32>
    %42 = tpu.matmul %40, %41, %cst_24 {dimension_numbers = #tpu.dot_dimension_numbers<[1], [0], [0], [1], [0, 0, 1, 1], [], []>} : vector<8x1024xbf16>, vector<1024x896xbf16>, vector<8x896xf32> -> vector<8x896xf32>
    %c0_25 = arith.constant 0 : index
    %c0_26 = arith.constant 0 : index
    %43 = vector.load %arg8[%c0_25, %c0_26] : memref<1x896xf32, #tpu.memory_space<vmem>>, vector<1x896xf32>
    %44 = vector.broadcast %43 : vector<1x896xf32> to vector<8x896xf32>
    %45 = arith.addf %42, %44 : vector<8x896xf32>
    %46 = math.tanh %45 : vector<8x896xf32>
    %c0_27 = arith.constant 0 : index
    %c0_28 = arith.constant 0 : index
    %47 = vector.load %arg9[%c0_27, %c0_28] : memref<8x896xf32, #tpu.memory_space<vmem>>, vector<8x896xf32>
    tpu.vector_store %arg9[%c0_27, %c0_28], %46 {strides = array<i32>} : memref<8x896xf32, #tpu.memory_space<vmem>>, vector<8x896xf32>,
    return
  }
}

</mosaic_0001>

<llo_original>
// kernel: generator_forward.1
$region0: #{generator_forward.1}
  #allocation0 [shape = 'u32[]', space=smem, size = 0x4, offset = 0x4, fixed_abs, tag = 'smem constant byte address 0x4 - core index']
  #allocation1 [shape = 'u32[72,128]{1,0:T(1,128)}', space=vmem, size = 0x9000, scoped, tag = 'internal scratch']
  #allocation2 [shape = 'bf16[128,256]{1,0:T(8,128)(2,1)}', space=vmem, size = 0x10000, scoped, tag = 'scratch operand']
  #allocation3 [shape = 'bf16[256,512]{1,0:T(8,128)(2,1)}', space=vmem, size = 0x40000, scoped, tag = 'scratch operand']
  #allocation4 [shape = 'bf16[512,1024]{1,0:T(8,128)(2,1)}', space=vmem, size = 0x100000, scoped, tag = 'scratch operand']
  #allocation5 [shape = 'bf16[1024,896]{1,0:T(8,128)(2,1)}', space=vmem, size = 0x1c0000, scoped, tag = 'scratch operand']
  #allocation6 [shape = 's32[4]{0}', space=sflag, size = 0x10, scoped, tag = 'scratch operand']
  #allocation14 [shape = 's32[]', space=sflag, size = 0x4, offset = 0, fixed_abs, tag = 'sflag constant byte address 0x0 - dummy sync flag']
  #allocation15 [shape = 's32[]', space=sflag, size = 0x4, offset = 0, fixed_abs, tag = 'sflag constant byte address 0x0 - dummy sync flag']
  #allocation16 [shape = 'u32[]', space=smem, size = 0x4, offset = 0x44, fixed_abs, tag = 'smem constant byte address 0x44 - assertion arg 0']
  #allocation17 [shape = 'u32[]', space=smem, size = 0x4, offset = 0x48, fixed_abs, tag = 'smem constant byte address 0x48 - assertion arg 1']
  #allocation18 [shape = 's32[]', space=sflag, size = 0x4, offset = 0, fixed_abs, tag = 'sflag constant byte address 0x0 - dummy sync flag']
  #allocation19 [shape = 's32[]', space=sflag, size = 0x4, offset = 0, fixed_abs, tag = 'sflag constant byte address 0x0 - dummy sync flag']
  #allocation20 [shape = 's32[]', space=sflag, size = 0x4, offset = 0, fixed_abs, tag = 'sflag constant byte address 0x0 - dummy sync flag']
  #allocation21 [shape = 's32[]', space=sflag, size = 0x4, offset = 0, fixed_abs, tag = 'sflag constant byte address 0x0 - dummy sync flag']
  #allocation22 [shape = 's32[]', space=sflag, size = 0x4, offset = 0, fixed_abs, tag = 'sflag constant byte address 0x0 - dummy sync flag']
  #allocation23 [shape = 's32[]', space=sflag, size = 0x4, offset = 0, fixed_abs, tag = 'sflag constant byte address 0x0 - dummy sync flag']
  %s0 = inlined_call_operand.vmem [shape: bf16[8,128], index: 0, kind: input, shape index: {}]
  %s1 = inlined_call_operand.hbm [shape: bf16[128,256], index: 1, kind: input, shape index: {}]
  %s2 = inlined_call_operand.hbm [shape: f32[1,256], index: 2, kind: input, shape index: {}]
  %s3 = inlined_call_operand.hbm [shape: bf16[256,512], index: 3, kind: input, shape index: {}]
  %s4 = inlined_call_operand.hbm [shape: f32[1,512], index: 4, kind: input, shape index: {}]
  %s5 = inlined_call_operand.hbm [shape: bf16[512,1024], index: 5, kind: input, shape index: {}]
  %s6 = inlined_call_operand.hbm [shape: f32[1,1024], index: 6, kind: input, shape index: {}]
  %s7 = inlined_call_operand.hbm [shape: bf16[1024,896], index: 7, kind: input, shape index: {}]
  %s8 = inlined_call_operand.hbm [shape: f32[1,896], index: 8, kind: input, shape index: {}]
  %s9 = inlined_call_operand.vmem [shape: f32[8,896], index: 9, kind: output, shape index: {}]
  %s10 = sld [smem:[#allocation0]]
  $region62: #{generator_forward.1} parent=0
    _
  %s12 = ssub.s32 1, %s10
  %s13 = scalar_select 0, %s12, %s10
  $region1: #{generator_forward.1} parent=0
    #allocation7 [shape = 'u8[1024]{0}', space=vmem, size = 0x400, scoped, tag = 'input window, operand 2, single buffered']
    #allocation8 [shape = 's32[1]{0}', space=sflag, size = 0x4, scoped, tag = 'scoped memory for generator_forward.1']
    #allocation9 [shape = 'u8[2048]{0}', space=vmem, size = 0x800, scoped, tag = 'input window, operand 4, single buffered']
    #allocation10 [shape = 's32[1]{0}', space=sflag, size = 0x4, scoped, tag = 'scoped memory for generator_forward.1']
    #allocation11 [shape = 'u8[4096]{0}', space=vmem, size = 0x1000, scoped, tag = 'input window, operand 6, single buffered']
    #allocation12 [shape = 'u8[3584]{0}', space=vmem, size = 0x1000, scoped, tag = 'input window, operand 8, single buffered']
    #allocation13 [shape = 's32[1]{0}', space=sflag, size = 0x4, scoped, tag = 'scoped memory for generator_forward.1']
    %14 = vsyncpa [#allocation8], 0
    %15 = vsyncpa [#allocation10], 0
    %16 = vsyncpa [#allocation13], 0
    // Predicated region
    $region2: #{generator_forward.1} parent=1 // pred_check
      _
    $region3: #{generator_forward.1} parent=1 // pred_check_branch
      %18 = sbr.rel (0) target = $region5
    $region4: #{generator_forward.1} parent=1 // pred_region
      _
    $region5: #{generator_forward.1} parent=1 // pred_fallthru
      _
    // Predicated region
    $region6: #{generator_forward.1} parent=1 // pred_check
      _
    $region7: #{generator_forward.1} parent=1 // pred_check_branch
      %20 = sbr.rel (0) target = $region9
    $region8: #{generator_forward.1} parent=1 // pred_region
      %22 = vsyncadd [#allocation8], 0
      %s24 = sshll.u32 %s2, 4
      %s25 = int_to_ptr.hbm [resolvable:$true] %s24
      %s26 = sshll.u32 [#allocation7], 4
      %s27 = int_to_ptr.vmem [resolvable:$true] %s26
      %29 = dma.hbm_to_vmem [thread:$0]  %s25, 32, %s27, [#allocation8]
    $region9: #{generator_forward.1} parent=1 // pred_fallthru
      _
    // Predicated region
    $region10: #{generator_forward.1} parent=1 // pred_check
      _
    $region11: #{generator_forward.1} parent=1 // pred_check_branch
      %31 = sbr.rel (0) target = $region13
    $region12: #{generator_forward.1} parent=1 // pred_region
      %33 = vsyncadd [#allocation10], 0
      %s35 = sshll.u32 %s4, 4
      %s36 = int_to_ptr.hbm [resolvable:$true] %s35
      %s37 = sshll.u32 [#allocation9], 4
      %s38 = int_to_ptr.vmem [resolvable:$true] %s37
      %40 = dma.hbm_to_vmem [thread:$0]  %s36, 64, %s38, [#allocation10]
    $region13: #{generator_forward.1} parent=1 // pred_fallthru
      _
    // Predicated region
    $region14: #{generator_forward.1} parent=1 // pred_check
      _
    $region15: #{generator_forward.1} parent=1 // pred_check_branch
      %42 = sbr.rel (0) target = $region17
    $region16: #{generator_forward.1} parent=1 // pred_region
      %44 = vsyncadd [#allocation10], 0
      %s46 = sshll.u32 %s6, 4
      %s47 = int_to_ptr.hbm [resolvable:$true] %s46
      %s48 = sshll.u32 [#allocation11], 4
      %s49 = int_to_ptr.vmem [resolvable:$true] %s48
      %51 = dma.hbm_to_vmem [thread:$0]  %s47, 128, %s49, [#allocation10]
    $region17: #{generator_forward.1} parent=1 // pred_fallthru
      _
    // Predicated region
    $region18: #{generator_forward.1} parent=1 // pred_check
      _
    $region19: #{generator_forward.1} parent=1 // pred_check_branch
      %53 = sbr.rel (0) target = $region21
    $region20: #{generator_forward.1} parent=1 // pred_region
      %55 = vsyncadd [#allocation13], 0
      %s57 = sshll.u32 %s8, 4
      %s58 = int_to_ptr.hbm [resolvable:$true] %s57
      %s59 = sshll.u32 [#allocation12], 4
      %s60 = int_to_ptr.vmem [resolvable:$true] %s59
      %62 = dma.hbm_to_vmem [thread:$0]  %s58, 112, %s60, [#allocation13]
    $region21: #{generator_forward.1} parent=1 // pred_fallthru
      _
    // Predicated region
    $region22: #{generator_forward.1} parent=1 // pred_check
      _
    $region23: #{generator_forward.1} parent=1 // pred_check_branch
      %64 = sbr.rel (0) target = $region25
    $region24: #{generator_forward.1} parent=1 // pred_region
      %66 = dma.done [#allocation8], 32
    $region25: #{generator_forward.1} parent=1 // pred_fallthru
      _
    // Predicated region
    $region26: #{generator_forward.1} parent=1 // pred_check
      _
    $region27: #{generator_forward.1} parent=1 // pred_check_branch
      %68 = sbr.rel (0) target = $region29
    $region28: #{generator_forward.1} parent=1 // pred_region
      %70 = dma.done [#allocation10], 64
    $region29: #{generator_forward.1} parent=1 // pred_fallthru
      _
    // Predicated region
    $region30: #{generator_forward.1} parent=1 // pred_check
      _
    $region31: #{generator_forward.1} parent=1 // pred_check_branch
      %72 = sbr.rel (0) target = $region33
    $region32: #{generator_forward.1} parent=1 // pred_region
      %74 = dma.done [#allocation10], 128
    $region33: #{generator_forward.1} parent=1 // pred_fallthru
      _
    // Predicated region
    $region34: #{generator_forward.1} parent=1 // pred_check
      _
    $region35: #{generator_forward.1} parent=1 // pred_check_branch
      %76 = sbr.rel (0) target = $region37
    $region36: #{generator_forward.1} parent=1 // pred_region
      %78 = dma.done [#allocation13], 112
    $region37: #{generator_forward.1} parent=1 // pred_fallthru
      _
    // Predicated region
    $region38: #{generator_forward.1} parent=1 // pred_check
      _
    $region39: #{generator_forward.1} parent=1 // pred_check_branch
      %80 = sbr.rel target = $region41
    $region40: #{generator_forward.1} parent=1 // pred_region
      %81 = sst [smem:[#allocation16]] [#allocation15]
      %82 = sst [smem:[#allocation17]] [#allocation14]
    $region41: #{generator_forward.1} parent=1 // pred_fallthru
      _
    %84 = shalt.err (0)
    %s86 = sshll.u32 %s1, 4
    %s87 = int_to_ptr.hbm [resolvable:$true] %s86
    %s88 = sshll.u32 [#allocation2], 4
    %s89 = int_to_ptr.vmem [resolvable:$true] %s88
    %91 = dma.hbm_to_vmem [thread:$0]  %s87, 2048, %s89, [#allocation6]
    %s92 = scalar_lea.sflag [#allocation6], 1
    // Predicated region
    $region42: #{generator_forward.1} parent=1 // pred_check
      _
    $region43: #{generator_forward.1} parent=1 // pred_check_branch
      %94 = sbr.rel target = $region45
    $region44: #{generator_forward.1} parent=1 // pred_region
      %95 = sst [smem:[#allocation16]] [#allocation19]
      %96 = sst [smem:[#allocation17]] [#allocation18]
    $region45: #{generator_forward.1} parent=1 // pred_fallthru
      _
    %98 = shalt.err (0)
    %s100 = sshll.u32 %s3, 4
    %s101 = int_to_ptr.hbm [resolvable:$true] %s100
    %s102 = sshll.u32 [#allocation3], 4
    %s103 = int_to_ptr.vmem [resolvable:$true] %s102
    %105 = dma.hbm_to_vmem [thread:$0]  %s101, 8192, %s103, %s92
    %s106 = scalar_lea.sflag [#allocation6], 2
    // Predicated region
    $region46: #{generator_forward.1} parent=1 // pred_check
      _
    $region47: #{generator_forward.1} parent=1 // pred_check_branch
      %108 = sbr.rel target = $region49
    $region48: #{generator_forward.1} parent=1 // pred_region
      %109 = sst [smem:[#allocation16]] [#allocation21]
      %110 = sst [smem:[#allocation17]] [#allocation20]
    $region49: #{generator_forward.1} parent=1 // pred_fallthru
      _
    %112 = shalt.err (0)
    %s114 = sshll.u32 %s5, 4
    %s115 = int_to_ptr.hbm [resolvable:$true] %s114
    %s116 = sshll.u32 [#allocation4], 4
    %s117 = int_to_ptr.vmem [resolvable:$true] %s116
    %119 = dma.hbm_to_vmem [thread:$0]  %s115, 32768, %s117, %s106
    %s120 = scalar_lea.sflag [#allocation6], 3
    // Predicated region
    $region50: #{generator_forward.1} parent=1 // pred_check
      _
    $region51: #{generator_forward.1} parent=1 // pred_check_branch
      %122 = sbr.rel target = $region53
    $region52: #{generator_forward.1} parent=1 // pred_region
      %123 = sst [smem:[#allocation16]] [#allocation23]
      %124 = sst [smem:[#allocation17]] [#allocation22]
    $region53: #{generator_forward.1} parent=1 // pred_fallthru
      _
    %126 = shalt.err (0)
    %s128 = sshll.u32 %s7, 4
    %s129 = int_to_ptr.hbm [resolvable:$true] %s128
    %s130 = sshll.u32 [#allocation5], 4
    %s131 = int_to_ptr.vmem [resolvable:$true] %s130
    %133 = dma.hbm_to_vmem [thread:$0]  %s129, 57344, %s131, %s120
    %v134 = vld [vmem:[%s0] sm:$0xf]
    %s135 = smul.u32 4, 16
    %s136 = smul.u32 %s135, 2
    %s137 = sshll.u32 %s136, 4
    %138 = dma.done [#allocation6], %s137
    %v139 = vld [vmem:[#allocation2] sm:$0xff]
    %v140 = vld [vmem:[#allocation2 + $0x8] sm:$0xff]
    %v141 = vld [vmem:[#allocation2 + $0x10] sm:$0xff]
    %v142 = vld [vmem:[#allocation2 + $0x18] sm:$0xff]
    %v143 = vld [vmem:[#allocation2 + $0x20] sm:$0xff]
    %v144 = vld [vmem:[#allocation2 + $0x28] sm:$0xff]
    %v145 = vld [vmem:[#allocation2 + $0x30] sm:$0xff]
    %v146 = vld [vmem:[#allocation2 + $0x38] sm:$0xff]
    %v147 = vld [vmem:[#allocation2 + $0x40] sm:$0xff]
    %v148 = vld [vmem:[#allocation2 + $0x48] sm:$0xff]
    %v149 = vld [vmem:[#allocation2 + $0x50] sm:$0xff]
    %v150 = vld [vmem:[#allocation2 + $0x58] sm:$0xff]
    %v151 = vld [vmem:[#allocation2 + $0x60] sm:$0xff]
    %v152 = vld [vmem:[#allocation2 + $0x68] sm:$0xff]
    %v153 = vld [vmem:[#allocation2 + $0x70] sm:$0xff]
    %v154 = vld [vmem:[#allocation2 + $0x78] sm:$0xff]
    %v155 = vld [vmem:[#allocation7] sm:$0x3]
    %v157 = vperm.slane %v155, 0
    %v158 = vperm.slane %v155, 1
    %v177 = vunpack.c.l.b16 %v139
    %v178 = vunpack.c.h.b16 %v139
    %v179 = vunpack.c.l.b16 %v140
    %v180 = vunpack.c.h.b16 %v140
    %v181 = vunpack.c.l.b16 %v141
    %v182 = vunpack.c.h.b16 %v141
    %v183 = vunpack.c.l.b16 %v142
    %v184 = vunpack.c.h.b16 %v142
    %v185 = vunpack.c.l.b16 %v143
    %v186 = vunpack.c.h.b16 %v143
    %v187 = vunpack.c.l.b16 %v144
    %v188 = vunpack.c.h.b16 %v144
    %v189 = vunpack.c.l.b16 %v145
    %v190 = vunpack.c.h.b16 %v145
    %v191 = vunpack.c.l.b16 %v146
    %v192 = vunpack.c.h.b16 %v146
    %v193 = vunpack.c.l.b16 %v147
    %v194 = vunpack.c.h.b16 %v147
    %v195 = vunpack.c.l.b16 %v148
    %v196 = vunpack.c.h.b16 %v148
    %v197 = vunpack.c.l.b16 %v149
    %v198 = vunpack.c.h.b16 %v149
    %v199 = vunpack.c.l.b16 %v150
    %v200 = vunpack.c.h.b16 %v150
    %v201 = vunpack.c.l.b16 %v151
    %v202 = vunpack.c.h.b16 %v151
    %v203 = vunpack.c.l.b16 %v152
    %v204 = vunpack.c.h.b16 %v152
    %v205 = vunpack.c.l.b16 %v153
    %v206 = vunpack.c.h.b16 %v153
    %v207 = vunpack.c.l.b16 %v154
    %v208 = vunpack.c.h.b16 %v154
    %v209 = vpack.c.b16 %v179, %v177
    %v210 = vpack.c.b16 %v180, %v178
    %v211 = vpack.c.b16 %v183, %v181
    %v212 = vpack.c.b16 %v184, %v182
    %v213 = vpack.c.b16 %v187, %v185
    %v214 = vpack.c.b16 %v188, %v186
    %v215 = vpack.c.b16 %v191, %v189
    %v216 = vpack.c.b16 %v192, %v190
    %v217 = vpack.c.b16 %v195, %v193
    %v218 = vpack.c.b16 %v196, %v194
    %v219 = vpack.c.b16 %v199, %v197
    %v220 = vpack.c.b16 %v200, %v198
    %v221 = vpack.c.b16 %v203, %v201
    %v222 = vpack.c.b16 %v204, %v202
    %v223 = vpack.c.b16 %v207, %v205
    %v224 = vpack.c.b16 %v208, %v206
    %241 = vmatpush.bf16.msra.mxu0 %v223
    %242 = vmatpush.bf16.msra.mxu0 %v221
    %243 = vmatpush.bf16.msra.mxu0 %v219
    %244 = vmatpush.bf16.msra.mxu0 %v217
    %245 = vmatpush.bf16.msra.mxu0 %v215
    %246 = vmatpush.bf16.msra.mxu0 %v213
    %247 = vmatpush.bf16.msra.mxu0 %v211
    %248 = vmatpush.bf16.msra.mxu0 %v209
    %249 = vmatmul.bf16.gmra.mxu0 %v134
    %v250 = vpop.f32.mrf.mxu0
    %v251 = vadd.f32 %v157, %v250
    %v252 = vpop.f32.mrf.mxu0
    %253 = vdwg.mxu0
    %254 = vmatpush.bf16.msra.mxu0 %v224
    %255 = vmatpush.bf16.msra.mxu0 %v222
    %256 = vmatpush.bf16.msra.mxu0 %v220
    %257 = vmatpush.bf16.msra.mxu0 %v218
    %258 = vmatpush.bf16.msra.mxu0 %v216
    %259 = vmatpush.bf16.msra.mxu0 %v214
    %260 = vmatpush.bf16.msra.mxu0 %v212
    %261 = vmatpush.bf16.msra.mxu0 %v210
    %262 = vmatmul.bf16.gmra.mxu0 %v134
    %v263 = vpop.f32.mrf.mxu0
    %v264 = vadd.f32 %v158, %v263
    %v265 = vpop.f32.mrf.mxu0
    %266 = vdwg.mxu0
    %v267 = vmax.f32 %v251, 0.0
    %v268 = vmax.f32 %v264, 0.0
    %s269 = smul.u32 4, 32
    %s270 = smul.u32 %s269, 4
    %s271 = sshll.u32 %s270, 4
    %272 = dma.done %s92, %s271
    %v273 = vpack.c.bf16 %v267, %v267
    %v274 = vpack.c.bf16 %v268, %v268
    %v275 = vld [vmem:[#allocation3] sm:$0xff]
    %v276 = vld [vmem:[#allocation3 + $0x8] sm:$0xff]
    %v277 = vld [vmem:[#allocation3 + $0x10] sm:$0xff]
    %v278 = vld [vmem:[#allocation3 + $0x18] sm:$0xff]
    %v279 = vld [vmem:[#allocation3 + $0x20] sm:$0xff]
    %v280 = vld [vmem:[#allocation3 + $0x28] sm:$0xff]
    %v281 = vld [vmem:[#allocation3 + $0x30] sm:$0xff]
    %v282 = vld [vmem:[#allocation3 + $0x38] sm:$0xff]
    %v283 = vld [vmem:[#allocation3 + $0x40] sm:$0xff]
    %v284 = vld [vmem:[#allocation3 + $0x48] sm:$0xff]
    %v285 = vld [vmem:[#allocation3 + $0x50] sm:$0xff]
    %v286 = vld [vmem:[#allocation3 + $0x58] sm:$0xff]
    %v287 = vld [vmem:[#allocation3 + $0x60] sm:$0xff]
    %v288 = vld [vmem:[#allocation3 + $0x68] sm:$0xff]
    %v289 = vld [vmem:[#allocation3 + $0x70] sm:$0xff]
    %v290 = vld [vmem:[#allocation3 + $0x78] sm:$0xff]
    %v291 = vld [vmem:[#allocation3 + $0x80] sm:$0xff]
    %v292 = vld [vmem:[#allocation3 + $0x88] sm:$0xff]
    %v293 = vld [vmem:[#allocation3 + $0x90] sm:$0xff]
    %v294 = vld [vmem:[#allocation3 + $0x98] sm:$0xff]
    %v295 = vld [vmem:[#allocation3 + $0xa0] sm:$0xff]
    %v296 = vld [vmem:[#allocation3 + $0xa8] sm:$0xff]
    %v297 = vld [vmem:[#allocation3 + $0xb0] sm:$0xff]
    %v298 = vld [vmem:[#allocation3 + $0xb8] sm:$0xff]
    %v299 = vld [vmem:[#allocation3 + $0xc0] sm:$0xff]
    %v300 = vld [vmem:[#allocation3 + $0xc8] sm:$0xff]
    %v301 = vld [vmem:[#allocation3 + $0xd0] sm:$0xff]
    %v302 = vld [vmem:[#allocation3 + $0xd8] sm:$0xff]
    %v303 = vld [vmem:[#allocation3 + $0xe0] sm:$0xff]
    %v304 = vld [vmem:[#allocation3 + $0xe8] sm:$0xff]
    %v305 = vld [vmem:[#allocation3 + $0xf0] sm:$0xff]
    %v306 = vld [vmem:[#allocation3 + $0xf8] sm:$0xff]
    %v307 = vld [vmem:[#allocation3 + $0x100] sm:$0xff]
    %v308 = vld [vmem:[#allocation3 + $0x108] sm:$0xff]
    %v309 = vld [vmem:[#allocation3 + $0x110] sm:$0xff]
    %v310 = vld [vmem:[#allocation3 + $0x118] sm:$0xff]
    %v311 = vld [vmem:[#allocation3 + $0x120] sm:$0xff]
    %v312 = vld [vmem:[#allocation3 + $0x128] sm:$0xff]
    %v313 = vld [vmem:[#allocation3 + $0x130] sm:$0xff]
    %v314 = vld [vmem:[#allocation3 + $0x138] sm:$0xff]
    %v315 = vld [vmem:[#allocation3 + $0x140] sm:$0xff]
    %v316 = vld [vmem:[#allocation3 + $0x148] sm:$0xff]
    %v317 = vld [vmem:[#allocation3 + $0x150] sm:$0xff]
    %v318 = vld [vmem:[#allocation3 + $0x158] sm:$0xff]
    %v319 = vld [vmem:[#allocation3 + $0x160] sm:$0xff]
    %v320 = vld [vmem:[#allocation3 + $0x168] sm:$0xff]
    %v321 = vld [vmem:[#allocation3 + $0x170] sm:$0xff]
    %v322 = vld [vmem:[#allocation3 + $0x178] sm:$0xff]
    %v323 = vld [vmem:[#allocation3 + $0x180] sm:$0xff]
    %v324 = vld [vmem:[#allocation3 + $0x188] sm:$0xff]
    %v325 = vld [vmem:[#allocation3 + $0x190] sm:$0xff]
    %v326 = vld [vmem:[#allocation3 + $0x198] sm:$0xff]
    %v327 = vld [vmem:[#allocation3 + $0x1a0] sm:$0xff]
    %v328 = vld [vmem:[#allocation3 + $0x1a8] sm:$0xff]
    %v329 = vld [vmem:[#allocation3 + $0x1b0] sm:$0xff]
    %v330 = vld [vmem:[#allocation3 + $0x1b8] sm:$0xff]
    %v331 = vld [vmem:[#allocation3 + $0x1c0] sm:$0xff]
    %v332 = vld [vmem:[#allocation3 + $0x1c8] sm:$0xff]
    %v333 = vld [vmem:[#allocation3 + $0x1d0] sm:$0xff]
    %v334 = vld [vmem:[#allocation3 + $0x1d8] sm:$0xff]
    %v335 = vld [vmem:[#allocation3 + $0x1e0] sm:$0xff]
    %v336 = vld [vmem:[#allocation3 + $0x1e8] sm:$0xff]
    %v337 = vld [vmem:[#allocation3 + $0x1f0] sm:$0xff]
    %v338 = vld [vmem:[#allocation3 + $0x1f8] sm:$0xff]
    %v339 = vld [vmem:[#allocation9] sm:$0xf]
    %v341 = vperm.slane %v339, 0
    %v342 = vperm.slane %v339, 1
    %v343 = vperm.slane %v339, 2
    %v344 = vperm.slane %v339, 3
    %v413 = vunpack.c.l.b16 %v275
    %v414 = vunpack.c.h.b16 %v275
    %v415 = vunpack.c.l.b16 %v276
    %v416 = vunpack.c.h.b16 %v276
    %v417 = vunpack.c.l.b16 %v277
    %v418 = vunpack.c.h.b16 %v277
    %v419 = vunpack.c.l.b16 %v278
    %v420 = vunpack.c.h.b16 %v278
    %v421 = vunpack.c.l.b16 %v279
    %v422 = vunpack.c.h.b16 %v279
    %v423 = vunpack.c.l.b16 %v280
    %v424 = vunpack.c.h.b16 %v280
    %v425 = vunpack.c.l.b16 %v281
    %v426 = vunpack.c.h.b16 %v281
    %v427 = vunpack.c.l.b16 %v282
    %v428 = vunpack.c.h.b16 %v282
    %v429 = vunpack.c.l.b16 %v283
    %v430 = vunpack.c.h.b16 %v283
    %v431 = vunpack.c.l.b16 %v284
    %v432 = vunpack.c.h.b16 %v284
    %v433 = vunpack.c.l.b16 %v285
    %v434 = vunpack.c.h.b16 %v285
    %v435 = vunpack.c.l.b16 %v286
    %v436 = vunpack.c.h.b16 %v286
    %v437 = vunpack.c.l.b16 %v287
    %v438 = vunpack.c.h.b16 %v287
    %v439 = vunpack.c.l.b16 %v288
    %v440 = vunpack.c.h.b16 %v288
    %v441 = vunpack.c.l.b16 %v289
    %v442 = vunpack.c.h.b16 %v289
    %v443 = vunpack.c.l.b16 %v290
    %v444 = vunpack.c.h.b16 %v290
    %v445 = vunpack.c.l.b16 %v291
    %v446 = vunpack.c.h.b16 %v291
    %v447 = vunpack.c.l.b16 %v292
    %v448 = vunpack.c.h.b16 %v292
    %v449 = vunpack.c.l.b16 %v293
    %v450 = vunpack.c.h.b16 %v293
    %v451 = vunpack.c.l.b16 %v294
    %v452 = vunpack.c.h.b16 %v294
    %v453 = vunpack.c.l.b16 %v295
    %v454 = vunpack.c.h.b16 %v295
    %v455 = vunpack.c.l.b16 %v296
    %v456 = vunpack.c.h.b16 %v296
    %v457 = vunpack.c.l.b16 %v297
    %v458 = vunpack.c.h.b16 %v297
    %v459 = vunpack.c.l.b16 %v298
    %v460 = vunpack.c.h.b16 %v298
    %v461 = vunpack.c.l.b16 %v299
    %v462 = vunpack.c.h.b16 %v299
    %v463 = vunpack.c.l.b16 %v300
    %v464 = vunpack.c.h.b16 %v300
    %v465 = vunpack.c.l.b16 %v301
    %v466 = vunpack.c.h.b16 %v301
    %v467 = vunpack.c.l.b16 %v302
    %v468 = vunpack.c.h.b16 %v302
    %v469 = vunpack.c.l.b16 %v303
    %v470 = vunpack.c.h.b16 %v303
    %v471 = vunpack.c.l.b16 %v304
    %v472 = vunpack.c.h.b16 %v304
    %v473 = vunpack.c.l.b16 %v305
    %v474 = vunpack.c.h.b16 %v305
    %v475 = vunpack.c.l.b16 %v306
    %v476 = vunpack.c.h.b16 %v306
    %v477 = vunpack.c.l.b16 %v307
    %v478 = vunpack.c.h.b16 %v307
    %v479 = vunpack.c.l.b16 %v308
    %v480 = vunpack.c.h.b16 %v308
    %v481 = vunpack.c.l.b16 %v309
    %v482 = vunpack.c.h.b16 %v309
    %v483 = vunpack.c.l.b16 %v310
    %v484 = vunpack.c.h.b16 %v310
    %v485 = vunpack.c.l.b16 %v311
    %v486 = vunpack.c.h.b16 %v311
    %v487 = vunpack.c.l.b16 %v312
    %v488 = vunpack.c.h.b16 %v312
    %v489 = vunpack.c.l.b16 %v313
    %v490 = vunpack.c.h.b16 %v313
    %v491 = vunpack.c.l.b16 %v314
    %v492 = vunpack.c.h.b16 %v314
    %v493 = vunpack.c.l.b16 %v315
    %v494 = vunpack.c.h.b16 %v315
    %v495 = vunpack.c.l.b16 %v316
    %v496 = vunpack.c.h.b16 %v316
    %v497 = vunpack.c.l.b16 %v317
    %v498 = vunpack.c.h.b16 %v317
    %v499 = vunpack.c.l.b16 %v318
    %v500 = vunpack.c.h.b16 %v318
    %v501 = vunpack.c.l.b16 %v319
    %v502 = vunpack.c.h.b16 %v319
    %v503 = vunpack.c.l.b16 %v320
    %v504 = vunpack.c.h.b16 %v320
    %v505 = vunpack.c.l.b16 %v321
    %v506 = vunpack.c.h.b16 %v321
    %v507 = vunpack.c.l.b16 %v322
    %v508 = vunpack.c.h.b16 %v322
    %v509 = vunpack.c.l.b16 %v323
    %v510 = vunpack.c.h.b16 %v323
    %v511 = vunpack.c.l.b16 %v324
    %v512 = vunpack.c.h.b16 %v324
    %v513 = vunpack.c.l.b16 %v325
    %v514 = vunpack.c.h.b16 %v325
    %v515 = vunpack.c.l.b16 %v326
    %v516 = vunpack.c.h.b16 %v326
    %v517 = vunpack.c.l.b16 %v327
    %v518 = vunpack.c.h.b16 %v327
    %v519 = vunpack.c.l.b16 %v328
    %v520 = vunpack.c.h.b16 %v328
    %v521 = vunpack.c.l.b16 %v329
    %v522 = vunpack.c.h.b16 %v329
    %v523 = vunpack.c.l.b16 %v330
    %v524 = vunpack.c.h.b16 %v330
    %v525 = vunpack.c.l.b16 %v331
    %v526 = vunpack.c.h.b16 %v331
    %v527 = vunpack.c.l.b16 %v332
    %v528 = vunpack.c.h.b16 %v332
    %v529 = vunpack.c.l.b16 %v333
    %v530 = vunpack.c.h.b16 %v333
    %v531 = vunpack.c.l.b16 %v334
    %v532 = vunpack.c.h.b16 %v334
    %v533 = vunpack.c.l.b16 %v335
    %v534 = vunpack.c.h.b16 %v335
    %v535 = vunpack.c.l.b16 %v336
    %v536 = vunpack.c.h.b16 %v336
    %v537 = vunpack.c.l.b16 %v337
    %v538 = vunpack.c.h.b16 %v337
    %v539 = vunpack.c.l.b16 %v338
    %v540 = vunpack.c.h.b16 %v338
    %v541 = vpack.c.b16 %v417, %v413
    %v542 = vpack.c.b16 %v418, %v414
    %v543 = vpack.c.b16 %v419, %v415
    %v544 = vpack.c.b16 %v420, %v416
    %v545 = vpack.c.b16 %v425, %v421
    %v546 = vpack.c.b16 %v426, %v422
    %v547 = vpack.c.b16 %v427, %v423
    %v548 = vpack.c.b16 %v428, %v424
    %v549 = vpack.c.b16 %v433, %v429
    %v550 = vpack.c.b16 %v434, %v430
    %v551 = vpack.c.b16 %v435, %v431
    %v552 = vpack.c.b16 %v436, %v432
    %v553 = vpack.c.b16 %v441, %v437
    %v554 = vpack.c.b16 %v442, %v438
    %v555 = vpack.c.b16 %v443, %v439
    %v556 = vpack.c.b16 %v444, %v440
    %v557 = vpack.c.b16 %v449, %v445
    %v558 = vpack.c.b16 %v450, %v446
    %v559 = vpack.c.b16 %v451, %v447
    %v560 = vpack.c.b16 %v452, %v448
    %v561 = vpack.c.b16 %v457, %v453
    %v562 = vpack.c.b16 %v458, %v454
    %v563 = vpack.c.b16 %v459, %v455
    %v564 = vpack.c.b16 %v460, %v456
    %v565 = vpack.c.b16 %v465, %v461
    %v566 = vpack.c.b16 %v466, %v462
    %v567 = vpack.c.b16 %v467, %v463
    %v568 = vpack.c.b16 %v468, %v464
    %v569 = vpack.c.b16 %v473, %v469
    %v570 = vpack.c.b16 %v474, %v470
    %v571 = vpack.c.b16 %v475, %v471
    %v572 = vpack.c.b16 %v476, %v472
    %v573 = vpack.c.b16 %v481, %v477
    %v574 = vpack.c.b16 %v482, %v478
    %v575 = vpack.c.b16 %v483, %v479
    %v576 = vpack.c.b16 %v484, %v480
    %v577 = vpack.c.b16 %v489, %v485
    %v578 = vpack.c.b16 %v490, %v486
    %v579 = vpack.c.b16 %v491, %v487
    %v580 = vpack.c.b16 %v492, %v488
    %v581 = vpack.c.b16 %v497, %v493
    %v582 = vpack.c.b16 %v498, %v494
    %v583 = vpack.c.b16 %v499, %v495
    %v584 = vpack.c.b16 %v500, %v496
    %v585 = vpack.c.b16 %v505, %v501
    %v586 = vpack.c.b16 %v506, %v502
    %v587 = vpack.c.b16 %v507, %v503
    %v588 = vpack.c.b16 %v508, %v504
    %v589 = vpack.c.b16 %v513, %v509
    %v590 = vpack.c.b16 %v514, %v510
    %v591 = vpack.c.b16 %v515, %v511
    %v592 = vpack.c.b16 %v516, %v512
    %v593 = vpack.c.b16 %v521, %v517
    %v594 = vpack.c.b16 %v522, %v518
    %v595 = vpack.c.b16 %v523, %v519
    %v596 = vpack.c.b16 %v524, %v520
    %v597 = vpack.c.b16 %v529, %v525
    %v598 = vpack.c.b16 %v530, %v526
    %v599 = vpack.c.b16 %v531, %v527
    %v600 = vpack.c.b16 %v532, %v528
    %v601 = vpack.c.b16 %v537, %v533
    %v602 = vpack.c.b16 %v538, %v534
    %v603 = vpack.c.b16 %v539, %v535
    %v604 = vpack.c.b16 %v540, %v536
    %669 = vmatpush.bf16.msra.mxu0 %v569
    %670 = vmatpush.bf16.msra.mxu0 %v565
    %671 = vmatpush.bf16.msra.mxu0 %v561
    %672 = vmatpush.bf16.msra.mxu0 %v557
    %673 = vmatpush.bf16.msra.mxu0 %v553
    %674 = vmatpush.bf16.msra.mxu0 %v549
    %675 = vmatpush.bf16.msra.mxu0 %v545
    %676 = vmatpush.bf16.msra.mxu0 %v541
    %677 = vmatmul.bf16.gmra.mxu0 %v273
    %v678 = vpop.f32.mrf.mxu0
    %v679 = vadd.f32 %v341, %v678
    %v680 = vpop.f32.mrf.mxu0
    %681 = vdwg.mxu0
    %682 = vmatpush.bf16.msra.mxu0 %v601
    %683 = vmatpush.bf16.msra.mxu0 %v597
    %684 = vmatpush.bf16.msra.mxu0 %v593
    %685 = vmatpush.bf16.msra.mxu0 %v589
    %686 = vmatpush.bf16.msra.mxu0 %v585
    %687 = vmatpush.bf16.msra.mxu0 %v581
    %688 = vmatpush.bf16.msra.mxu0 %v577
    %689 = vmatpush.bf16.msra.mxu0 %v573
    %690 = vmatmul.bf16.gmra.mxu0 %v274
    %v691 = vpop.f32.mrf.mxu0
    %v692 = vadd.f32 %v679, %v691
    %v693 = vpop.f32.mrf.mxu0
    %694 = vdwg.mxu0
    %695 = vmatpush.bf16.msra.mxu0 %v570
    %696 = vmatpush.bf16.msra.mxu0 %v566
    %697 = vmatpush.bf16.msra.mxu0 %v562
    %698 = vmatpush.bf16.msra.mxu0 %v558
    %699 = vmatpush.bf16.msra.mxu0 %v554
    %700 = vmatpush.bf16.msra.mxu0 %v550
    %701 = vmatpush.bf16.msra.mxu0 %v546
    %702 = vmatpush.bf16.msra.mxu0 %v542
    %703 = vmatmul.bf16.gmra.mxu0 %v273
    %v704 = vpop.f32.mrf.mxu0
    %v705 = vadd.f32 %v342, %v704
    %v706 = vpop.f32.mrf.mxu0
    %707 = vdwg.mxu0
    %708 = vmatpush.bf16.msra.mxu0 %v602
    %709 = vmatpush.bf16.msra.mxu0 %v598
    %710 = vmatpush.bf16.msra.mxu0 %v594
    %711 = vmatpush.bf16.msra.mxu0 %v590
    %712 = vmatpush.bf16.msra.mxu0 %v586
    %713 = vmatpush.bf16.msra.mxu0 %v582
    %714 = vmatpush.bf16.msra.mxu0 %v578
    %715 = vmatpush.bf16.msra.mxu0 %v574
    %716 = vmatmul.bf16.gmra.mxu0 %v274
    %v717 = vpop.f32.mrf.mxu0
    %v718 = vadd.f32 %v705, %v717
    %v719 = vpop.f32.mrf.mxu0
    %720 = vdwg.mxu0
    %721 = vmatpush.bf16.msra.mxu0 %v571
    %722 = vmatpush.bf16.msra.mxu0 %v567
    %723 = vmatpush.bf16.msra.mxu0 %v563
    %724 = vmatpush.bf16.msra.mxu0 %v559
    %725 = vmatpush.bf16.msra.mxu0 %v555
    %726 = vmatpush.bf16.msra.mxu0 %v551
    %727 = vmatpush.bf16.msra.mxu0 %v547
    %728 = vmatpush.bf16.msra.mxu0 %v543
    %729 = vmatmul.bf16.gmra.mxu0 %v273
    %v730 = vpop.f32.mrf.mxu0
    %v731 = vadd.f32 %v343, %v730
    %v732 = vpop.f32.mrf.mxu0
    %733 = vdwg.mxu0
    %734 = vmatpush.bf16.msra.mxu0 %v603
    %735 = vmatpush.bf16.msra.mxu0 %v599
    %736 = vmatpush.bf16.msra.mxu0 %v595
    %737 = vmatpush.bf16.msra.mxu0 %v591
    %738 = vmatpush.bf16.msra.mxu0 %v587
    %739 = vmatpush.bf16.msra.mxu0 %v583
    %740 = vmatpush.bf16.msra.mxu0 %v579
    %741 = vmatpush.bf16.msra.mxu0 %v575
    %742 = vmatmul.bf16.gmra.mxu0 %v274
    %v743 = vpop.f32.mrf.mxu0
    %v744 = vadd.f32 %v731, %v743
    %v745 = vpop.f32.mrf.mxu0
    %746 = vdwg.mxu0
    %747 = vmatpush.bf16.msra.mxu0 %v572
    %748 = vmatpush.bf16.msra.mxu0 %v568
    %749 = vmatpush.bf16.msra.mxu0 %v564
    %750 = vmatpush.bf16.msra.mxu0 %v560
    %751 = vmatpush.bf16.msra.mxu0 %v556
    %752 = vmatpush.bf16.msra.mxu0 %v552
    %753 = vmatpush.bf16.msra.mxu0 %v548
    %754 = vmatpush.bf16.msra.mxu0 %v544
    %755 = vmatmul.bf16.gmra.mxu0 %v273
    %v756 = vpop.f32.mrf.mxu0
    %v757 = vadd.f32 %v344, %v756
    %v758 = vpop.f32.mrf.mxu0
    %759 = vdwg.mxu0
    %760 = vmatpush.bf16.msra.mxu0 %v604
    %761 = vmatpush.bf16.msra.mxu0 %v600
    %762 = vmatpush.bf16.msra.mxu0 %v596
    %763 = vmatpush.bf16.msra.mxu0 %v592
    %764 = vmatpush.bf16.msra.mxu0 %v588
    %765 = vmatpush.bf16.msra.mxu0 %v584
    %766 = vmatpush.bf16.msra.mxu0 %v580
    %767 = vmatpush.bf16.msra.mxu0 %v576
    %768 = vmatmul.bf16.gmra.mxu0 %v274
    %v769 = vpop.f32.mrf.mxu0
    %v770 = vadd.f32 %v757, %v769
    %v771 = vpop.f32.mrf.mxu0
    %772 = vdwg.mxu0
    %v773 = vmax.f32 %v692, 0.0
    %v774 = vmax.f32 %v718, 0.0
    %v775 = vmax.f32 %v744, 0.0
    %v776 = vmax.f32 %v770, 0.0
    %s777 = smul.u32 4, 64
    %s778 = smul.u32 %s777, 8
    %s779 = sshll.u32 %s778, 4
    %780 = dma.done %s106, %s779
    %v781 = vpack.c.bf16 %v773, %v773
    %v782 = vpack.c.bf16 %v774, %v774
    %v783 = vpack.c.bf16 %v775, %v775
    %v784 = vpack.c.bf16 %v776, %v776
    %v785 = vld [vmem:[#allocation4] sm:$0xff]
    %v786 = vld [vmem:[#allocation4 + $0x8] sm:$0xff]
    %v787 = vld [vmem:[#allocation4 + $0x10] sm:$0xff]
    %v788 = vld [vmem:[#allocation4 + $0x18] sm:$0xff]
    %v789 = vld [vmem:[#allocation4 + $0x20] sm:$0xff]
    %v790 = vld [vmem:[#allocation4 + $0x28] sm:$0xff]
    %v791 = vld [vmem:[#allocation4 + $0x30] sm:$0xff]
    %v792 = vld [vmem:[#allocation4 + $0x38] sm:$0xff]
    %v793 = vld [vmem:[#allocation4 + $0x40] sm:$0xff]
    %v794 = vld [vmem:[#allocation4 + $0x48] sm:$0xff]
    %v795 = vld [vmem:[#allocation4 + $0x50] sm:$0xff]
    %v796 = vld [vmem:[#allocation4 + $0x58] sm:$0xff]
    %v797 = vld [vmem:[#allocation4 + $0x60] sm:$0xff]
    %v798 = vld [vmem:[#allocation4 + $0x68] sm:$0xff]
    %v799 = vld [vmem:[#allocation4 + $0x70] sm:$0xff]
    %v800 = vld [vmem:[#allocation4 + $0x78] sm:$0xff]
    %v801 = vld [vmem:[#allocation4 + $0x80] sm:$0xff]
    %v802 = vld [vmem:[#allocation4 + $0x88] sm:$0xff]
    %v803 = vld [vmem:[#allocation4 + $0x90] sm:$0xff]
    %v804 = vld [vmem:[#allocation4 + $0x98] sm:$0xff]
    %v805 = vld [vmem:[#allocation4 + $0xa0] sm:$0xff]
    %v806 = vld [vmem:[#allocation4 + $0xa8] sm:$0xff]
    %v807 = vld [vmem:[#allocation4 + $0xb0] sm:$0xff]
    %v808 = vld [vmem:[#allocation4 + $0xb8] sm:$0xff]
    %v809 = vld [vmem:[#allocation4 + $0xc0] sm:$0xff]
    %v810 = vld [vmem:[#allocation4 + $0xc8] sm:$0xff]
    %v811 = vld [vmem:[#allocation4 + $0xd0] sm:$0xff]
    %v812 = vld [vmem:[#allocation4 + $0xd8] sm:$0xff]
    %v813 = vld [vmem:[#allocation4 + $0xe0] sm:$0xff]
    %v814 = vld [vmem:[#allocation4 + $0xe8] sm:$0xff]
    %v815 = vld [vmem:[#allocation4 + $0xf0] sm:$0xff]
    %v816 = vld [vmem:[#allocation4 + $0xf8] sm:$0xff]
    %v817 = vld [vmem:[#allocation4 + $0x100] sm:$0xff]
    %v818 = vld [vmem:[#allocation4 + $0x108] sm:$0xff]
    %v819 = vld [vmem:[#allocation4 + $0x110] sm:$0xff]
    %v820 = vld [vmem:[#allocation4 + $0x118] sm:$0xff]
    %v821 = vld [vmem:[#allocation4 + $0x120] sm:$0xff]
    %v822 = vld [vmem:[#allocation4 + $0x128] sm:$0xff]
    %v823 = vld [vmem:[#allocation4 + $0x130] sm:$0xff]
    %v824 = vld [vmem:[#allocation4 + $0x138] sm:$0xff]
    %v825 = vld [vmem:[#allocation4 + $0x140] sm:$0xff]
    %v826 = vld [vmem:[#allocation4 + $0x148] sm:$0xff]
    %v827 = vld [vmem:[#allocation4 + $0x150] sm:$0xff]
    %v828 = vld [vmem:[#allocation4 + $0x158] sm:$0xff]
    %v829 = vld [vmem:[#allocation4 + $0x160] sm:$0xff]
    %v830 = vld [vmem:[#allocation4 + $0x168] sm:$0xff]
    %v831 = vld [vmem:[#allocation4 + $0x170] sm:$0xff]
    %v832 = vld [vmem:[#allocation4 + $0x178] sm:$0xff]
    %v833 = vld [vmem:[#allocation4 + $0x180] sm:$0xff]
    %v834 = vld [vmem:[#allocation4 + $0x188] sm:$0xff]
    %v835 = vld [vmem:[#allocation4 + $0x190] sm:$0xff]
    %v836 = vld [vmem:[#allocation4 + $0x198] sm:$0xff]
    %v837 = vld [vmem:[#allocation4 + $0x1a0] sm:$0xff]
    %v838 = vld [vmem:[#allocation4 + $0x1a8] sm:$0xff]
    %v839 = vld [vmem:[#allocation4 + $0x1b0] sm:$0xff]
    %v840 = vld [vmem:[#allocation4 + $0x1b8] sm:$0xff]
    %v841 = vld [vmem:[#allocation4 + $0x1c0] sm:$0xff]
    %v842 = vld [vmem:[#allocation4 + $0x1c8] sm:$0xff]
    %v843 = vld [vmem:[#allocation4 + $0x1d0] sm:$0xff]
    %v844 = vld [vmem:[#allocation4 + $0x1d8] sm:$0xff]
    %v845 = vld [vmem:[#allocation4 + $0x1e0] sm:$0xff]
    %v846 = vld [vmem:[#allocation4 + $0x1e8] sm:$0xff]
    %v847 = vld [vmem:[#allocation4 + $0x1f0] sm:$0xff]
    %v848 = vld [vmem:[#allocation4 + $0x1f8] sm:$0xff]
    %v849 = vld [vmem:[#allocation4 + $0x200] sm:$0xff]
    %v850 = vld [vmem:[#allocation4 + $0x208] sm:$0xff]
    %v851 = vld [vmem:[#allocation4 + $0x210] sm:$0xff]
    %v852 = vld [vmem:[#allocation4 + $0x218] sm:$0xff]
    %v853 = vld [vmem:[#allocation4 + $0x220] sm:$0xff]
    %v854 = vld [vmem:[#allocation4 + $0x228] sm:$0xff]
    %v855 = vld [vmem:[#allocation4 + $0x230] sm:$0xff]
    %v856 = vld [vmem:[#allocation4 + $0x238] sm:$0xff]
    %v857 = vld [vmem:[#allocation4 + $0x240] sm:$0xff]
    %v858 = vld [vmem:[#allocation4 + $0x248] sm:$0xff]
    %v859 = vld [vmem:[#allocation4 + $0x250] sm:$0xff]
    %v860 = vld [vmem:[#allocation4 + $0x258] sm:$0xff]
    %v861 = vld [vmem:[#allocation4 + $0x260] sm:$0xff]
    %v862 = vld [vmem:[#allocation4 + $0x268] sm:$0xff]
    %v863 = vld [vmem:[#allocation4 + $0x270] sm:$0xff]
    %v864 = vld [vmem:[#allocation4 + $0x278] sm:$0xff]
    %v865 = vld [vmem:[#allocation4 + $0x280] sm:$0xff]
    %v866 = vld [vmem:[#allocation4 + $0x288] sm:$0xff]
    %v867 = vld [vmem:[#allocation4 + $0x290] sm:$0xff]
    %v868 = vld [vmem:[#allocation4 + $0x298] sm:$0xff]
    %v869 = vld [vmem:[#allocation4 + $0x2a0] sm:$0xff]
    %v870 = vld [vmem:[#allocation4 + $0x2a8] sm:$0xff]
    %v871 = vld [vmem:[#allocation4 + $0x2b0] sm:$0xff]
    %v872 = vld [vmem:[#allocation4 + $0x2b8] sm:$0xff]
    %v873 = vld [vmem:[#allocation4 + $0x2c0] sm:$0xff]
    %v874 = vld [vmem:[#allocation4 + $0x2c8] sm:$0xff]
    %v875 = vld [vmem:[#allocation4 + $0x2d0] sm:$0xff]
    %v876 = vld [vmem:[#allocation4 + $0x2d8] sm:$0xff]
    %v877 = vld [vmem:[#allocation4 + $0x2e0] sm:$0xff]
    %v878 = vld [vmem:[#allocation4 + $0x2e8] sm:$0xff]
    %v879 = vld [vmem:[#allocation4 + $0x2f0] sm:$0xff]
    %v880 = vld [vmem:[#allocation4 + $0x2f8] sm:$0xff]
    %v881 = vld [vmem:[#allocation4 + $0x300] sm:$0xff]
    %v882 = vld [vmem:[#allocation4 + $0x308] sm:$0xff]
    %v883 = vld [vmem:[#allocation4 + $0x310] sm:$0xff]
    %v884 = vld [vmem:[#allocation4 + $0x318] sm:$0xff]
    %v885 = vld [vmem:[#allocation4 + $0x320] sm:$0xff]
    %v886 = vld [vmem:[#allocation4 + $0x328] sm:$0xff]
    %v887 = vld [vmem:[#allocation4 + $0x330] sm:$0xff]
    %v888 = vld [vmem:[#allocation4 + $0x338] sm:$0xff]
    %v889 = vld [vmem:[#allocation4 + $0x340] sm:$0xff]
    %v890 = vld [vmem:[#allocation4 + $0x348] sm:$0xff]
    %v891 = vld [vmem:[#allocation4 + $0x350] sm:$0xff]
    %v892 = vld [vmem:[#allocation4 + $0x358] sm:$0xff]
    %v893 = vld [vmem:[#allocation4 + $0x360] sm:$0xff]
    %v894 = vld [vmem:[#allocation4 + $0x368] sm:$0xff]
    %v895 = vld [vmem:[#allocation4 + $0x370] sm:$0xff]
    %v896 = vld [vmem:[#allocation4 + $0x378] sm:$0xff]
    %v897 = vld [vmem:[#allocation4 + $0x380] sm:$0xff]
    %v898 = vld [vmem:[#allocation4 + $0x388] sm:$0xff]
    %v899 = vld [vmem:[#allocation4 + $0x390] sm:$0xff]
    %v900 = vld [vmem:[#allocation4 + $0x398] sm:$0xff]
    %v901 = vld [vmem:[#allocation4 + $0x3a0] sm:$0xff]
    %v902 = vld [vmem:[#allocation4 + $0x3a8] sm:$0xff]
    %v903 = vld [vmem:[#allocation4 + $0x3b0] sm:$0xff]
    %v904 = vld [vmem:[#allocation4 + $0x3b8] sm:$0xff]
    %v905 = vld [vmem:[#allocation4 + $0x3c0] sm:$0xff]
    %v906 = vld [vmem:[#allocation4 + $0x3c8] sm:$0xff]
    %v907 = vld [vmem:[#allocation4 + $0x3d0] sm:$0xff]
    %v908 = vld [vmem:[#allocation4 + $0x3d8] sm:$0xff]
    %v909 = vld [vmem:[#allocation4 + $0x3e0] sm:$0xff]
    %v910 = vld [vmem:[#allocation4 + $0x3e8] sm:$0xff]
    %v911 = vld [vmem:[#allocation4 + $0x3f0] sm:$0xff]
    %v912 = vld [vmem:[#allocation4 + $0x3f8] sm:$0xff]
    %v913 = vld [vmem:[#allocation4 + $0x400] sm:$0xff]
    %v914 = vld [vmem:[#allocation4 + $0x408] sm:$0xff]
    %v915 = vld [vmem:[#allocation4 + $0x410] sm:$0xff]
    %v916 = vld [vmem:[#allocation4 + $0x418] sm:$0xff]
    %v917 = vld [vmem:[#allocation4 + $0x420] sm:$0xff]
    %v918 = vld [vmem:[#allocation4 + $0x428] sm:$0xff]
    %v919 = vld [vmem:[#allocation4 + $0x430] sm:$0xff]
    %v920 = vld [vmem:[#allocation4 + $0x438] sm:$0xff]
    %v921 = vld [vmem:[#allocation4 + $0x440] sm:$0xff]
    %v922 = vld [vmem:[#allocation4 + $0x448] sm:$0xff]
    %v923 = vld [vmem:[#allocation4 + $0x450] sm:$0xff]
    %v924 = vld [vmem:[#allocation4 + $0x458] sm:$0xff]
    %v925 = vld [vmem:[#allocation4 + $0x460] sm:$0xff]
    %v926 = vld [vmem:[#allocation4 + $0x468] sm:$0xff]
    %v927 = vld [vmem:[#allocation4 + $0x470] sm:$0xff]
    %v928 = vld [vmem:[#allocation4 + $0x478] sm:$0xff]
    %v929 = vld [vmem:[#allocation4 + $0x480] sm:$0xff]
    %v930 = vld [vmem:[#allocation4 + $0x488] sm:$0xff]
    %v931 = vld [vmem:[#allocation4 + $0x490] sm:$0xff]
    %v932 = vld [vmem:[#allocation4 + $0x498] sm:$0xff]
    %v933 = vld [vmem:[#allocation4 + $0x4a0] sm:$0xff]
    %v934 = vld [vmem:[#allocation4 + $0x4a8] sm:$0xff]
    %v935 = vld [vmem:[#allocation4 + $0x4b0] sm:$0xff]
    %v936 = vld [vmem:[#allocation4 + $0x4b8] sm:$0xff]
    %v937 = vld [vmem:[#allocation4 + $0x4c0] sm:$0xff]
    %v938 = vld [vmem:[#allocation4 + $0x4c8] sm:$0xff]
    %v939 = vld [vmem:[#allocation4 + $0x4d0] sm:$0xff]
    %v940 = vld [vmem:[#allocation4 + $0x4d8] sm:$0xff]
    %v941 = vld [vmem:[#allocation4 + $0x4e0] sm:$0xff]
    %v942 = vld [vmem:[#allocation4 + $0x4e8] sm:$0xff]
    %v943 = vld [vmem:[#allocation4 + $0x4f0] sm:$0xff]
    %v944 = vld [vmem:[#allocation4 + $0x4f8] sm:$0xff]
    %v945 = vld [vmem:[#allocation4 + $0x500] sm:$0xff]
    %v946 = vld [vmem:[#allocation4 + $0x508] sm:$0xff]
    %v947 = vld [vmem:[#allocation4 + $0x510] sm:$0xff]
    %v948 = vld [vmem:[#allocation4 + $0x518] sm:$0xff]
    %v949 = vld [vmem:[#allocation4 + $0x520] sm:$0xff]
    %v950 = vld [vmem:[#allocation4 + $0x528] sm:$0xff]
    %v951 = vld [vmem:[#allocation4 + $0x530] sm:$0xff]
    %v952 = vld [vmem:[#allocation4 + $0x538] sm:$0xff]
    %v953 = vld [vmem:[#allocation4 + $0x540] sm:$0xff]
    %v954 = vld [vmem:[#allocation4 + $0x548] sm:$0xff]
    %v955 = vld [vmem:[#allocation4 + $0x550] sm:$0xff]
    %v956 = vld [vmem:[#allocation4 + $0x558] sm:$0xff]
    %v957 = vld [vmem:[#allocation4 + $0x560] sm:$0xff]
    %v958 = vld [vmem:[#allocation4 + $0x568] sm:$0xff]
    %v959 = vld [vmem:[#allocation4 + $0x570] sm:$0xff]
    %v960 = vld [vmem:[#allocation4 + $0x578] sm:$0xff]
    %v961 = vld [vmem:[#allocation4 + $0x580] sm:$0xff]
    %v962 = vld [vmem:[#allocation4 + $0x588] sm:$0xff]
    %v963 = vld [vmem:[#allocation4 + $0x590] sm:$0xff]
    %v964 = vld [vmem:[#allocation4 + $0x598] sm:$0xff]
    %v965 = vld [vmem:[#allocation4 + $0x5a0] sm:$0xff]
    %v966 = vld [vmem:[#allocation4 + $0x5a8] sm:$0xff]
    %v967 = vld [vmem:[#allocation4 + $0x5b0] sm:$0xff]
    %v968 = vld [vmem:[#allocation4 + $0x5b8] sm:$0xff]
    %v969 = vld [vmem:[#allocation4 + $0x5c0] sm:$0xff]
    %v970 = vld [vmem:[#allocation4 + $0x5c8] sm:$0xff]
    %v971 = vld [vmem:[#allocation4 + $0x5d0] sm:$0xff]
    %v972 = vld [vmem:[#allocation4 + $0x5d8] sm:$0xff]
    %v973 = vld [vmem:[#allocation4 + $0x5e0] sm:$0xff]
    %v974 = vld [vmem:[#allocation4 + $0x5e8] sm:$0xff]
    %v975 = vld [vmem:[#allocation4 + $0x5f0] sm:$0xff]
    %v976 = vld [vmem:[#allocation4 + $0x5f8] sm:$0xff]
    %v977 = vld [vmem:[#allocation4 + $0x600] sm:$0xff]
    %v978 = vld [vmem:[#allocation4 + $0x608] sm:$0xff]
    %v979 = vld [vmem:[#allocation4 + $0x610] sm:$0xff]
    %v980 = vld [vmem:[#allocation4 + $0x618] sm:$0xff]
    %v981 = vld [vmem:[#allocation4 + $0x620] sm:$0xff]
    %v982 = vld [vmem:[#allocation4 + $0x628] sm:$0xff]
    %v983 = vld [vmem:[#allocation4 + $0x630] sm:$0xff]
    %v984 = vld [vmem:[#allocation4 + $0x638] sm:$0xff]
    %v985 = vld [vmem:[#allocation4 + $0x640] sm:$0xff]
    %v986 = vld [vmem:[#allocation4 + $0x648] sm:$0xff]
    %v987 = vld [vmem:[#allocation4 + $0x650] sm:$0xff]
    %v988 = vld [vmem:[#allocation4 + $0x658] sm:$0xff]
    %v989 = vld [vmem:[#allocation4 + $0x660] sm:$0xff]
    %v990 = vld [vmem:[#allocation4 + $0x668] sm:$0xff]
    %v991 = vld [vmem:[#allocation4 + $0x670] sm:$0xff]
    %v992 = vld [vmem:[#allocation4 + $0x678] sm:$0xff]
    %v993 = vld [vmem:[#allocation4 + $0x680] sm:$0xff]
    %v994 = vld [vmem:[#allocation4 + $0x688] sm:$0xff]
    %v995 = vld [vmem:[#allocation4 + $0x690] sm:$0xff]
    %v996 = vld [vmem:[#allocation4 + $0x698] sm:$0xff]
    %v997 = vld [vmem:[#allocation4 + $0x6a0] sm:$0xff]
    %v998 = vld [vmem:[#allocation4 + $0x6a8] sm:$0xff]
    %v999 = vld [vmem:[#allocation4 + $0x6b0] sm:$0xff]
    %v1000 = vld [vmem:[#allocation4 + $0x6b8] sm:$0xff]
    %v1001 = vld [vmem:[#allocation4 + $0x6c0] sm:$0xff]
    %v1002 = vld [vmem:[#allocation4 + $0x6c8] sm:$0xff]
    %v1003 = vld [vmem:[#allocation4 + $0x6d0] sm:$0xff]
    %v1004 = vld [vmem:[#allocation4 + $0x6d8] sm:$0xff]
    %v1005 = vld [vmem:[#allocation4 + $0x6e0] sm:$0xff]
    %v1006 = vld [vmem:[#allocation4 + $0x6e8] sm:$0xff]
    %v1007 = vld [vmem:[#allocation4 + $0x6f0] sm:$0xff]
    %v1008 = vld [vmem:[#allocation4 + $0x6f8] sm:$0xff]
    %v1009 = vld [vmem:[#allocation4 + $0x700] sm:$0xff]
    %v1010 = vld [vmem:[#allocation4 + $0x708] sm:$0xff]
    %v1011 = vld [vmem:[#allocation4 + $0x710] sm:$0xff]
    %v1012 = vld [vmem:[#allocation4 + $0x718] sm:$0xff]
    %v1013 = vld [vmem:[#allocation4 + $0x720] sm:$0xff]
    %v1014 = vld [vmem:[#allocation4 + $0x728] sm:$0xff]
    %v1015 = vld [vmem:[#allocation4 + $0x730] sm:$0xff]
    %v1016 = vld [vmem:[#allocation4 + $0x738] sm:$0xff]
    %v1017 = vld [vmem:[#allocation4 + $0x740] sm:$0xff]
    %v1018 = vld [vmem:[#allocation4 + $0x748] sm:$0xff]
    %v1019 = vld [vmem:[#allocation4 + $0x750] sm:$0xff]
    %v1020 = vld [vmem:[#allocation4 + $0x758] sm:$0xff]
    %v1021 = vld [vmem:[#allocation4 + $0x760] sm:$0xff]
    %v1022 = vld [vmem:[#allocation4 + $0x768] sm:$0xff]
    %v1023 = vld [vmem:[#allocation4 + $0x770] sm:$0xff]
    %v1024 = vld [vmem:[#allocation4 + $0x778] sm:$0xff]
    %v1025 = vld [vmem:[#allocation4 + $0x780] sm:$0xff]
    %v1026 = vld [vmem:[#allocation4 + $0x788] sm:$0xff]
    %v1027 = vld [vmem:[#allocation4 + $0x790] sm:$0xff]
    %v1028 = vld [vmem:[#allocation4 + $0x798] sm:$0xff]
    %v1029 = vld [vmem:[#allocation4 + $0x7a0] sm:$0xff]
    %v1030 = vld [vmem:[#allocation4 + $0x7a8] sm:$0xff]
    %v1031 = vld [vmem:[#allocation4 + $0x7b0] sm:$0xff]
    %v1032 = vld [vmem:[#allocation4 + $0x7b8] sm:$0xff]
    %v1033 = vld [vmem:[#allocation4 + $0x7c0] sm:$0xff]
    %v1034 = vld [vmem:[#allocation4 + $0x7c8] sm:$0xff]
    %v1035 = vld [vmem:[#allocation4 + $0x7d0] sm:$0xff]
    %v1036 = vld [vmem:[#allocation4 + $0x7d8] sm:$0xff]
    %v1037 = vld [vmem:[#allocation4 + $0x7e0] sm:$0xff]
    %v1038 = vld [vmem:[#allocation4 + $0x7e8] sm:$0xff]
    %v1039 = vld [vmem:[#allocation4 + $0x7f0] sm:$0xff]
    %v1040 = vld [vmem:[#allocation4 + $0x7f8] sm:$0xff]
    %v1041 = vld [vmem:[#allocation11] sm:$0xff]
    %v1043 = vperm.slane %v1041, 0
    %v1044 = vperm.slane %v1041, 1
    %v1045 = vperm.slane %v1041, 2
    %v1046 = vperm.slane %v1041, 3
    %v1047 = vperm.slane %v1041, 4
    %v1048 = vperm.slane %v1041, 5
    %v1049 = vperm.slane %v1041, 6
    %v1050 = vperm.slane %v1041, 7
    %v1315 = vunpack.c.l.b16 %v785
    %v1316 = vunpack.c.h.b16 %v785
    %v1317 = vunpack.c.l.b16 %v786
    %v1318 = vunpack.c.h.b16 %v786
    %v1319 = vunpack.c.l.b16 %v787
    %v1320 = vunpack.c.h.b16 %v787
    %v1321 = vunpack.c.l.b16 %v788
    %v1322 = vunpack.c.h.b16 %v788
    %v1323 = vunpack.c.l.b16 %v789
    %v1324 = vunpack.c.h.b16 %v789
    %v1325 = vunpack.c.l.b16 %v790
    %v1326 = vunpack.c.h.b16 %v790
    %v1327 = vunpack.c.l.b16 %v791
    %v1328 = vunpack.c.h.b16 %v791
    %v1329 = vunpack.c.l.b16 %v792
    %v1330 = vunpack.c.h.b16 %v792
    %v1331 = vunpack.c.l.b16 %v793
    %v1332 = vunpack.c.h.b16 %v793
    %v1333 = vunpack.c.l.b16 %v794
    %v1334 = vunpack.c.h.b16 %v794
    %v1335 = vunpack.c.l.b16 %v795
    %v1336 = vunpack.c.h.b16 %v795
    %v1337 = vunpack.c.l.b16 %v796
    %v1338 = vunpack.c.h.b16 %v796
    %v1339 = vunpack.c.l.b16 %v797
    %v1340 = vunpack.c.h.b16 %v797
    %v1341 = vunpack.c.l.b16 %v798
    %v1342 = vunpack.c.h.b16 %v798
    %v1343 = vunpack.c.l.b16 %v799
    %v1344 = vunpack.c.h.b16 %v799
    %v1345 = vunpack.c.l.b16 %v800
    %v1346 = vunpack.c.h.b16 %v800
    %v1347 = vunpack.c.l.b16 %v801
    %v1348 = vunpack.c.h.b16 %v801
    %v1349 = vunpack.c.l.b16 %v802
    %v1350 = vunpack.c.h.b16 %v802
    %v1351 = vunpack.c.l.b16 %v803
    %v1352 = vunpack.c.h.b16 %v803
    %v1353 = vunpack.c.l.b16 %v804
    %v1354 = vunpack.c.h.b16 %v804
    %v1355 = vunpack.c.l.b16 %v805
    %v1356 = vunpack.c.h.b16 %v805
    %v1357 = vunpack.c.l.b16 %v806
    %v1358 = vunpack.c.h.b16 %v806
    %v1359 = vunpack.c.l.b16 %v807
    %v1360 = vunpack.c.h.b16 %v807
    %v1361 = vunpack.c.l.b16 %v808
    %v1362 = vunpack.c.h.b16 %v808
    %v1363 = vunpack.c.l.b16 %v809
    %v1364 = vunpack.c.h.b16 %v809
    %v1365 = vunpack.c.l.b16 %v810
    %v1366 = vunpack.c.h.b16 %v810
    %v1367 = vunpack.c.l.b16 %v811
    %v1368 = vunpack.c.h.b16 %v811
    %v1369 = vunpack.c.l.b16 %v812
    %v1370 = vunpack.c.h.b16 %v812
    %v1371 = vunpack.c.l.b16 %v813
    %v1372 = vunpack.c.h.b16 %v813
    %v1373 = vunpack.c.l.b16 %v814
    %v1374 = vunpack.c.h.b16 %v814
    %v1375 = vunpack.c.l.b16 %v815
    %v1376 = vunpack.c.h.b16 %v815
    %v1377 = vunpack.c.l.b16 %v816
    %v1378 = vunpack.c.h.b16 %v816
    %v1379 = vunpack.c.l.b16 %v817
    %v1380 = vunpack.c.h.b16 %v817
    %v1381 = vunpack.c.l.b16 %v818
    %v1382 = vunpack.c.h.b16 %v818
    %v1383 = vunpack.c.l.b16 %v819
    %v1384 = vunpack.c.h.b16 %v819
    %v1385 = vunpack.c.l.b16 %v820
    %v1386 = vunpack.c.h.b16 %v820
    %v1387 = vunpack.c.l.b16 %v821
    %v1388 = vunpack.c.h.b16 %v821
    %v1389 = vunpack.c.l.b16 %v822
    %v1390 = vunpack.c.h.b16 %v822
    %v1391 = vunpack.c.l.b16 %v823
    %v1392 = vunpack.c.h.b16 %v823
    %v1393 = vunpack.c.l.b16 %v824
    %v1394 = vunpack.c.h.b16 %v824
    %v1395 = vunpack.c.l.b16 %v825
    %v1396 = vunpack.c.h.b16 %v825
    %v1397 = vunpack.c.l.b16 %v826
    %v1398 = vunpack.c.h.b16 %v826
    %v1399 = vunpack.c.l.b16 %v827
    %v1400 = vunpack.c.h.b16 %v827
    %v1401 = vunpack.c.l.b16 %v828
    %v1402 = vunpack.c.h.b16 %v828
    %v1403 = vunpack.c.l.b16 %v829
    %v1404 = vunpack.c.h.b16 %v829
    %v1405 = vunpack.c.l.b16 %v830
    %v1406 = vunpack.c.h.b16 %v830
    %v1407 = vunpack.c.l.b16 %v831
    %v1408 = vunpack.c.h.b16 %v831
    %v1409 = vunpack.c.l.b16 %v832
    %v1410 = vunpack.c.h.b16 %v832
    %v1411 = vunpack.c.l.b16 %v833
    %v1412 = vunpack.c.h.b16 %v833
    %v1413 = vunpack.c.l.b16 %v834
    %v1414 = vunpack.c.h.b16 %v834
    %v1415 = vunpack.c.l.b16 %v835
    %v1416 = vunpack.c.h.b16 %v835
    %v1417 = vunpack.c.l.b16 %v836
    %v1418 = vunpack.c.h.b16 %v836
    %v1419 = vunpack.c.l.b16 %v837
    %v1420 = vunpack.c.h.b16 %v837
    %v1421 = vunpack.c.l.b16 %v838
    %v1422 = vunpack.c.h.b16 %v838
    %v1423 = vunpack.c.l.b16 %v839
    %v1424 = vunpack.c.h.b16 %v839
    %v1425 = vunpack.c.l.b16 %v840
    %v1426 = vunpack.c.h.b16 %v840
    %v1427 = vunpack.c.l.b16 %v841
    %v1428 = vunpack.c.h.b16 %v841
    %v1429 = vunpack.c.l.b16 %v842
    %v1430 = vunpack.c.h.b16 %v842
    %v1431 = vunpack.c.l.b16 %v843
    %v1432 = vunpack.c.h.b16 %v843
    %v1433 = vunpack.c.l.b16 %v844
    %v1434 = vunpack.c.h.b16 %v844
    %v1435 = vunpack.c.l.b16 %v845
    %v1436 = vunpack.c.h.b16 %v845
    %v1437 = vunpack.c.l.b16 %v846
    %v1438 = vunpack.c.h.b16 %v846
    %v1439 = vunpack.c.l.b16 %v847
    %v1440 = vunpack.c.h.b16 %v847
    %v1441 = vunpack.c.l.b16 %v848
    %v1442 = vunpack.c.h.b16 %v848
    %v1443 = vunpack.c.l.b16 %v849
    %v1444 = vunpack.c.h.b16 %v849
    %v1445 = vunpack.c.l.b16 %v850
    %v1446 = vunpack.c.h.b16 %v850
    %v1447 = vunpack.c.l.b16 %v851
    %v1448 = vunpack.c.h.b16 %v851
    %v1449 = vunpack.c.l.b16 %v852
    %v1450 = vunpack.c.h.b16 %v852
    %v1451 = vunpack.c.l.b16 %v853
    %v1452 = vunpack.c.h.b16 %v853
    %v1453 = vunpack.c.l.b16 %v854
    %v1454 = vunpack.c.h.b16 %v854
    %v1455 = vunpack.c.l.b16 %v855
    %v1456 = vunpack.c.h.b16 %v855
    %v1457 = vunpack.c.l.b16 %v856
    %v1458 = vunpack.c.h.b16 %v856
    %v1459 = vunpack.c.l.b16 %v857
    %v1460 = vunpack.c.h.b16 %v857
    %v1461 = vunpack.c.l.b16 %v858
    %v1462 = vunpack.c.h.b16 %v858
    %v1463 = vunpack.c.l.b16 %v859
    %v1464 = vunpack.c.h.b16 %v859
    %v1465 = vunpack.c.l.b16 %v860
    %v1466 = vunpack.c.h.b16 %v860
    %v1467 = vunpack.c.l.b16 %v861
    %v1468 = vunpack.c.h.b16 %v861
    %v1469 = vunpack.c.l.b16 %v862
    %v1470 = vunpack.c.h.b16 %v862
    %v1471 = vunpack.c.l.b16 %v863
    %v1472 = vunpack.c.h.b16 %v863
    %v1473 = vunpack.c.l.b16 %v864
    %v1474 = vunpack.c.h.b16 %v864
    %v1475 = vunpack.c.l.b16 %v865
    %v1476 = vunpack.c.h.b16 %v865
    %v1477 = vunpack.c.l.b16 %v866
    %v1478 = vunpack.c.h.b16 %v866
    %v1479 = vunpack.c.l.b16 %v867
    %v1480 = vunpack.c.h.b16 %v867
    %v1481 = vunpack.c.l.b16 %v868
    %v1482 = vunpack.c.h.b16 %v868
    %v1483 = vunpack.c.l.b16 %v869
    %v1484 = vunpack.c.h.b16 %v869
    %v1485 = vunpack.c.l.b16 %v870
    %v1486 = vunpack.c.h.b16 %v870
    %v1487 = vunpack.c.l.b16 %v871
    %v1488 = vunpack.c.h.b16 %v871
    %v1489 = vunpack.c.l.b16 %v872
    %v1490 = vunpack.c.h.b16 %v872
    %v1491 = vunpack.c.l.b16 %v873
    %v1492 = vunpack.c.h.b16 %v873
    %v1493 = vunpack.c.l.b16 %v874
    %v1494 = vunpack.c.h.b16 %v874
    %v1495 = vunpack.c.l.b16 %v875
    %v1496 = vunpack.c.h.b16 %v875
    %v1497 = vunpack.c.l.b16 %v876
    %v1498 = vunpack.c.h.b16 %v876
    %v1499 = vunpack.c.l.b16 %v877
    %v1500 = vunpack.c.h.b16 %v877
    %v1501 = vunpack.c.l.b16 %v878
    %v1502 = vunpack.c.h.b16 %v878
    %v1503 = vunpack.c.l.b16 %v879
    %v1504 = vunpack.c.h.b16 %v879
    %v1505 = vunpack.c.l.b16 %v880
    %v1506 = vunpack.c.h.b16 %v880
    %v1507 = vunpack.c.l.b16 %v881
    %v1508 = vunpack.c.h.b16 %v881
    %v1509 = vunpack.c.l.b16 %v882
    %v1510 = vunpack.c.h.b16 %v882
    %v1511 = vunpack.c.l.b16 %v883
    %v1512 = vunpack.c.h.b16 %v883
    %v1513 = vunpack.c.l.b16 %v884
    %v1514 = vunpack.c.h.b16 %v884
    %v1515 = vunpack.c.l.b16 %v885
    %v1516 = vunpack.c.h.b16 %v885
    %v1517 = vunpack.c.l.b16 %v886
    %v1518 = vunpack.c.h.b16 %v886
    %v1519 = vunpack.c.l.b16 %v887
    %v1520 = vunpack.c.h.b16 %v887
    %v1521 = vunpack.c.l.b16 %v888
    %v1522 = vunpack.c.h.b16 %v888
    %v1523 = vunpack.c.l.b16 %v889
    %v1524 = vunpack.c.h.b16 %v889
    %v1525 = vunpack.c.l.b16 %v890
    %v1526 = vunpack.c.h.b16 %v890
    %v1527 = vunpack.c.l.b16 %v891
    %v1528 = vunpack.c.h.b16 %v891
    %v1529 = vunpack.c.l.b16 %v892
    %v1530 = vunpack.c.h.b16 %v892
    %v1531 = vunpack.c.l.b16 %v893
    %v1532 = vunpack.c.h.b16 %v893
    %v1533 = vunpack.c.l.b16 %v894
    %v1534 = vunpack.c.h.b16 %v894
    %v1535 = vunpack.c.l.b16 %v895
    %v1536 = vunpack.c.h.b16 %v895
    %v1537 = vunpack.c.l.b16 %v896
    %v1538 = vunpack.c.h.b16 %v896
    %v1539 = vunpack.c.l.b16 %v897
    %v1540 = vunpack.c.h.b16 %v897
    %v1541 = vunpack.c.l.b16 %v898
    %v1542 = vunpack.c.h.b16 %v898
    %v1543 = vunpack.c.l.b16 %v899
    %v1544 = vunpack.c.h.b16 %v899
    %v1545 = vunpack.c.l.b16 %v900
    %v1546 = vunpack.c.h.b16 %v900
    %v1547 = vunpack.c.l.b16 %v901
    %v1548 = vunpack.c.h.b16 %v901
    %v1549 = vunpack.c.l.b16 %v902
    %v1550 = vunpack.c.h.b16 %v902
    %v1551 = vunpack.c.l.b16 %v903
    %v1552 = vunpack.c.h.b16 %v903
    %v1553 = vunpack.c.l.b16 %v904
    %v1554 = vunpack.c.h.b16 %v904
    %v1555 = vunpack.c.l.b16 %v905
    %v1556 = vunpack.c.h.b16 %v905
    %v1557 = vunpack.c.l.b16 %v906
    %v1558 = vunpack.c.h.b16 %v906
    %v1559 = vunpack.c.l.b16 %v907
    %v1560 = vunpack.c.h.b16 %v907
    %v1561 = vunpack.c.l.b16 %v908
    %v1562 = vunpack.c.h.b16 %v908
    %v1563 = vunpack.c.l.b16 %v909
    %v1564 = vunpack.c.h.b16 %v909
    %v1565 = vunpack.c.l.b16 %v910
    %v1566 = vunpack.c.h.b16 %v910
    %v1567 = vunpack.c.l.b16 %v911
    %v1568 = vunpack.c.h.b16 %v911
    %v1569 = vunpack.c.l.b16 %v912
    %v1570 = vunpack.c.h.b16 %v912
    %v1571 = vunpack.c.l.b16 %v913
    %v1572 = vunpack.c.h.b16 %v913
    %v1573 = vunpack.c.l.b16 %v914
    %v1574 = vunpack.c.h.b16 %v914
    %v1575 = vunpack.c.l.b16 %v915
    %v1576 = vunpack.c.h.b16 %v915
    %v1577 = vunpack.c.l.b16 %v916
    %v1578 = vunpack.c.h.b16 %v916
    %v1579 = vunpack.c.l.b16 %v917
    %v1580 = vunpack.c.h.b16 %v917
    %v1581 = vunpack.c.l.b16 %v918
    %v1582 = vunpack.c.h.b16 %v918
    %v1583 = vunpack.c.l.b16 %v919
    %v1584 = vunpack.c.h.b16 %v919
    %v1585 = vunpack.c.l.b16 %v920
    %v1586 = vunpack.c.h.b16 %v920
    %v1587 = vunpack.c.l.b16 %v921
    %v1588 = vunpack.c.h.b16 %v921
    %v1589 = vunpack.c.l.b16 %v922
    %v1590 = vunpack.c.h.b16 %v922
    %v1591 = vunpack.c.l.b16 %v923
    %v1592 = vunpack.c.h.b16 %v923
    %v1593 = vunpack.c.l.b16 %v924
    %v1594 = vunpack.c.h.b16 %v924
    %v1595 = vunpack.c.l.b16 %v925
    %v1596 = vunpack.c.h.b16 %v925
    %v1597 = vunpack.c.l.b16 %v926
    %v1598 = vunpack.c.h.b16 %v926
    %v1599 = vunpack.c.l.b16 %v927
    %v1600 = vunpack.c.h.b16 %v927
    %v1601 = vunpack.c.l.b16 %v928
    %v1602 = vunpack.c.h.b16 %v928
    %v1603 = vunpack.c.l.b16 %v929
    %v1604 = vunpack.c.h.b16 %v929
    %v1605 = vunpack.c.l.b16 %v930
    %v1606 = vunpack.c.h.b16 %v930
    %v1607 = vunpack.c.l.b16 %v931
    %v1608 = vunpack.c.h.b16 %v931
    %v1609 = vunpack.c.l.b16 %v932
    %v1610 = vunpack.c.h.b16 %v932
    %v1611 = vunpack.c.l.b16 %v933
    %v1612 = vunpack.c.h.b16 %v933
    %v1613 = vunpack.c.l.b16 %v934
    %v1614 = vunpack.c.h.b16 %v934
    %v1615 = vunpack.c.l.b16 %v935
    %v1616 = vunpack.c.h.b16 %v935
    %v1617 = vunpack.c.l.b16 %v936
    %v1618 = vunpack.c.h.b16 %v936
    %v1619 = vunpack.c.l.b16 %v937
    %v1620 = vunpack.c.h.b16 %v937
    %v1621 = vunpack.c.l.b16 %v938
    %v1622 = vunpack.c.h.b16 %v938
    %v1623 = vunpack.c.l.b16 %v939
    %v1624 = vunpack.c.h.b16 %v939
    %v1625 = vunpack.c.l.b16 %v940
    %v1626 = vunpack.c.h.b16 %v940
    %v1627 = vunpack.c.l.b16 %v941
    %v1628 = vunpack.c.h.b16 %v941
    %v1629 = vunpack.c.l.b16 %v942
    %v1630 = vunpack.c.h.b16 %v942
    %v1631 = vunpack.c.l.b16 %v943
    %v1632 = vunpack.c.h.b16 %v943
    %v1633 = vunpack.c.l.b16 %v944
    %v1634 = vunpack.c.h.b16 %v944
    %v1635 = vunpack.c.l.b16 %v945
    %v1636 = vunpack.c.h.b16 %v945
    %v1637 = vunpack.c.l.b16 %v946
    %v1638 = vunpack.c.h.b16 %v946
    %v1639 = vunpack.c.l.b16 %v947
    %v1640 = vunpack.c.h.b16 %v947
    %v1641 = vunpack.c.l.b16 %v948
    %v1642 = vunpack.c.h.b16 %v948
    %v1643 = vunpack.c.l.b16 %v949
    %v1644 = vunpack.c.h.b16 %v949
    %v1645 = vunpack.c.l.b16 %v950
    %v1646 = vunpack.c.h.b16 %v950
    %v1647 = vunpack.c.l.b16 %v951
    %v1648 = vunpack.c.h.b16 %v951
    %v1649 = vunpack.c.l.b16 %v952
    %v1650 = vunpack.c.h.b16 %v952
    %v1651 = vunpack.c.l.b16 %v953
    %v1652 = vunpack.c.h.b16 %v953
    %v1653 = vunpack.c.l.b16 %v954
    %v1654 = vunpack.c.h.b16 %v954
    %v1655 = vunpack.c.l.b16 %v955
    %v1656 = vunpack.c.h.b16 %v955
    %v1657 = vunpack.c.l.b16 %v956
    %v1658 = vunpack.c.h.b16 %v956
    %v1659 = vunpack.c.l.b16 %v957
    %v1660 = vunpack.c.h.b16 %v957
    %v1661 = vunpack.c.l.b16 %v958
    %v1662 = vunpack.c.h.b16 %v958
    %v1663 = vunpack.c.l.b16 %v959
    %v1664 = vunpack.c.h.b16 %v959
    %v1665 = vunpack.c.l.b16 %v960
    %v1666 = vunpack.c.h.b16 %v960
    %v1667 = vunpack.c.l.b16 %v961
    %v1668 = vunpack.c.h.b16 %v961
    %v1669 = vunpack.c.l.b16 %v962
    %v1670 = vunpack.c.h.b16 %v962
    %v1671 = vunpack.c.l.b16 %v963
    %v1672 = vunpack.c.h.b16 %v963
    %v1673 = vunpack.c.l.b16 %v964
    %v1674 = vunpack.c.h.b16 %v964
    %v1675 = vunpack.c.l.b16 %v965
    %v1676 = vunpack.c.h.b16 %v965
    %v1677 = vunpack.c.l.b16 %v966
    %v1678 = vunpack.c.h.b16 %v966
    %v1679 = vunpack.c.l.b16 %v967
    %v1680 = vunpack.c.h.b16 %v967
    %v1681 = vunpack.c.l.b16 %v968
    %v1682 = vunpack.c.h.b16 %v968
    %v1683 = vunpack.c.l.b16 %v969
    %v1684 = vunpack.c.h.b16 %v969
    %v1685 = vunpack.c.l.b16 %v970
    %v1686 = vunpack.c.h.b16 %v970
    %v1687 = vunpack.c.l.b16 %v971
    %v1688 = vunpack.c.h.b16 %v971
    %v1689 = vunpack.c.l.b16 %v972
    %v1690 = vunpack.c.h.b16 %v972
    %v1691 = vunpack.c.l.b16 %v973
    %v1692 = vunpack.c.h.b16 %v973
    %v1693 = vunpack.c.l.b16 %v974
    %v1694 = vunpack.c.h.b16 %v974
    %v1695 = vunpack.c.l.b16 %v975
    %v1696 = vunpack.c.h.b16 %v975
    %v1697 = vunpack.c.l.b16 %v976
    %v1698 = vunpack.c.h.b16 %v976
    %v1699 = vunpack.c.l.b16 %v977
    %v1700 = vunpack.c.h.b16 %v977
    %v1701 = vunpack.c.l.b16 %v978
    %v1702 = vunpack.c.h.b16 %v978
    %v1703 = vunpack.c.l.b16 %v979
    %v1704 = vunpack.c.h.b16 %v979
    %v1705 = vunpack.c.l.b16 %v980
    %v1706 = vunpack.c.h.b16 %v980
    %v1707 = vunpack.c.l.b16 %v981
    %v1708 = vunpack.c.h.b16 %v981
    %v1709 = vunpack.c.l.b16 %v982
    %v1710 = vunpack.c.h.b16 %v982
    %v1711 = vunpack.c.l.b16 %v983
    %v1712 = vunpack.c.h.b16 %v983
    %v1713 = vunpack.c.l.b16 %v984
    %v1714 = vunpack.c.h.b16 %v984
    %v1715 = vunpack.c.l.b16 %v985
    %v1716 = vunpack.c.h.b16 %v985
    %v1717 = vunpack.c.l.b16 %v986
    %v1718 = vunpack.c.h.b16 %v986
    %v1719 = vunpack.c.l.b16 %v987
    %v1720 = vunpack.c.h.b16 %v987
    %v1721 = vunpack.c.l.b16 %v988
    %v1722 = vunpack.c.h.b16 %v988
    %v1723 = vunpack.c.l.b16 %v989
    %v1724 = vunpack.c.h.b16 %v989
    %v1725 = vunpack.c.l.b16 %v990
    %v1726 = vunpack.c.h.b16 %v990
    %v1727 = vunpack.c.l.b16 %v991
    %v1728 = vunpack.c.h.b16 %v991
    %v1729 = vunpack.c.l.b16 %v992
    %v1730 = vunpack.c.h.b16 %v992
    %v1731 = vunpack.c.l.b16 %v993
    %v1732 = vunpack.c.h.b16 %v993
    %v1733 = vunpack.c.l.b16 %v994
    %v1734 = vunpack.c.h.b16 %v994
    %v1735 = vunpack.c.l.b16 %v995
    %v1736 = vunpack.c.h.b16 %v995
    %v1737 = vunpack.c.l.b16 %v996
    %v1738 = vunpack.c.h.b16 %v996
    %v1739 = vunpack.c.l.b16 %v997
    %v1740 = vunpack.c.h.b16 %v997
    %v1741 = vunpack.c.l.b16 %v998
    %v1742 = vunpack.c.h.b16 %v998
    %v1743 = vunpack.c.l.b16 %v999
    %v1744 = vunpack.c.h.b16 %v999
    %v1745 = vunpack.c.l.b16 %v1000
    %v1746 = vunpack.c.h.b16 %v1000
    %v1747 = vunpack.c.l.b16 %v1001
    %v1748 = vunpack.c.h.b16 %v1001
    %v1749 = vunpack.c.l.b16 %v1002
    %v1750 = vunpack.c.h.b16 %v1002
    %v1751 = vunpack.c.l.b16 %v1003
    %v1752 = vunpack.c.h.b16 %v1003
    %v1753 = vunpack.c.l.b16 %v1004
    %v1754 = vunpack.c.h.b16 %v1004
    %v1755 = vunpack.c.l.b16 %v1005
    %v1756 = vunpack.c.h.b16 %v1005
    %v1757 = vunpack.c.l.b16 %v1006
    %v1758 = vunpack.c.h.b16 %v1006
    %v1759 = vunpack.c.l.b16 %v1007
    %v1760 = vunpack.c.h.b16 %v1007
    %v1761 = vunpack.c.l.b16 %v1008
    %v1762 = vunpack.c.h.b16 %v1008
    %v1763 = vunpack.c.l.b16 %v1009
    %v1764 = vunpack.c.h.b16 %v1009
    %v1765 = vunpack.c.l.b16 %v1010
    %v1766 = vunpack.c.h.b16 %v1010
    %v1767 = vunpack.c.l.b16 %v1011
    %v1768 = vunpack.c.h.b16 %v1011
    %v1769 = vunpack.c.l.b16 %v1012
    %v1770 = vunpack.c.h.b16 %v1012
    %v1771 = vunpack.c.l.b16 %v1013
    %v1772 = vunpack.c.h.b16 %v1013
    %v1773 = vunpack.c.l.b16 %v1014
    %v1774 = vunpack.c.h.b16 %v1014
    %v1775 = vunpack.c.l.b16 %v1015
    %v1776 = vunpack.c.h.b16 %v1015
    %v1777 = vunpack.c.l.b16 %v1016
    %v1778 = vunpack.c.h.b16 %v1016
    %v1779 = vunpack.c.l.b16 %v1017
    %v1780 = vunpack.c.h.b16 %v1017
    %v1781 = vunpack.c.l.b16 %v1018
    %v1782 = vunpack.c.h.b16 %v1018
    %v1783 = vunpack.c.l.b16 %v1019
    %v1784 = vunpack.c.h.b16 %v1019
    %v1785 = vunpack.c.l.b16 %v1020
    %v1786 = vunpack.c.h.b16 %v1020
    %v1787 = vunpack.c.l.b16 %v1021
    %v1788 = vunpack.c.h.b16 %v1021
    %v1789 = vunpack.c.l.b16 %v1022
    %v1790 = vunpack.c.h.b16 %v1022
    %v1791 = vunpack.c.l.b16 %v1023
    %v1792 = vunpack.c.h.b16 %v1023
    %v1793 = vunpack.c.l.b16 %v1024
    %v1794 = vunpack.c.h.b16 %v1024
    %v1795 = vunpack.c.l.b16 %v1025
    %v1796 = vunpack.c.h.b16 %v1025
    %v1797 = vunpack.c.l.b16 %v1026
    %v1798 = vunpack.c.h.b16 %v1026
    %v1799 = vunpack.c.l.b16 %v1027
    %v1800 = vunpack.c.h.b16 %v1027
    %v1801 = vunpack.c.l.b16 %v1028
    %v1802 = vunpack.c.h.b16 %v1028
    %v1803 = vunpack.c.l.b16 %v1029
    %v1804 = vunpack.c.h.b16 %v1029
    %v1805 = vunpack.c.l.b16 %v1030
    %v1806 = vunpack.c.h.b16 %v1030
    %v1807 = vunpack.c.l.b16 %v1031
    %v1808 = vunpack.c.h.b16 %v1031
    %v1809 = vunpack.c.l.b16 %v1032
    %v1810 = vunpack.c.h.b16 %v1032
    %v1811 = vunpack.c.l.b16 %v1033
    %v1812 = vunpack.c.h.b16 %v1033
    %v1813 = vunpack.c.l.b16 %v1034
    %v1814 = vunpack.c.h.b16 %v1034
    %v1815 = vunpack.c.l.b16 %v1035
    %v1816 = vunpack.c.h.b16 %v1035
    %v1817 = vunpack.c.l.b16 %v1036
    %v1818 = vunpack.c.h.b16 %v1036
    %v1819 = vunpack.c.l.b16 %v1037
    %v1820 = vunpack.c.h.b16 %v1037
    %v1821 = vunpack.c.l.b16 %v1038
    %v1822 = vunpack.c.h.b16 %v1038
    %v1823 = vunpack.c.l.b16 %v1039
    %v1824 = vunpack.c.h.b16 %v1039
    %v1825 = vunpack.c.l.b16 %v1040
    %v1826 = vunpack.c.h.b16 %v1040
    %v1827 = vpack.c.b16 %v1323, %v1315
    %v1828 = vpack.c.b16 %v1324, %v1316
    %v1829 = vpack.c.b16 %v1325, %v1317
    %v1830 = vpack.c.b16 %v1326, %v1318
    %v1831 = vpack.c.b16 %v1327, %v1319
    %v1832 = vpack.c.b16 %v1328, %v1320
    %v1833 = vpack.c.b16 %v1329, %v1321
    %v1834 = vpack.c.b16 %v1330, %v1322
    %v1835 = vpack.c.b16 %v1339, %v1331
    %v1836 = vpack.c.b16 %v1340, %v1332
    %v1837 = vpack.c.b16 %v1341, %v1333
    %v1838 = vpack.c.b16 %v1342, %v1334
    %v1839 = vpack.c.b16 %v1343, %v1335
    %v1840 = vpack.c.b16 %v1344, %v1336
    %v1841 = vpack.c.b16 %v1345, %v1337
    %v1842 = vpack.c.b16 %v1346, %v1338
    %v1843 = vpack.c.b16 %v1355, %v1347
    %v1844 = vpack.c.b16 %v1356, %v1348
    %v1845 = vpack.c.b16 %v1357, %v1349
    %v1846 = vpack.c.b16 %v1358, %v1350
    %v1847 = vpack.c.b16 %v1359, %v1351
    %v1848 = vpack.c.b16 %v1360, %v1352
    %v1849 = vpack.c.b16 %v1361, %v1353
    %v1850 = vpack.c.b16 %v1362, %v1354
    %v1851 = vpack.c.b16 %v1371, %v1363
    %v1852 = vpack.c.b16 %v1372, %v1364
    %v1853 = vpack.c.b16 %v1373, %v1365
    %v1854 = vpack.c.b16 %v1374, %v1366
    %v1855 = vpack.c.b16 %v1375, %v1367
    %v1856 = vpack.c.b16 %v1376, %v1368
    %v1857 = vpack.c.b16 %v1377, %v1369
    %v1858 = vpack.c.b16 %v1378, %v1370
    %v1859 = vpack.c.b16 %v1387, %v1379
    %v1860 = vpack.c.b16 %v1388, %v1380
    %v1861 = vpack.c.b16 %v1389, %v1381
    %v1862 = vpack.c.b16 %v1390, %v1382
    %v1863 = vpack.c.b16 %v1391, %v1383
    %v1864 = vpack.c.b16 %v1392, %v1384
    %v1865 = vpack.c.b16 %v1393, %v1385
    %v1866 = vpack.c.b16 %v1394, %v1386
    %v1867 = vpack.c.b16 %v1403, %v1395
    %v1868 = vpack.c.b16 %v1404, %v1396
    %v1869 = vpack.c.b16 %v1405, %v1397
    %v1870 = vpack.c.b16 %v1406, %v1398
    %v1871 = vpack.c.b16 %v1407, %v1399
    %v1872 = vpack.c.b16 %v1408, %v1400
    %v1873 = vpack.c.b16 %v1409, %v1401
    %v1874 = vpack.c.b16 %v1410, %v1402
    %v1875 = vpack.c.b16 %v1419, %v1411
    %v1876 = vpack.c.b16 %v1420, %v1412
    %v1877 = vpack.c.b16 %v1421, %v1413
    %v1878 = vpack.c.b16 %v1422, %v1414
    %v1879 = vpack.c.b16 %v1423, %v1415
    %v1880 = vpack.c.b16 %v1424, %v1416
    %v1881 = vpack.c.b16 %v1425, %v1417
    %v1882 = vpack.c.b16 %v1426, %v1418
    %v1883 = vpack.c.b16 %v1435, %v1427
    %v1884 = vpack.c.b16 %v1436, %v1428
    %v1885 = vpack.c.b16 %v1437, %v1429
    %v1886 = vpack.c.b16 %v1438, %v1430
    %v1887 = vpack.c.b16 %v1439, %v1431
    %v1888 = vpack.c.b16 %v1440, %v1432
    %v1889 = vpack.c.b16 %v1441, %v1433
    %v1890 = vpack.c.b16 %v1442, %v1434
    %v1891 = vpack.c.b16 %v1451, %v1443
    %v1892 = vpack.c.b16 %v1452, %v1444
    %v1893 = vpack.c.b16 %v1453, %v1445
    %v1894 = vpack.c.b16 %v1454, %v1446
    %v1895 = vpack.c.b16 %v1455, %v1447
    %v1896 = vpack.c.b16 %v1456, %v1448
    %v1897 = vpack.c.b16 %v1457, %v1449
    %v1898 = vpack.c.b16 %v1458, %v1450
    %v1899 = vpack.c.b16 %v1467, %v1459
    %v1900 = vpack.c.b16 %v1468, %v1460
    %v1901 = vpack.c.b16 %v1469, %v1461
    %v1902 = vpack.c.b16 %v1470, %v1462
    %v1903 = vpack.c.b16 %v1471, %v1463
    %v1904 = vpack.c.b16 %v1472, %v1464
    %v1905 = vpack.c.b16 %v1473, %v1465
    %v1906 = vpack.c.b16 %v1474, %v1466
    %v1907 = vpack.c.b16 %v1483, %v1475
    %v1908 = vpack.c.b16 %v1484, %v1476
    %v1909 = vpack.c.b16 %v1485, %v1477
    %v1910 = vpack.c.b16 %v1486, %v1478
    %v1911 = vpack.c.b16 %v1487, %v1479
    %v1912 = vpack.c.b16 %v1488, %v1480
    %v1913 = vpack.c.b16 %v1489, %v1481
    %v1914 = vpack.c.b16 %v1490, %v1482
    %v1915 = vpack.c.b16 %v1499, %v1491
    %v1916 = vpack.c.b16 %v1500, %v1492
    %v1917 = vpack.c.b16 %v1501, %v1493
    %v1918 = vpack.c.b16 %v1502, %v1494
    %v1919 = vpack.c.b16 %v1503, %v1495
    %v1920 = vpack.c.b16 %v1504, %v1496
    %v1921 = vpack.c.b16 %v1505, %v1497
    %v1922 = vpack.c.b16 %v1506, %v1498
    %v1923 = vpack.c.b16 %v1515, %v1507
    %v1924 = vpack.c.b16 %v1516, %v1508
    %v1925 = vpack.c.b16 %v1517, %v1509
    %v1926 = vpack.c.b16 %v1518, %v1510
    %v1927 = vpack.c.b16 %v1519, %v1511
    %v1928 = vpack.c.b16 %v1520, %v1512
    %v1929 = vpack.c.b16 %v1521, %v1513
    %v1930 = vpack.c.b16 %v1522, %v1514
    %v1931 = vpack.c.b16 %v1531, %v1523
    %v1932 = vpack.c.b16 %v1532, %v1524
    %v1933 = vpack.c.b16 %v1533, %v1525
    %v1934 = vpack.c.b16 %v1534, %v1526
    %v1935 = vpack.c.b16 %v1535, %v1527
    %v1936 = vpack.c.b16 %v1536, %v1528
    %v1937 = vpack.c.b16 %v1537, %v1529
    %v1938 = vpack.c.b16 %v1538, %v1530
    %v1939 = vpack.c.b16 %v1547, %v1539
    %v1940 = vpack.c.b16 %v1548, %v1540
    %v1941 = vpack.c.b16 %v1549, %v1541
    %v1942 = vpack.c.b16 %v1550, %v1542
    %v1943 = vpack.c.b16 %v1551, %v1543
    %v1944 = vpack.c.b16 %v1552, %v1544
    %v1945 = vpack.c.b16 %v1553, %v1545
    %v1946 = vpack.c.b16 %v1554, %v1546
    %v1947 = vpack.c.b16 %v1563, %v1555
    %v1948 = vpack.c.b16 %v1564, %v1556
    %v1949 = vpack.c.b16 %v1565, %v1557
    %v1950 = vpack.c.b16 %v1566, %v1558
    %v1951 = vpack.c.b16 %v1567, %v1559
    %v1952 = vpack.c.b16 %v1568, %v1560
    %v1953 = vpack.c.b16 %v1569, %v1561
    %v1954 = vpack.c.b16 %v1570, %v1562
    %v1955 = vpack.c.b16 %v1579, %v1571
    %v1956 = vpack.c.b16 %v1580, %v1572
    %v1957 = vpack.c.b16 %v1581, %v1573
    %v1958 = vpack.c.b16 %v1582, %v1574
    %v1959 = vpack.c.b16 %v1583, %v1575
    %v1960 = vpack.c.b16 %v1584, %v1576
    %v1961 = vpack.c.b16 %v1585, %v1577
    %v1962 = vpack.c.b16 %v1586, %v1578
    %v1963 = vpack.c.b16 %v1595, %v1587
    %v1964 = vpack.c.b16 %v1596, %v1588
    %v1965 = vpack.c.b16 %v1597, %v1589
    %v1966 = vpack.c.b16 %v1598, %v1590
    %v1967 = vpack.c.b16 %v1599, %v1591
    %v1968 = vpack.c.b16 %v1600, %v1592
    %v1969 = vpack.c.b16 %v1601, %v1593
    %v1970 = vpack.c.b16 %v1602, %v1594
    %v1971 = vpack.c.b16 %v1611, %v1603
    %v1972 = vpack.c.b16 %v1612, %v1604
    %v1973 = vpack.c.b16 %v1613, %v1605
    %v1974 = vpack.c.b16 %v1614, %v1606
    %v1975 = vpack.c.b16 %v1615, %v1607
    %v1976 = vpack.c.b16 %v1616, %v1608
    %v1977 = vpack.c.b16 %v1617, %v1609
    %v1978 = vpack.c.b16 %v1618, %v1610
    %v1979 = vpack.c.b16 %v1627, %v1619
    %v1980 = vpack.c.b16 %v1628, %v1620
    %v1981 = vpack.c.b16 %v1629, %v1621
    %v1982 = vpack.c.b16 %v1630, %v1622
    %v1983 = vpack.c.b16 %v1631, %v1623
    %v1984 = vpack.c.b16 %v1632, %v1624
    %v1985 = vpack.c.b16 %v1633, %v1625
    %v1986 = vpack.c.b16 %v1634, %v1626
    %v1987 = vpack.c.b16 %v1643, %v1635
    %v1988 = vpack.c.b16 %v1644, %v1636
    %v1989 = vpack.c.b16 %v1645, %v1637
    %v1990 = vpack.c.b16 %v1646, %v1638
    %v1991 = vpack.c.b16 %v1647, %v1639
    %v1992 = vpack.c.b16 %v1648, %v1640
    %v1993 = vpack.c.b16 %v1649, %v1641
    %v1994 = vpack.c.b16 %v1650, %v1642
    %v1995 = vpack.c.b16 %v1659, %v1651
    %v1996 = vpack.c.b16 %v1660, %v1652
    %v1997 = vpack.c.b16 %v1661, %v1653
    %v1998 = vpack.c.b16 %v1662, %v1654
    %v1999 = vpack.c.b16 %v1663, %v1655
    %v2000 = vpack.c.b16 %v1664, %v1656
    %v2001 = vpack.c.b16 %v1665, %v1657
    %v2002 = vpack.c.b16 %v1666, %v1658
    %v2003 = vpack.c.b16 %v1675, %v1667
    %v2004 = vpack.c.b16 %v1676, %v1668
    %v2005 = vpack.c.b16 %v1677, %v1669
    %v2006 = vpack.c.b16 %v1678, %v1670
    %v2007 = vpack.c.b16 %v1679, %v1671
    %v2008 = vpack.c.b16 %v1680, %v1672
    %v2009 = vpack.c.b16 %v1681, %v1673
    %v2010 = vpack.c.b16 %v1682, %v1674
    %v2011 = vpack.c.b16 %v1691, %v1683
    %v2012 = vpack.c.b16 %v1692, %v1684
    %v2013 = vpack.c.b16 %v1693, %v1685
    %v2014 = vpack.c.b16 %v1694, %v1686
    %v2015 = vpack.c.b16 %v1695, %v1687
    %v2016 = vpack.c.b16 %v1696, %v1688
    %v2017 = vpack.c.b16 %v1697, %v1689
    %v2018 = vpack.c.b16 %v1698, %v1690
    %v2019 = vpack.c.b16 %v1707, %v1699
    %v2020 = vpack.c.b16 %v1708, %v1700
    %v2021 = vpack.c.b16 %v1709, %v1701
    %v2022 = vpack.c.b16 %v1710, %v1702
    %v2023 = vpack.c.b16 %v1711, %v1703
    %v2024 = vpack.c.b16 %v1712, %v1704
    %v2025 = vpack.c.b16 %v1713, %v1705
    %v2026 = vpack.c.b16 %v1714, %v1706
    %v2027 = vpack.c.b16 %v1723, %v1715
    %v2028 = vpack.c.b16 %v1724, %v1716
    %v2029 = vpack.c.b16 %v1725, %v1717
    %v2030 = vpack.c.b16 %v1726, %v1718
    %v2031 = vpack.c.b16 %v1727, %v1719
    %v2032 = vpack.c.b16 %v1728, %v1720
    %v2033 = vpack.c.b16 %v1729, %v1721
    %v2034 = vpack.c.b16 %v1730, %v1722
    %v2035 = vpack.c.b16 %v1739, %v1731
    %v2036 = vpack.c.b16 %v1740, %v1732
    %v2037 = vpack.c.b16 %v1741, %v1733
    %v2038 = vpack.c.b16 %v1742, %v1734
    %v2039 = vpack.c.b16 %v1743, %v1735
    %v2040 = vpack.c.b16 %v1744, %v1736
    %v2041 = vpack.c.b16 %v1745, %v1737
    %v2042 = vpack.c.b16 %v1746, %v1738
    %v2043 = vpack.c.b16 %v1755, %v1747
    %v2044 = vpack.c.b16 %v1756, %v1748
    %v2045 = vpack.c.b16 %v1757, %v1749
    %v2046 = vpack.c.b16 %v1758, %v1750
    %v2047 = vpack.c.b16 %v1759, %v1751
    %v2048 = vpack.c.b16 %v1760, %v1752
    %v2049 = vpack.c.b16 %v1761, %v1753
    %v2050 = vpack.c.b16 %v1762, %v1754
    %v2051 = vpack.c.b16 %v1771, %v1763
    %v2052 = vpack.c.b16 %v1772, %v1764
    %v2053 = vpack.c.b16 %v1773, %v1765
    %v2054 = vpack.c.b16 %v1774, %v1766
    %v2055 = vpack.c.b16 %v1775, %v1767
    %v2056 = vpack.c.b16 %v1776, %v1768
    %v2057 = vpack.c.b16 %v1777, %v1769
    %v2058 = vpack.c.b16 %v1778, %v1770
    %v2059 = vpack.c.b16 %v1787, %v1779
    %v2060 = vpack.c.b16 %v1788, %v1780
    %v2061 = vpack.c.b16 %v1789, %v1781
    %v2062 = vpack.c.b16 %v1790, %v1782
    %v2063 = vpack.c.b16 %v1791, %v1783
    %v2064 = vpack.c.b16 %v1792, %v1784
    %v2065 = vpack.c.b16 %v1793, %v1785
    %v2066 = vpack.c.b16 %v1794, %v1786
    %v2067 = vpack.c.b16 %v1803, %v1795
    %v2068 = vpack.c.b16 %v1804, %v1796
    %v2069 = vpack.c.b16 %v1805, %v1797
    %v2070 = vpack.c.b16 %v1806, %v1798
    %v2071 = vpack.c.b16 %v1807, %v1799
    %v2072 = vpack.c.b16 %v1808, %v1800
    %v2073 = vpack.c.b16 %v1809, %v1801
    %v2074 = vpack.c.b16 %v1810, %v1802
    %v2075 = vpack.c.b16 %v1819, %v1811
    %v2076 = vpack.c.b16 %v1820, %v1812
    %v2077 = vpack.c.b16 %v1821, %v1813
    %v2078 = vpack.c.b16 %v1822, %v1814
    %v2079 = vpack.c.b16 %v1823, %v1815
    %v2080 = vpack.c.b16 %v1824, %v1816
    %v2081 = vpack.c.b16 %v1825, %v1817
    %v2082 = vpack.c.b16 %v1826, %v1818
    %2339 = vmatpush.bf16.msra.mxu0 %v1883
    %2340 = vmatpush.bf16.msra.mxu0 %v1875
    %2341 = vmatpush.bf16.msra.mxu0 %v1867
    %2342 = vmatpush.bf16.msra.mxu0 %v1859
    %2343 = vmatpush.bf16.msra.mxu0 %v1851
    %2344 = vmatpush.bf16.msra.mxu0 %v1843
    %2345 = vmatpush.bf16.msra.mxu0 %v1835
    %2346 = vmatpush.bf16.msra.mxu0 %v1827
    %2347 = vmatmul.bf16.gmra.mxu0 %v781
    %v2348 = vpop.f32.mrf.mxu0
    %v2349 = vadd.f32 %v1043, %v2348
    %v2350 = vpop.f32.mrf.mxu0
    %2351 = vdwg.mxu0
    %2352 = vmatpush.bf16.msra.mxu0 %v1947
    %2353 = vmatpush.bf16.msra.mxu0 %v1939
    %2354 = vmatpush.bf16.msra.mxu0 %v1931
    %2355 = vmatpush.bf16.msra.mxu0 %v1923
    %2356 = vmatpush.bf16.msra.mxu0 %v1915
    %2357 = vmatpush.bf16.msra.mxu0 %v1907
    %2358 = vmatpush.bf16.msra.mxu0 %v1899
    %2359 = vmatpush.bf16.msra.mxu0 %v1891
    %2360 = vmatmul.bf16.gmra.mxu0 %v782
    %v2361 = vpop.f32.mrf.mxu0
    %v2362 = vadd.f32 %v2349, %v2361
    %v2363 = vpop.f32.mrf.mxu0
    %2364 = vdwg.mxu0
    %2365 = vmatpush.bf16.msra.mxu0 %v2011
    %2366 = vmatpush.bf16.msra.mxu0 %v2003
    %2367 = vmatpush.bf16.msra.mxu0 %v1995
    %2368 = vmatpush.bf16.msra.mxu0 %v1987
    %2369 = vmatpush.bf16.msra.mxu0 %v1979
    %2370 = vmatpush.bf16.msra.mxu0 %v1971
    %2371 = vmatpush.bf16.msra.mxu0 %v1963
    %2372 = vmatpush.bf16.msra.mxu0 %v1955
    %2373 = vmatmul.bf16.gmra.mxu0 %v783
    %v2374 = vpop.f32.mrf.mxu0
    %v2375 = vadd.f32 %v2362, %v2374
    %v2376 = vpop.f32.mrf.mxu0
    %2377 = vdwg.mxu0
    %2378 = vmatpush.bf16.msra.mxu0 %v2075
    %2379 = vmatpush.bf16.msra.mxu0 %v2067
    %2380 = vmatpush.bf16.msra.mxu0 %v2059
    %2381 = vmatpush.bf16.msra.mxu0 %v2051
    %2382 = vmatpush.bf16.msra.mxu0 %v2043
    %2383 = vmatpush.bf16.msra.mxu0 %v2035
    %2384 = vmatpush.bf16.msra.mxu0 %v2027
    %2385 = vmatpush.bf16.msra.mxu0 %v2019
    %2386 = vmatmul.bf16.gmra.mxu0 %v784
    %v2387 = vpop.f32.mrf.mxu0
    %v2388 = vadd.f32 %v2375, %v2387
    %v2389 = vpop.f32.mrf.mxu0
    %2390 = vdwg.mxu0
    %2391 = vmatpush.bf16.msra.mxu0 %v1884
    %2392 = vmatpush.bf16.msra.mxu0 %v1876
    %2393 = vmatpush.bf16.msra.mxu0 %v1868
    %2394 = vmatpush.bf16.msra.mxu0 %v1860
    %2395 = vmatpush.bf16.msra.mxu0 %v1852
    %2396 = vmatpush.bf16.msra.mxu0 %v1844
    %2397 = vmatpush.bf16.msra.mxu0 %v1836
    %2398 = vmatpush.bf16.msra.mxu0 %v1828
    %2399 = vmatmul.bf16.gmra.mxu0 %v781
    %v2400 = vpop.f32.mrf.mxu0
    %v2401 = vadd.f32 %v1044, %v2400
    %v2402 = vpop.f32.mrf.mxu0
    %2403 = vdwg.mxu0
    %2404 = vmatpush.bf16.msra.mxu0 %v1948
    %2405 = vmatpush.bf16.msra.mxu0 %v1940
    %2406 = vmatpush.bf16.msra.mxu0 %v1932
    %2407 = vmatpush.bf16.msra.mxu0 %v1924
    %2408 = vmatpush.bf16.msra.mxu0 %v1916
    %2409 = vmatpush.bf16.msra.mxu0 %v1908
    %2410 = vmatpush.bf16.msra.mxu0 %v1900
    %2411 = vmatpush.bf16.msra.mxu0 %v1892
    %2412 = vmatmul.bf16.gmra.mxu0 %v782
    %v2413 = vpop.f32.mrf.mxu0
    %v2414 = vadd.f32 %v2401, %v2413
    %v2415 = vpop.f32.mrf.mxu0
    %2416 = vdwg.mxu0
    %2417 = vmatpush.bf16.msra.mxu0 %v2012
    %2418 = vmatpush.bf16.msra.mxu0 %v2004
    %2419 = vmatpush.bf16.msra.mxu0 %v1996
    %2420 = vmatpush.bf16.msra.mxu0 %v1988
    %2421 = vmatpush.bf16.msra.mxu0 %v1980
    %2422 = vmatpush.bf16.msra.mxu0 %v1972
    %2423 = vmatpush.bf16.msra.mxu0 %v1964
    %2424 = vmatpush.bf16.msra.mxu0 %v1956
    %2425 = vmatmul.bf16.gmra.mxu0 %v783
    %v2426 = vpop.f32.mrf.mxu0
    %v2427 = vadd.f32 %v2414, %v2426
    %v2428 = vpop.f32.mrf.mxu0
    %2429 = vdwg.mxu0
    %2430 = vmatpush.bf16.msra.mxu0 %v2076
    %2431 = vmatpush.bf16.msra.mxu0 %v2068
    %2432 = vmatpush.bf16.msra.mxu0 %v2060
    %2433 = vmatpush.bf16.msra.mxu0 %v2052
    %2434 = vmatpush.bf16.msra.mxu0 %v2044
    %2435 = vmatpush.bf16.msra.mxu0 %v2036
    %2436 = vmatpush.bf16.msra.mxu0 %v2028
    %2437 = vmatpush.bf16.msra.mxu0 %v2020
    %2438 = vmatmul.bf16.gmra.mxu0 %v784
    %v2439 = vpop.f32.mrf.mxu0
    %v2440 = vadd.f32 %v2427, %v2439
    %v2441 = vpop.f32.mrf.mxu0
    %2442 = vdwg.mxu0
    %2443 = vmatpush.bf16.msra.mxu0 %v1885
    %2444 = vmatpush.bf16.msra.mxu0 %v1877
    %2445 = vmatpush.bf16.msra.mxu0 %v1869
    %2446 = vmatpush.bf16.msra.mxu0 %v1861
    %2447 = vmatpush.bf16.msra.mxu0 %v1853
    %2448 = vmatpush.bf16.msra.mxu0 %v1845
    %2449 = vmatpush.bf16.msra.mxu0 %v1837
    %2450 = vmatpush.bf16.msra.mxu0 %v1829
    %2451 = vmatmul.bf16.gmra.mxu0 %v781
    %v2452 = vpop.f32.mrf.mxu0
    %v2453 = vadd.f32 %v1045, %v2452
    %v2454 = vpop.f32.mrf.mxu0
    %2455 = vdwg.mxu0
    %2456 = vmatpush.bf16.msra.mxu0 %v1949
    %2457 = vmatpush.bf16.msra.mxu0 %v1941
    %2458 = vmatpush.bf16.msra.mxu0 %v1933
    %2459 = vmatpush.bf16.msra.mxu0 %v1925
    %2460 = vmatpush.bf16.msra.mxu0 %v1917
    %2461 = vmatpush.bf16.msra.mxu0 %v1909
    %2462 = vmatpush.bf16.msra.mxu0 %v1901
    %2463 = vmatpush.bf16.msra.mxu0 %v1893
    %2464 = vmatmul.bf16.gmra.mxu0 %v782
    %v2465 = vpop.f32.mrf.mxu0
    %v2466 = vadd.f32 %v2453, %v2465
    %v2467 = vpop.f32.mrf.mxu0
    %2468 = vdwg.mxu0
    %2469 = vmatpush.bf16.msra.mxu0 %v2013
    %2470 = vmatpush.bf16.msra.mxu0 %v2005
    %2471 = vmatpush.bf16.msra.mxu0 %v1997
    %2472 = vmatpush.bf16.msra.mxu0 %v1989
    %2473 = vmatpush.bf16.msra.mxu0 %v1981
    %2474 = vmatpush.bf16.msra.mxu0 %v1973
    %2475 = vmatpush.bf16.msra.mxu0 %v1965
    %2476 = vmatpush.bf16.msra.mxu0 %v1957
    %2477 = vmatmul.bf16.gmra.mxu0 %v783
    %v2478 = vpop.f32.mrf.mxu0
    %v2479 = vadd.f32 %v2466, %v2478
    %v2480 = vpop.f32.mrf.mxu0
    %2481 = vdwg.mxu0
    %2482 = vmatpush.bf16.msra.mxu0 %v2077
    %2483 = vmatpush.bf16.msra.mxu0 %v2069
    %2484 = vmatpush.bf16.msra.mxu0 %v2061
    %2485 = vmatpush.bf16.msra.mxu0 %v2053
    %2486 = vmatpush.bf16.msra.mxu0 %v2045
    %2487 = vmatpush.bf16.msra.mxu0 %v2037
    %2488 = vmatpush.bf16.msra.mxu0 %v2029
    %2489 = vmatpush.bf16.msra.mxu0 %v2021
    %2490 = vmatmul.bf16.gmra.mxu0 %v784
    %v2491 = vpop.f32.mrf.mxu0
    %v2492 = vadd.f32 %v2479, %v2491
    %v2493 = vpop.f32.mrf.mxu0
    %2494 = vdwg.mxu0
    %2495 = vmatpush.bf16.msra.mxu0 %v1886
    %2496 = vmatpush.bf16.msra.mxu0 %v1878
    %2497 = vmatpush.bf16.msra.mxu0 %v1870
    %2498 = vmatpush.bf16.msra.mxu0 %v1862
    %2499 = vmatpush.bf16.msra.mxu0 %v1854
    %2500 = vmatpush.bf16.msra.mxu0 %v1846
    %2501 = vmatpush.bf16.msra.mxu0 %v1838
    %2502 = vmatpush.bf16.msra.mxu0 %v1830
    %2503 = vmatmul.bf16.gmra.mxu0 %v781
    %v2504 = vpop.f32.mrf.mxu0
    %v2505 = vadd.f32 %v1046, %v2504
    %v2506 = vpop.f32.mrf.mxu0
    %2507 = vdwg.mxu0
    %2508 = vmatpush.bf16.msra.mxu0 %v1950
    %2509 = vmatpush.bf16.msra.mxu0 %v1942
    %2510 = vmatpush.bf16.msra.mxu0 %v1934
    %2511 = vmatpush.bf16.msra.mxu0 %v1926
    %2512 = vmatpush.bf16.msra.mxu0 %v1918
    %2513 = vmatpush.bf16.msra.mxu0 %v1910
    %2514 = vmatpush.bf16.msra.mxu0 %v1902
    %2515 = vmatpush.bf16.msra.mxu0 %v1894
    %2516 = vmatmul.bf16.gmra.mxu0 %v782
    %v2517 = vpop.f32.mrf.mxu0
    %v2518 = vadd.f32 %v2505, %v2517
    %v2519 = vpop.f32.mrf.mxu0
    %2520 = vdwg.mxu0
    %2521 = vmatpush.bf16.msra.mxu0 %v2014
    %2522 = vmatpush.bf16.msra.mxu0 %v2006
    %2523 = vmatpush.bf16.msra.mxu0 %v1998
    %2524 = vmatpush.bf16.msra.mxu0 %v1990
    %2525 = vmatpush.bf16.msra.mxu0 %v1982
    %2526 = vmatpush.bf16.msra.mxu0 %v1974
    %2527 = vmatpush.bf16.msra.mxu0 %v1966
    %2528 = vmatpush.bf16.msra.mxu0 %v1958
    %2529 = vmatmul.bf16.gmra.mxu0 %v783
    %v2530 = vpop.f32.mrf.mxu0
    %v2531 = vadd.f32 %v2518, %v2530
    %v2532 = vpop.f32.mrf.mxu0
    %2533 = vdwg.mxu0
    %2534 = vmatpush.bf16.msra.mxu0 %v2078
    %2535 = vmatpush.bf16.msra.mxu0 %v2070
    %2536 = vmatpush.bf16.msra.mxu0 %v2062
    %2537 = vmatpush.bf16.msra.mxu0 %v2054
    %2538 = vmatpush.bf16.msra.mxu0 %v2046
    %2539 = vmatpush.bf16.msra.mxu0 %v2038
    %2540 = vmatpush.bf16.msra.mxu0 %v2030
    %2541 = vmatpush.bf16.msra.mxu0 %v2022
    %2542 = vmatmul.bf16.gmra.mxu0 %v784
    %v2543 = vpop.f32.mrf.mxu0
    %v2544 = vadd.f32 %v2531, %v2543
    %v2545 = vpop.f32.mrf.mxu0
    %2546 = vdwg.mxu0
    %2547 = vmatpush.bf16.msra.mxu0 %v1887
    %2548 = vmatpush.bf16.msra.mxu0 %v1879
    %2549 = vmatpush.bf16.msra.mxu0 %v1871
    %2550 = vmatpush.bf16.msra.mxu0 %v1863
    %2551 = vmatpush.bf16.msra.mxu0 %v1855
    %2552 = vmatpush.bf16.msra.mxu0 %v1847
    %2553 = vmatpush.bf16.msra.mxu0 %v1839
    %2554 = vmatpush.bf16.msra.mxu0 %v1831
    %2555 = vmatmul.bf16.gmra.mxu0 %v781
    %v2556 = vpop.f32.mrf.mxu0
    %v2557 = vadd.f32 %v1047, %v2556
    %v2558 = vpop.f32.mrf.mxu0
    %2559 = vdwg.mxu0
    %2560 = vmatpush.bf16.msra.mxu0 %v1951
    %2561 = vmatpush.bf16.msra.mxu0 %v1943
    %2562 = vmatpush.bf16.msra.mxu0 %v1935
    %2563 = vmatpush.bf16.msra.mxu0 %v1927
    %2564 = vmatpush.bf16.msra.mxu0 %v1919
    %2565 = vmatpush.bf16.msra.mxu0 %v1911
    %2566 = vmatpush.bf16.msra.mxu0 %v1903
    %2567 = vmatpush.bf16.msra.mxu0 %v1895
    %2568 = vmatmul.bf16.gmra.mxu0 %v782
    %v2569 = vpop.f32.mrf.mxu0
    %v2570 = vadd.f32 %v2557, %v2569
    %v2571 = vpop.f32.mrf.mxu0
    %2572 = vdwg.mxu0
    %2573 = vmatpush.bf16.msra.mxu0 %v2015
    %2574 = vmatpush.bf16.msra.mxu0 %v2007
    %2575 = vmatpush.bf16.msra.mxu0 %v1999
    %2576 = vmatpush.bf16.msra.mxu0 %v1991
    %2577 = vmatpush.bf16.msra.mxu0 %v1983
    %2578 = vmatpush.bf16.msra.mxu0 %v1975
    %2579 = vmatpush.bf16.msra.mxu0 %v1967
    %2580 = vmatpush.bf16.msra.mxu0 %v1959
    %2581 = vmatmul.bf16.gmra.mxu0 %v783
    %v2582 = vpop.f32.mrf.mxu0
    %v2583 = vadd.f32 %v2570, %v2582
    %v2584 = vpop.f32.mrf.mxu0
    %2585 = vdwg.mxu0
    %2586 = vmatpush.bf16.msra.mxu0 %v2079
    %2587 = vmatpush.bf16.msra.mxu0 %v2071
    %2588 = vmatpush.bf16.msra.mxu0 %v2063
    %2589 = vmatpush.bf16.msra.mxu0 %v2055
    %2590 = vmatpush.bf16.msra.mxu0 %v2047
    %2591 = vmatpush.bf16.msra.mxu0 %v2039
    %2592 = vmatpush.bf16.msra.mxu0 %v2031
    %2593 = vmatpush.bf16.msra.mxu0 %v2023
    %2594 = vmatmul.bf16.gmra.mxu0 %v784
    %v2595 = vpop.f32.mrf.mxu0
    %v2596 = vadd.f32 %v2583, %v2595
    %v2597 = vpop.f32.mrf.mxu0
    %2598 = vdwg.mxu0
    %2599 = vmatpush.bf16.msra.mxu0 %v1888
    %2600 = vmatpush.bf16.msra.mxu0 %v1880
    %2601 = vmatpush.bf16.msra.mxu0 %v1872
    %2602 = vmatpush.bf16.msra.mxu0 %v1864
    %2603 = vmatpush.bf16.msra.mxu0 %v1856
    %2604 = vmatpush.bf16.msra.mxu0 %v1848
    %2605 = vmatpush.bf16.msra.mxu0 %v1840
    %2606 = vmatpush.bf16.msra.mxu0 %v1832
    %2607 = vmatmul.bf16.gmra.mxu0 %v781
    %v2608 = vpop.f32.mrf.mxu0
    %v2609 = vadd.f32 %v1048, %v2608
    %v2610 = vpop.f32.mrf.mxu0
    %2611 = vdwg.mxu0
    %2612 = vmatpush.bf16.msra.mxu0 %v1952
    %2613 = vmatpush.bf16.msra.mxu0 %v1944
    %2614 = vmatpush.bf16.msra.mxu0 %v1936
    %2615 = vmatpush.bf16.msra.mxu0 %v1928
    %2616 = vmatpush.bf16.msra.mxu0 %v1920
    %2617 = vmatpush.bf16.msra.mxu0 %v1912
    %2618 = vmatpush.bf16.msra.mxu0 %v1904
    %2619 = vmatpush.bf16.msra.mxu0 %v1896
    %2620 = vmatmul.bf16.gmra.mxu0 %v782
    %v2621 = vpop.f32.mrf.mxu0
    %v2622 = vadd.f32 %v2609, %v2621
    %v2623 = vpop.f32.mrf.mxu0
    %2624 = vdwg.mxu0
    %2625 = vmatpush.bf16.msra.mxu0 %v2016
    %2626 = vmatpush.bf16.msra.mxu0 %v2008
    %2627 = vmatpush.bf16.msra.mxu0 %v2000
    %2628 = vmatpush.bf16.msra.mxu0 %v1992
    %2629 = vmatpush.bf16.msra.mxu0 %v1984
    %2630 = vmatpush.bf16.msra.mxu0 %v1976
    %2631 = vmatpush.bf16.msra.mxu0 %v1968
    %2632 = vmatpush.bf16.msra.mxu0 %v1960
    %2633 = vmatmul.bf16.gmra.mxu0 %v783
    %v2634 = vpop.f32.mrf.mxu0
    %v2635 = vadd.f32 %v2622, %v2634
    %v2636 = vpop.f32.mrf.mxu0
    %2637 = vdwg.mxu0
    %2638 = vmatpush.bf16.msra.mxu0 %v2080
    %2639 = vmatpush.bf16.msra.mxu0 %v2072
    %2640 = vmatpush.bf16.msra.mxu0 %v2064
    %2641 = vmatpush.bf16.msra.mxu0 %v2056
    %2642 = vmatpush.bf16.msra.mxu0 %v2048
    %2643 = vmatpush.bf16.msra.mxu0 %v2040
    %2644 = vmatpush.bf16.msra.mxu0 %v2032
    %2645 = vmatpush.bf16.msra.mxu0 %v2024
    %2646 = vmatmul.bf16.gmra.mxu0 %v784
    %v2647 = vpop.f32.mrf.mxu0
    %v2648 = vadd.f32 %v2635, %v2647
    %v2649 = vpop.f32.mrf.mxu0
    %2650 = vdwg.mxu0
    %2651 = vmatpush.bf16.msra.mxu0 %v1889
    %2652 = vmatpush.bf16.msra.mxu0 %v1881
    %2653 = vmatpush.bf16.msra.mxu0 %v1873
    %2654 = vmatpush.bf16.msra.mxu0 %v1865
    %2655 = vmatpush.bf16.msra.mxu0 %v1857
    %2656 = vmatpush.bf16.msra.mxu0 %v1849
    %2657 = vmatpush.bf16.msra.mxu0 %v1841
    %2658 = vmatpush.bf16.msra.mxu0 %v1833
    %2659 = vmatmul.bf16.gmra.mxu0 %v781
    %v2660 = vpop.f32.mrf.mxu0
    %v2661 = vadd.f32 %v1049, %v2660
    %v2662 = vpop.f32.mrf.mxu0
    %2663 = vdwg.mxu0
    %2664 = vmatpush.bf16.msra.mxu0 %v1953
    %2665 = vmatpush.bf16.msra.mxu0 %v1945
    %2666 = vmatpush.bf16.msra.mxu0 %v1937
    %2667 = vmatpush.bf16.msra.mxu0 %v1929
    %2668 = vmatpush.bf16.msra.mxu0 %v1921
    %2669 = vmatpush.bf16.msra.mxu0 %v1913
    %2670 = vmatpush.bf16.msra.mxu0 %v1905
    %2671 = vmatpush.bf16.msra.mxu0 %v1897
    %2672 = vmatmul.bf16.gmra.mxu0 %v782
    %v2673 = vpop.f32.mrf.mxu0
    %v2674 = vadd.f32 %v2661, %v2673
    %v2675 = vpop.f32.mrf.mxu0
    %2676 = vdwg.mxu0
    %2677 = vmatpush.bf16.msra.mxu0 %v2017
    %2678 = vmatpush.bf16.msra.mxu0 %v2009
    %2679 = vmatpush.bf16.msra.mxu0 %v2001
    %2680 = vmatpush.bf16.msra.mxu0 %v1993
    %2681 = vmatpush.bf16.msra.mxu0 %v1985
    %2682 = vmatpush.bf16.msra.mxu0 %v1977
    %2683 = vmatpush.bf16.msra.mxu0 %v1969
    %2684 = vmatpush.bf16.msra.mxu0 %v1961
    %2685 = vmatmul.bf16.gmra.mxu0 %v783
    %v2686 = vpop.f32.mrf.mxu0
    %v2687 = vadd.f32 %v2674, %v2686
    %v2688 = vpop.f32.mrf.mxu0
    %2689 = vdwg.mxu0
    %2690 = vmatpush.bf16.msra.mxu0 %v2081
    %2691 = vmatpush.bf16.msra.mxu0 %v2073
    %2692 = vmatpush.bf16.msra.mxu0 %v2065
    %2693 = vmatpush.bf16.msra.mxu0 %v2057
    %2694 = vmatpush.bf16.msra.mxu0 %v2049
    %2695 = vmatpush.bf16.msra.mxu0 %v2041
    %2696 = vmatpush.bf16.msra.mxu0 %v2033
    %2697 = vmatpush.bf16.msra.mxu0 %v2025
    %2698 = vmatmul.bf16.gmra.mxu0 %v784
    %v2699 = vpop.f32.mrf.mxu0
    %v2700 = vadd.f32 %v2687, %v2699
    %v2701 = vpop.f32.mrf.mxu0
    %2702 = vdwg.mxu0
    %2703 = vmatpush.bf16.msra.mxu0 %v1890
    %2704 = vmatpush.bf16.msra.mxu0 %v1882
    %2705 = vmatpush.bf16.msra.mxu0 %v1874
    %2706 = vmatpush.bf16.msra.mxu0 %v1866
    %2707 = vmatpush.bf16.msra.mxu0 %v1858
    %2708 = vmatpush.bf16.msra.mxu0 %v1850
    %2709 = vmatpush.bf16.msra.mxu0 %v1842
    %2710 = vmatpush.bf16.msra.mxu0 %v1834
    %2711 = vmatmul.bf16.gmra.mxu0 %v781
    %v2712 = vpop.f32.mrf.mxu0
    %v2713 = vadd.f32 %v1050, %v2712
    %v2714 = vpop.f32.mrf.mxu0
    %2715 = vdwg.mxu0
    %2716 = vmatpush.bf16.msra.mxu0 %v1954
    %2717 = vmatpush.bf16.msra.mxu0 %v1946
    %2718 = vmatpush.bf16.msra.mxu0 %v1938
    %2719 = vmatpush.bf16.msra.mxu0 %v1930
    %2720 = vmatpush.bf16.msra.mxu0 %v1922
    %2721 = vmatpush.bf16.msra.mxu0 %v1914
    %2722 = vmatpush.bf16.msra.mxu0 %v1906
    %2723 = vmatpush.bf16.msra.mxu0 %v1898
    %2724 = vmatmul.bf16.gmra.mxu0 %v782
    %v2725 = vpop.f32.mrf.mxu0
    %v2726 = vadd.f32 %v2713, %v2725
    %v2727 = vpop.f32.mrf.mxu0
    %2728 = vdwg.mxu0
    %2729 = vmatpush.bf16.msra.mxu0 %v2018
    %2730 = vmatpush.bf16.msra.mxu0 %v2010
    %2731 = vmatpush.bf16.msra.mxu0 %v2002
    %2732 = vmatpush.bf16.msra.mxu0 %v1994
    %2733 = vmatpush.bf16.msra.mxu0 %v1986
    %2734 = vmatpush.bf16.msra.mxu0 %v1978
    %2735 = vmatpush.bf16.msra.mxu0 %v1970
    %2736 = vmatpush.bf16.msra.mxu0 %v1962
    %2737 = vmatmul.bf16.gmra.mxu0 %v783
    %v2738 = vpop.f32.mrf.mxu0
    %v2739 = vadd.f32 %v2726, %v2738
    %v2740 = vpop.f32.mrf.mxu0
    %2741 = vdwg.mxu0
    %2742 = vmatpush.bf16.msra.mxu0 %v2082
    %2743 = vmatpush.bf16.msra.mxu0 %v2074
    %2744 = vmatpush.bf16.msra.mxu0 %v2066
    %2745 = vmatpush.bf16.msra.mxu0 %v2058
    %2746 = vmatpush.bf16.msra.mxu0 %v2050
    %2747 = vmatpush.bf16.msra.mxu0 %v2042
    %2748 = vmatpush.bf16.msra.mxu0 %v2034
    %2749 = vmatpush.bf16.msra.mxu0 %v2026
    %2750 = vmatmul.bf16.gmra.mxu0 %v784
    %v2751 = vpop.f32.mrf.mxu0
    %v2752 = vadd.f32 %v2739, %v2751
    %v2753 = vpop.f32.mrf.mxu0
    %2754 = vdwg.mxu0
    %v2755 = vmax.f32 %v2388, 0.0
    %v2756 = vmax.f32 %v2440, 0.0
    %v2757 = vmax.f32 %v2492, 0.0
    %v2758 = vmax.f32 %v2544, 0.0
    %v2759 = vmax.f32 %v2596, 0.0
    %v2760 = vmax.f32 %v2648, 0.0
    %v2761 = vmax.f32 %v2700, 0.0
    %v2762 = vmax.f32 %v2752, 0.0
    %s2763 = smul.u32 4, 128
    %s2764 = smul.u32 %s2763, 7
    %s2765 = sshll.u32 %s2764, 4
    %2766 = dma.done %s120, %s2765
    %v2767 = vpack.c.bf16 %v2755, %v2755
    %v2768 = vpack.c.bf16 %v2756, %v2756
    %v2769 = vpack.c.bf16 %v2757, %v2757
    %v2770 = vpack.c.bf16 %v2758, %v2758
    %v2771 = vpack.c.bf16 %v2759, %v2759
    %v2772 = vpack.c.bf16 %v2760, %v2760
    %v2773 = vpack.c.bf16 %v2761, %v2761
    %v2774 = vpack.c.bf16 %v2762, %v2762
    %v2775 = vld [vmem:[#allocation5] sm:$0xff]
    %v2776 = vld [vmem:[#allocation5 + $0x8] sm:$0xff]
    %v2777 = vld [vmem:[#allocation5 + $0x10] sm:$0xff]
    %v2778 = vld [vmem:[#allocation5 + $0x18] sm:$0xf]
    %v2779 = vld [vmem:[#allocation5 + $0x1c] sm:$0xff]
    %v2780 = vld [vmem:[#allocation5 + $0x24] sm:$0xff]
    %v2781 = vld [vmem:[#allocation5 + $0x2c] sm:$0xff]
    %v2782 = vld [vmem:[#allocation5 + $0x34] sm:$0xf]
    %v2783 = vld [vmem:[#allocation5 + $0x38] sm:$0xff]
    %v2784 = vld [vmem:[#allocation5 + $0x40] sm:$0xff]
    %v2785 = vld [vmem:[#allocation5 + $0x48] sm:$0xff]
    %v2786 = vld [vmem:[#allocation5 + $0x50] sm:$0xf]
    %v2787 = vld [vmem:[#allocation5 + $0x54] sm:$0xff]
    %v2788 = vld [vmem:[#allocation5 + $0x5c] sm:$0xff]
    %v2789 = vld [vmem:[#allocation5 + $0x64] sm:$0xff]
    %v2790 = vld [vmem:[#allocation5 + $0x6c] sm:$0xf]
    %v2791 = vld [vmem:[#allocation5 + $0x70] sm:$0xff]
    %v2792 = vld [vmem:[#allocation5 + $0x78] sm:$0xff]
    %v2793 = vld [vmem:[#allocation5 + $0x80] sm:$0xff]
    %v2794 = vld [vmem:[#allocation5 + $0x88] sm:$0xf]
    %v2795 = vld [vmem:[#allocation5 + $0x8c] sm:$0xff]
    %v2796 = vld [vmem:[#allocation5 + $0x94] sm:$0xff]
    %v2797 = vld [vmem:[#allocation5 + $0x9c] sm:$0xff]
    %v2798 = vld [vmem:[#allocation5 + $0xa4] sm:$0xf]
    %v2799 = vld [vmem:[#allocation5 + $0xa8] sm:$0xff]
    %v2800 = vld [vmem:[#allocation5 + $0xb0] sm:$0xff]
    %v2801 = vld [vmem:[#allocation5 + $0xb8] sm:$0xff]
    %v2802 = vld [vmem:[#allocation5 + $0xc0] sm:$0xf]
    %v2803 = vld [vmem:[#allocation5 + $0xc4] sm:$0xff]
    %v2804 = vld [vmem:[#allocation5 + $0xcc] sm:$0xff]
    %v2805 = vld [vmem:[#allocation5 + $0xd4] sm:$0xff]
    %v2806 = vld [vmem:[#allocation5 + $0xdc] sm:$0xf]
    %v2807 = vld [vmem:[#allocation5 + $0xe0] sm:$0xff]
    %v2808 = vld [vmem:[#allocation5 + $0xe8] sm:$0xff]
    %v2809 = vld [vmem:[#allocation5 + $0xf0] sm:$0xff]
    %v2810 = vld [vmem:[#allocation5 + $0xf8] sm:$0xf]
    %v2811 = vld [vmem:[#allocation5 + $0xfc] sm:$0xff]
    %v2812 = vld [vmem:[#allocation5 + $0x104] sm:$0xff]
    %v2813 = vld [vmem:[#allocation5 + $0x10c] sm:$0xff]
    %v2814 = vld [vmem:[#allocation5 + $0x114] sm:$0xf]
    %v2815 = vld [vmem:[#allocation5 + $0x118] sm:$0xff]
    %v2816 = vld [vmem:[#allocation5 + $0x120] sm:$0xff]
    %v2817 = vld [vmem:[#allocation5 + $0x128] sm:$0xff]
    %v2818 = vld [vmem:[#allocation5 + $0x130] sm:$0xf]
    %v2819 = vld [vmem:[#allocation5 + $0x134] sm:$0xff]
    %v2820 = vld [vmem:[#allocation5 + $0x13c] sm:$0xff]
    %v2821 = vld [vmem:[#allocation5 + $0x144] sm:$0xff]
    %v2822 = vld [vmem:[#allocation5 + $0x14c] sm:$0xf]
    %v2823 = vld [vmem:[#allocation5 + $0x150] sm:$0xff]
    %v2824 = vld [vmem:[#allocation5 + $0x158] sm:$0xff]
    %v2825 = vld [vmem:[#allocation5 + $0x160] sm:$0xff]
    %v2826 = vld [vmem:[#allocation5 + $0x168] sm:$0xf]
    %v2827 = vld [vmem:[#allocation5 + $0x16c] sm:$0xff]
    %v2828 = vld [vmem:[#allocation5 + $0x174] sm:$0xff]
    %v2829 = vld [vmem:[#allocation5 + $0x17c] sm:$0xff]
    %v2830 = vld [vmem:[#allocation5 + $0x184] sm:$0xf]
    %v2831 = vld [vmem:[#allocation5 + $0x188] sm:$0xff]
    %v2832 = vld [vmem:[#allocation5 + $0x190] sm:$0xff]
    %v2833 = vld [vmem:[#allocation5 + $0x198] sm:$0xff]
    %v2834 = vld [vmem:[#allocation5 + $0x1a0] sm:$0xf]
    %v2835 = vld [vmem:[#allocation5 + $0x1a4] sm:$0xff]
    %v2836 = vld [vmem:[#allocation5 + $0x1ac] sm:$0xff]
    %v2837 = vld [vmem:[#allocation5 + $0x1b4] sm:$0xff]
    %v2838 = vld [vmem:[#allocation5 + $0x1bc] sm:$0xf]
    %v2839 = vld [vmem:[#allocation5 + $0x1c0] sm:$0xff]
    %v2840 = vld [vmem:[#allocation5 + $0x1c8] sm:$0xff]
    %v2841 = vld [vmem:[#allocation5 + $0x1d0] sm:$0xff]
    %v2842 = vld [vmem:[#allocation5 + $0x1d8] sm:$0xf]
    %v2843 = vld [vmem:[#allocation5 + $0x1dc] sm:$0xff]
    %v2844 = vld [vmem:[#allocation5 + $0x1e4] sm:$0xff]
    %v2845 = vld [vmem:[#allocation5 + $0x1ec] sm:$0xff]
    %v2846 = vld [vmem:[#allocation5 + $0x1f4] sm:$0xf]
    %v2847 = vld [vmem:[#allocation5 + $0x1f8] sm:$0xff]
    %v2848 = vld [vmem:[#allocation5 + $0x200] sm:$0xff]
    %v2849 = vld [vmem:[#allocation5 + $0x208] sm:$0xff]
    %v2850 = vld [vmem:[#allocation5 + $0x210] sm:$0xf]
    %v2851 = vld [vmem:[#allocation5 + $0x214] sm:$0xff]
    %v2852 = vld [vmem:[#allocation5 + $0x21c] sm:$0xff]
    %v2853 = vld [vmem:[#allocation5 + $0x224] sm:$0xff]
    %v2854 = vld [vmem:[#allocation5 + $0x22c] sm:$0xf]
    %v2855 = vld [vmem:[#allocation5 + $0x230] sm:$0xff]
    %v2856 = vld [vmem:[#allocation5 + $0x238] sm:$0xff]
    %v2857 = vld [vmem:[#allocation5 + $0x240] sm:$0xff]
    %v2858 = vld [vmem:[#allocation5 + $0x248] sm:$0xf]
    %v2859 = vld [vmem:[#allocation5 + $0x24c] sm:$0xff]
    %v2860 = vld [vmem:[#allocation5 + $0x254] sm:$0xff]
    %v2861 = vld [vmem:[#allocation5 + $0x25c] sm:$0xff]
    %v2862 = vld [vmem:[#allocation5 + $0x264] sm:$0xf]
    %v2863 = vld [vmem:[#allocation5 + $0x268] sm:$0xff]
    %v2864 = vld [vmem:[#allocation5 + $0x270] sm:$0xff]
    %v2865 = vld [vmem:[#allocation5 + $0x278] sm:$0xff]
    %v2866 = vld [vmem:[#allocation5 + $0x280] sm:$0xf]
    %v2867 = vld [vmem:[#allocation5 + $0x284] sm:$0xff]
    %v2868 = vld [vmem:[#allocation5 + $0x28c] sm:$0xff]
    %v2869 = vld [vmem:[#allocation5 + $0x294] sm:$0xff]
    %v2870 = vld [vmem:[#allocation5 + $0x29c] sm:$0xf]
    %v2871 = vld [vmem:[#allocation5 + $0x2a0] sm:$0xff]
    %v2872 = vld [vmem:[#allocation5 + $0x2a8] sm:$0xff]
    %v2873 = vld [vmem:[#allocation5 + $0x2b0] sm:$0xff]
    %v2874 = vld [vmem:[#allocation5 + $0x2b8] sm:$0xf]
    %v2875 = vld [vmem:[#allocation5 + $0x2bc] sm:$0xff]
    %v2876 = vld [vmem:[#allocation5 + $0x2c4] sm:$0xff]
    %v2877 = vld [vmem:[#allocation5 + $0x2cc] sm:$0xff]
    %v2878 = vld [vmem:[#allocation5 + $0x2d4] sm:$0xf]
    %v2879 = vld [vmem:[#allocation5 + $0x2d8] sm:$0xff]
    %v2880 = vld [vmem:[#allocation5 + $0x2e0] sm:$0xff]
    %v2881 = vld [vmem:[#allocation5 + $0x2e8] sm:$0xff]
    %v2882 = vld [vmem:[#allocation5 + $0x2f0] sm:$0xf]
    %v2883 = vld [vmem:[#allocation5 + $0x2f4] sm:$0xff]
    %v2884 = vld [vmem:[#allocation5 + $0x2fc] sm:$0xff]
    %v2885 = vld [vmem:[#allocation5 + $0x304] sm:$0xff]
    %v2886 = vld [vmem:[#allocation5 + $0x30c] sm:$0xf]
    %v2887 = vld [vmem:[#allocation5 + $0x310] sm:$0xff]
    %v2888 = vld [vmem:[#allocation5 + $0x318] sm:$0xff]
    %v2889 = vld [vmem:[#allocation5 + $0x320] sm:$0xff]
    %v2890 = vld [vmem:[#allocation5 + $0x328] sm:$0xf]
    %v2891 = vld [vmem:[#allocation5 + $0x32c] sm:$0xff]
    %v2892 = vld [vmem:[#allocation5 + $0x334] sm:$0xff]
    %v2893 = vld [vmem:[#allocation5 + $0x33c] sm:$0xff]
    %v2894 = vld [vmem:[#allocation5 + $0x344] sm:$0xf]
    %v2895 = vld [vmem:[#allocation5 + $0x348] sm:$0xff]
    %v2896 = vld [vmem:[#allocation5 + $0x350] sm:$0xff]
    %v2897 = vld [vmem:[#allocation5 + $0x358] sm:$0xff]
    %v2898 = vld [vmem:[#allocation5 + $0x360] sm:$0xf]
    %v2899 = vld [vmem:[#allocation5 + $0x364] sm:$0xff]
    %v2900 = vld [vmem:[#allocation5 + $0x36c] sm:$0xff]
    %v2901 = vld [vmem:[#allocation5 + $0x374] sm:$0xff]
    %v2902 = vld [vmem:[#allocation5 + $0x37c] sm:$0xf]
    %v2903 = vld [vmem:[#allocation5 + $0x380] sm:$0xff]
    %v2904 = vld [vmem:[#allocation5 + $0x388] sm:$0xff]
    %v2905 = vld [vmem:[#allocation5 + $0x390] sm:$0xff]
    %v2906 = vld [vmem:[#allocation5 + $0x398] sm:$0xf]
    %v2907 = vld [vmem:[#allocation5 + $0x39c] sm:$0xff]
    %v2908 = vld [vmem:[#allocation5 + $0x3a4] sm:$0xff]
    %v2909 = vld [vmem:[#allocation5 + $0x3ac] sm:$0xff]
    %v2910 = vld [vmem:[#allocation5 + $0x3b4] sm:$0xf]
    %v2911 = vld [vmem:[#allocation5 + $0x3b8] sm:$0xff]
    %v2912 = vld [vmem:[#allocation5 + $0x3c0] sm:$0xff]
    %v2913 = vld [vmem:[#allocation5 + $0x3c8] sm:$0xff]
    %v2914 = vld [vmem:[#allocation5 + $0x3d0] sm:$0xf]
    %v2915 = vld [vmem:[#allocation5 + $0x3d4] sm:$0xff]
    %v2916 = vld [vmem:[#allocation5 + $0x3dc] sm:$0xff]
    %v2917 = vld [vmem:[#allocation5 + $0x3e4] sm:$0xff]
    %v2918 = vld [vmem:[#allocation5 + $0x3ec] sm:$0xf]
    %v2919 = vld [vmem:[#allocation5 + $0x3f0] sm:$0xff]
    %v2920 = vld [vmem:[#allocation5 + $0x3f8] sm:$0xff]
    %v2921 = vld [vmem:[#allocation5 + $0x400] sm:$0xff]
    %v2922 = vld [vmem:[#allocation5 + $0x408] sm:$0xf]
    %v2923 = vld [vmem:[#allocation5 + $0x40c] sm:$0xff]
    %v2924 = vld [vmem:[#allocation5 + $0x414] sm:$0xff]
    %v2925 = vld [vmem:[#allocation5 + $0x41c] sm:$0xff]
    %v2926 = vld [vmem:[#allocation5 + $0x424] sm:$0xf]
    %v2927 = vld [vmem:[#allocation5 + $0x428] sm:$0xff]
    %v2928 = vld [vmem:[#allocation5 + $0x430] sm:$0xff]
    %v2929 = vld [vmem:[#allocation5 + $0x438] sm:$0xff]
    %v2930 = vld [vmem:[#allocation5 + $0x440] sm:$0xf]
    %v2931 = vld [vmem:[#allocation5 + $0x444] sm:$0xff]
    %v2932 = vld [vmem:[#allocation5 + $0x44c] sm:$0xff]
    %v2933 = vld [vmem:[#allocation5 + $0x454] sm:$0xff]
    %v2934 = vld [vmem:[#allocation5 + $0x45c] sm:$0xf]
    %v2935 = vld [vmem:[#allocation5 + $0x460] sm:$0xff]
    %v2936 = vld [vmem:[#allocation5 + $0x468] sm:$0xff]
    %v2937 = vld [vmem:[#allocation5 + $0x470] sm:$0xff]
    %v2938 = vld [vmem:[#allocation5 + $0x478] sm:$0xf]
    %v2939 = vld [vmem:[#allocation5 + $0x47c] sm:$0xff]
    %v2940 = vld [vmem:[#allocation5 + $0x484] sm:$0xff]
    %v2941 = vld [vmem:[#allocation5 + $0x48c] sm:$0xff]
    %v2942 = vld [vmem:[#allocation5 + $0x494] sm:$0xf]
    %v2943 = vld [vmem:[#allocation5 + $0x498] sm:$0xff]
    %v2944 = vld [vmem:[#allocation5 + $0x4a0] sm:$0xff]
    %v2945 = vld [vmem:[#allocation5 + $0x4a8] sm:$0xff]
    %v2946 = vld [vmem:[#allocation5 + $0x4b0] sm:$0xf]
    %v2947 = vld [vmem:[#allocation5 + $0x4b4] sm:$0xff]
    %v2948 = vld [vmem:[#allocation5 + $0x4bc] sm:$0xff]
    %v2949 = vld [vmem:[#allocation5 + $0x4c4] sm:$0xff]
    %v2950 = vld [vmem:[#allocation5 + $0x4cc] sm:$0xf]
    %v2951 = vld [vmem:[#allocation5 + $0x4d0] sm:$0xff]
    %v2952 = vld [vmem:[#allocation5 + $0x4d8] sm:$0xff]
    %v2953 = vld [vmem:[#allocation5 + $0x4e0] sm:$0xff]
    %v2954 = vld [vmem:[#allocation5 + $0x4e8] sm:$0xf]
    %v2955 = vld [vmem:[#allocation5 + $0x4ec] sm:$0xff]
    %v2956 = vld [vmem:[#allocation5 + $0x4f4] sm:$0xff]
    %v2957 = vld [vmem:[#allocation5 + $0x4fc] sm:$0xff]
    %v2958 = vld [vmem:[#allocation5 + $0x504] sm:$0xf]
    %v2959 = vld [vmem:[#allocation5 + $0x508] sm:$0xff]
    %v2960 = vld [vmem:[#allocation5 + $0x510] sm:$0xff]
    %v2961 = vld [vmem:[#allocation5 + $0x518] sm:$0xff]
    %v2962 = vld [vmem:[#allocation5 + $0x520] sm:$0xf]
    %v2963 = vld [vmem:[#allocation5 + $0x524] sm:$0xff]
    %v2964 = vld [vmem:[#allocation5 + $0x52c] sm:$0xff]
    %v2965 = vld [vmem:[#allocation5 + $0x534] sm:$0xff]
    %v2966 = vld [vmem:[#allocation5 + $0x53c] sm:$0xf]
    %v2967 = vld [vmem:[#allocation5 + $0x540] sm:$0xff]
    %v2968 = vld [vmem:[#allocation5 + $0x548] sm:$0xff]
    %v2969 = vld [vmem:[#allocation5 + $0x550] sm:$0xff]
    %v2970 = vld [vmem:[#allocation5 + $0x558] sm:$0xf]
    %v2971 = vld [vmem:[#allocation5 + $0x55c] sm:$0xff]
    %v2972 = vld [vmem:[#allocation5 + $0x564] sm:$0xff]
    %v2973 = vld [vmem:[#allocation5 + $0x56c] sm:$0xff]
    %v2974 = vld [vmem:[#allocation5 + $0x574] sm:$0xf]
    %v2975 = vld [vmem:[#allocation5 + $0x578] sm:$0xff]
    %v2976 = vld [vmem:[#allocation5 + $0x580] sm:$0xff]
    %v2977 = vld [vmem:[#allocation5 + $0x588] sm:$0xff]
    %v2978 = vld [vmem:[#allocation5 + $0x590] sm:$0xf]
    %v2979 = vld [vmem:[#allocation5 + $0x594] sm:$0xff]
    %v2980 = vld [vmem:[#allocation5 + $0x59c] sm:$0xff]
    %v2981 = vld [vmem:[#allocation5 + $0x5a4] sm:$0xff]
    %v2982 = vld [vmem:[#allocation5 + $0x5ac] sm:$0xf]
    %v2983 = vld [vmem:[#allocation5 + $0x5b0] sm:$0xff]
    %v2984 = vld [vmem:[#allocation5 + $0x5b8] sm:$0xff]
    %v2985 = vld [vmem:[#allocation5 + $0x5c0] sm:$0xff]
    %v2986 = vld [vmem:[#allocation5 + $0x5c8] sm:$0xf]
    %v2987 = vld [vmem:[#allocation5 + $0x5cc] sm:$0xff]
    %v2988 = vld [vmem:[#allocation5 + $0x5d4] sm:$0xff]
    %v2989 = vld [vmem:[#allocation5 + $0x5dc] sm:$0xff]
    %v2990 = vld [vmem:[#allocation5 + $0x5e4] sm:$0xf]
    %v2991 = vld [vmem:[#allocation5 + $0x5e8] sm:$0xff]
    %v2992 = vld [vmem:[#allocation5 + $0x5f0] sm:$0xff]
    %v2993 = vld [vmem:[#allocation5 + $0x5f8] sm:$0xff]
    %v2994 = vld [vmem:[#allocation5 + $0x600] sm:$0xf]
    %v2995 = vld [vmem:[#allocation5 + $0x604] sm:$0xff]
    %v2996 = vld [vmem:[#allocation5 + $0x60c] sm:$0xff]
    %v2997 = vld [vmem:[#allocation5 + $0x614] sm:$0xff]
    %v2998 = vld [vmem:[#allocation5 + $0x61c] sm:$0xf]
    %v2999 = vld [vmem:[#allocation5 + $0x620] sm:$0xff]
    %v3000 = vld [vmem:[#allocation5 + $0x628] sm:$0xff]
    %v3001 = vld [vmem:[#allocation5 + $0x630] sm:$0xff]
    %v3002 = vld [vmem:[#allocation5 + $0x638] sm:$0xf]
    %v3003 = vld [vmem:[#allocation5 + $0x63c] sm:$0xff]
    %v3004 = vld [vmem:[#allocation5 + $0x644] sm:$0xff]
    %v3005 = vld [vmem:[#allocation5 + $0x64c] sm:$0xff]
    %v3006 = vld [vmem:[#allocation5 + $0x654] sm:$0xf]
    %v3007 = vld [vmem:[#allocation5 + $0x658] sm:$0xff]
    %v3008 = vld [vmem:[#allocation5 + $0x660] sm:$0xff]
    %v3009 = vld [vmem:[#allocation5 + $0x668] sm:$0xff]
    %v3010 = vld [vmem:[#allocation5 + $0x670] sm:$0xf]
    %v3011 = vld [vmem:[#allocation5 + $0x674] sm:$0xff]
    %v3012 = vld [vmem:[#allocation5 + $0x67c] sm:$0xff]
    %v3013 = vld [vmem:[#allocation5 + $0x684] sm:$0xff]
    %v3014 = vld [vmem:[#allocation5 + $0x68c] sm:$0xf]
    %v3015 = vld [vmem:[#allocation5 + $0x690] sm:$0xff]
    %v3016 = vld [vmem:[#allocation5 + $0x698] sm:$0xff]
    %v3017 = vld [vmem:[#allocation5 + $0x6a0] sm:$0xff]
    %v3018 = vld [vmem:[#allocation5 + $0x6a8] sm:$0xf]
    %v3019 = vld [vmem:[#allocation5 + $0x6ac] sm:$0xff]
    %v3020 = vld [vmem:[#allocation5 + $0x6b4] sm:$0xff]
    %v3021 = vld [vmem:[#allocation5 + $0x6bc] sm:$0xff]
    %v3022 = vld [vmem:[#allocation5 + $0x6c4] sm:$0xf]
    %v3023 = vld [vmem:[#allocation5 + $0x6c8] sm:$0xff]
    %v3024 = vld [vmem:[#allocation5 + $0x6d0] sm:$0xff]
    %v3025 = vld [vmem:[#allocation5 + $0x6d8] sm:$0xff]
    %v3026 = vld [vmem:[#allocation5 + $0x6e0] sm:$0xf]
    %v3027 = vld [vmem:[#allocation5 + $0x6e4] sm:$0xff]
    %v3028 = vld [vmem:[#allocation5 + $0x6ec] sm:$0xff]
    %v3029 = vld [vmem:[#allocation5 + $0x6f4] sm:$0xff]
    %v3030 = vld [vmem:[#allocation5 + $0x6fc] sm:$0xf]
    %v3031 = vld [vmem:[#allocation5 + $0x700] sm:$0xff]
    %v3032 = vld [vmem:[#allocation5 + $0x708] sm:$0xff]
    %v3033 = vld [vmem:[#allocation5 + $0x710] sm:$0xff]
    %v3034 = vld [vmem:[#allocation5 + $0x718] sm:$0xf]
    %v3035 = vld [vmem:[#allocation5 + $0x71c] sm:$0xff]
    %v3036 = vld [vmem:[#allocation5 + $0x724] sm:$0xff]
    %v3037 = vld [vmem:[#allocation5 + $0x72c] sm:$0xff]
    %v3038 = vld [vmem:[#allocation5 + $0x734] sm:$0xf]
    %v3039 = vld [vmem:[#allocation5 + $0x738] sm:$0xff]
    %v3040 = vld [vmem:[#allocation5 + $0x740] sm:$0xff]
    %v3041 = vld [vmem:[#allocation5 + $0x748] sm:$0xff]
    %v3042 = vld [vmem:[#allocation5 + $0x750] sm:$0xf]
    %v3043 = vld [vmem:[#allocation5 + $0x754] sm:$0xff]
    %v3044 = vld [vmem:[#allocation5 + $0x75c] sm:$0xff]
    %v3045 = vld [vmem:[#allocation5 + $0x764] sm:$0xff]
    %v3046 = vld [vmem:[#allocation5 + $0x76c] sm:$0xf]
    %v3047 = vld [vmem:[#allocation5 + $0x770] sm:$0xff]
    %v3048 = vld [vmem:[#allocation5 + $0x778] sm:$0xff]
    %v3049 = vld [vmem:[#allocation5 + $0x780] sm:$0xff]
    %v3050 = vld [vmem:[#allocation5 + $0x788] sm:$0xf]
    %v3051 = vld [vmem:[#allocation5 + $0x78c] sm:$0xff]
    %v3052 = vld [vmem:[#allocation5 + $0x794] sm:$0xff]
    %v3053 = vld [vmem:[#allocation5 + $0x79c] sm:$0xff]
    %v3054 = vld [vmem:[#allocation5 + $0x7a4] sm:$0xf]
    %v3055 = vld [vmem:[#allocation5 + $0x7a8] sm:$0xff]
    %v3056 = vld [vmem:[#allocation5 + $0x7b0] sm:$0xff]
    %v3057 = vld [vmem:[#allocation5 + $0x7b8] sm:$0xff]
    %v3058 = vld [vmem:[#allocation5 + $0x7c0] sm:$0xf]
    %v3059 = vld [vmem:[#allocation5 + $0x7c4] sm:$0xff]
    %v3060 = vld [vmem:[#allocation5 + $0x7cc] sm:$0xff]
    %v3061 = vld [vmem:[#allocation5 + $0x7d4] sm:$0xff]
    %v3062 = vld [vmem:[#allocation5 + $0x7dc] sm:$0xf]
    %v3063 = vld [vmem:[#allocation5 + $0x7e0] sm:$0xff]
    %v3064 = vld [vmem:[#allocation5 + $0x7e8] sm:$0xff]
    %v3065 = vld [vmem:[#allocation5 + $0x7f0] sm:$0xff]
    %v3066 = vld [vmem:[#allocation5 + $0x7f8] sm:$0xf]
    %v3067 = vld [vmem:[#allocation5 + $0x7fc] sm:$0xff]
    %v3068 = vld [vmem:[#allocation5 + $0x804] sm:$0xff]
    %v3069 = vld [vmem:[#allocation5 + $0x80c] sm:$0xff]
    %v3070 = vld [vmem:[#allocation5 + $0x814] sm:$0xf]
    %v3071 = vld [vmem:[#allocation5 + $0x818] sm:$0xff]
    %v3072 = vld [vmem:[#allocation5 + $0x820] sm:$0xff]
    %v3073 = vld [vmem:[#allocation5 + $0x828] sm:$0xff]
    %v3074 = vld [vmem:[#allocation5 + $0x830] sm:$0xf]
    %v3075 = vld [vmem:[#allocation5 + $0x834] sm:$0xff]
    %v3076 = vld [vmem:[#allocation5 + $0x83c] sm:$0xff]
    %v3077 = vld [vmem:[#allocation5 + $0x844] sm:$0xff]
    %v3078 = vld [vmem:[#allocation5 + $0x84c] sm:$0xf]
    %v3079 = vld [vmem:[#allocation5 + $0x850] sm:$0xff]
    %v3080 = vld [vmem:[#allocation5 + $0x858] sm:$0xff]
    %v3081 = vld [vmem:[#allocation5 + $0x860] sm:$0xff]
    %v3082 = vld [vmem:[#allocation5 + $0x868] sm:$0xf]
    %v3083 = vld [vmem:[#allocation5 + $0x86c] sm:$0xff]
    %v3084 = vld [vmem:[#allocation5 + $0x874] sm:$0xff]
    %v3085 = vld [vmem:[#allocation5 + $0x87c] sm:$0xff]
    %v3086 = vld [vmem:[#allocation5 + $0x884] sm:$0xf]
    %v3087 = vld [vmem:[#allocation5 + $0x888] sm:$0xff]
    %v3088 = vld [vmem:[#allocation5 + $0x890] sm:$0xff]
    %v3089 = vld [vmem:[#allocation5 + $0x898] sm:$0xff]
    %v3090 = vld [vmem:[#allocation5 + $0x8a0] sm:$0xf]
    %v3091 = vld [vmem:[#allocation5 + $0x8a4] sm:$0xff]
    %v3092 = vld [vmem:[#allocation5 + $0x8ac] sm:$0xff]
    %v3093 = vld [vmem:[#allocation5 + $0x8b4] sm:$0xff]
    %v3094 = vld [vmem:[#allocation5 + $0x8bc] sm:$0xf]
    %v3095 = vld [vmem:[#allocation5 + $0x8c0] sm:$0xff]
    %v3096 = vld [vmem:[#allocation5 + $0x8c8] sm:$0xff]
    %v3097 = vld [vmem:[#allocation5 + $0x8d0] sm:$0xff]
    %v3098 = vld [vmem:[#allocation5 + $0x8d8] sm:$0xf]
    %v3099 = vld [vmem:[#allocation5 + $0x8dc] sm:$0xff]
    %v3100 = vld [vmem:[#allocation5 + $0x8e4] sm:$0xff]
    %v3101 = vld [vmem:[#allocation5 + $0x8ec] sm:$0xff]
    %v3102 = vld [vmem:[#allocation5 + $0x8f4] sm:$0xf]
    %v3103 = vld [vmem:[#allocation5 + $0x8f8] sm:$0xff]
    %v3104 = vld [vmem:[#allocation5 + $0x900] sm:$0xff]
    %v3105 = vld [vmem:[#allocation5 + $0x908] sm:$0xff]
    %v3106 = vld [vmem:[#allocation5 + $0x910] sm:$0xf]
    %v3107 = vld [vmem:[#allocation5 + $0x914] sm:$0xff]
    %v3108 = vld [vmem:[#allocation5 + $0x91c] sm:$0xff]
    %v3109 = vld [vmem:[#allocation5 + $0x924] sm:$0xff]
    %v3110 = vld [vmem:[#allocation5 + $0x92c] sm:$0xf]
    %v3111 = vld [vmem:[#allocation5 + $0x930] sm:$0xff]
    %v3112 = vld [vmem:[#allocation5 + $0x938] sm:$0xff]
    %v3113 = vld [vmem:[#allocation5 + $0x940] sm:$0xff]
    %v3114 = vld [vmem:[#allocation5 + $0x948] sm:$0xf]
    %v3115 = vld [vmem:[#allocation5 + $0x94c] sm:$0xff]
    %v3116 = vld [vmem:[#allocation5 + $0x954] sm:$0xff]
    %v3117 = vld [vmem:[#allocation5 + $0x95c] sm:$0xff]
    %v3118 = vld [vmem:[#allocation5 + $0x964] sm:$0xf]
    %v3119 = vld [vmem:[#allocation5 + $0x968] sm:$0xff]
    %v3120 = vld [vmem:[#allocation5 + $0x970] sm:$0xff]
    %v3121 = vld [vmem:[#allocation5 + $0x978] sm:$0xff]
    %v3122 = vld [vmem:[#allocation5 + $0x980] sm:$0xf]
    %v3123 = vld [vmem:[#allocation5 + $0x984] sm:$0xff]
    %v3124 = vld [vmem:[#allocation5 + $0x98c] sm:$0xff]
    %v3125 = vld [vmem:[#allocation5 + $0x994] sm:$0xff]
    %v3126 = vld [vmem:[#allocation5 + $0x99c] sm:$0xf]
    %v3127 = vld [vmem:[#allocation5 + $0x9a0] sm:$0xff]
    %v3128 = vld [vmem:[#allocation5 + $0x9a8] sm:$0xff]
    %v3129 = vld [vmem:[#allocation5 + $0x9b0] sm:$0xff]
    %v3130 = vld [vmem:[#allocation5 + $0x9b8] sm:$0xf]
    %v3131 = vld [vmem:[#allocation5 + $0x9bc] sm:$0xff]
    %v3132 = vld [vmem:[#allocation5 + $0x9c4] sm:$0xff]
    %v3133 = vld [vmem:[#allocation5 + $0x9cc] sm:$0xff]
    %v3134 = vld [vmem:[#allocation5 + $0x9d4] sm:$0xf]
    %v3135 = vld [vmem:[#allocation5 + $0x9d8] sm:$0xff]
    %v3136 = vld [vmem:[#allocation5 + $0x9e0] sm:$0xff]
    %v3137 = vld [vmem:[#allocation5 + $0x9e8] sm:$0xff]
    %v3138 = vld [vmem:[#allocation5 + $0x9f0] sm:$0xf]
    %v3139 = vld [vmem:[#allocation5 + $0x9f4] sm:$0xff]
    %v3140 = vld [vmem:[#allocation5 + $0x9fc] sm:$0xff]
    %v3141 = vld [vmem:[#allocation5 + $0xa04] sm:$0xff]
    %v3142 = vld [vmem:[#allocation5 + $0xa0c] sm:$0xf]
    %v3143 = vld [vmem:[#allocation5 + $0xa10] sm:$0xff]
    %v3144 = vld [vmem:[#allocation5 + $0xa18] sm:$0xff]
    %v3145 = vld [vmem:[#allocation5 + $0xa20] sm:$0xff]
    %v3146 = vld [vmem:[#allocation5 + $0xa28] sm:$0xf]
    %v3147 = vld [vmem:[#allocation5 + $0xa2c] sm:$0xff]
    %v3148 = vld [vmem:[#allocation5 + $0xa34] sm:$0xff]
    %v3149 = vld [vmem:[#allocation5 + $0xa3c] sm:$0xff]
    %v3150 = vld [vmem:[#allocation5 + $0xa44] sm:$0xf]
    %v3151 = vld [vmem:[#allocation5 + $0xa48] sm:$0xff]
    %v3152 = vld [vmem:[#allocation5 + $0xa50] sm:$0xff]
    %v3153 = vld [vmem:[#allocation5 + $0xa58] sm:$0xff]
    %v3154 = vld [vmem:[#allocation5 + $0xa60] sm:$0xf]
    %v3155 = vld [vmem:[#allocation5 + $0xa64] sm:$0xff]
    %v3156 = vld [vmem:[#allocation5 + $0xa6c] sm:$0xff]
    %v3157 = vld [vmem:[#allocation5 + $0xa74] sm:$0xff]
    %v3158 = vld [vmem:[#allocation5 + $0xa7c] sm:$0xf]
    %v3159 = vld [vmem:[#allocation5 + $0xa80] sm:$0xff]
    %v3160 = vld [vmem:[#allocation5 + $0xa88] sm:$0xff]
    %v3161 = vld [vmem:[#allocation5 + $0xa90] sm:$0xff]
    %v3162 = vld [vmem:[#allocation5 + $0xa98] sm:$0xf]
    %v3163 = vld [vmem:[#allocation5 + $0xa9c] sm:$0xff]
    %v3164 = vld [vmem:[#allocation5 + $0xaa4] sm:$0xff]
    %v3165 = vld [vmem:[#allocation5 + $0xaac] sm:$0xff]
    %v3166 = vld [vmem:[#allocation5 + $0xab4] sm:$0xf]
    %v3167 = vld [vmem:[#allocation5 + $0xab8] sm:$0xff]
    %v3168 = vld [vmem:[#allocation5 + $0xac0] sm:$0xff]
    %v3169 = vld [vmem:[#allocation5 + $0xac8] sm:$0xff]
    %v3170 = vld [vmem:[#allocation5 + $0xad0] sm:$0xf]
    %v3171 = vld [vmem:[#allocation5 + $0xad4] sm:$0xff]
    %v3172 = vld [vmem:[#allocation5 + $0xadc] sm:$0xff]
    %v3173 = vld [vmem:[#allocation5 + $0xae4] sm:$0xff]
    %v3174 = vld [vmem:[#allocation5 + $0xaec] sm:$0xf]
    %v3175 = vld [vmem:[#allocation5 + $0xaf0] sm:$0xff]
    %v3176 = vld [vmem:[#allocation5 + $0xaf8] sm:$0xff]
    %v3177 = vld [vmem:[#allocation5 + $0xb00] sm:$0xff]
    %v3178 = vld [vmem:[#allocation5 + $0xb08] sm:$0xf]
    %v3179 = vld [vmem:[#allocation5 + $0xb0c] sm:$0xff]
    %v3180 = vld [vmem:[#allocation5 + $0xb14] sm:$0xff]
    %v3181 = vld [vmem:[#allocation5 + $0xb1c] sm:$0xff]
    %v3182 = vld [vmem:[#allocation5 + $0xb24] sm:$0xf]
    %v3183 = vld [vmem:[#allocation5 + $0xb28] sm:$0xff]
    %v3184 = vld [vmem:[#allocation5 + $0xb30] sm:$0xff]
    %v3185 = vld [vmem:[#allocation5 + $0xb38] sm:$0xff]
    %v3186 = vld [vmem:[#allocation5 + $0xb40] sm:$0xf]
    %v3187 = vld [vmem:[#allocation5 + $0xb44] sm:$0xff]
    %v3188 = vld [vmem:[#allocation5 + $0xb4c] sm:$0xff]
    %v3189 = vld [vmem:[#allocation5 + $0xb54] sm:$0xff]
    %v3190 = vld [vmem:[#allocation5 + $0xb5c] sm:$0xf]
    %v3191 = vld [vmem:[#allocation5 + $0xb60] sm:$0xff]
    %v3192 = vld [vmem:[#allocation5 + $0xb68] sm:$0xff]
    %v3193 = vld [vmem:[#allocation5 + $0xb70] sm:$0xff]
    %v3194 = vld [vmem:[#allocation5 + $0xb78] sm:$0xf]
    %v3195 = vld [vmem:[#allocation5 + $0xb7c] sm:$0xff]
    %v3196 = vld [vmem:[#allocation5 + $0xb84] sm:$0xff]
    %v3197 = vld [vmem:[#allocation5 + $0xb8c] sm:$0xff]
    %v3198 = vld [vmem:[#allocation5 + $0xb94] sm:$0xf]
    %v3199 = vld [vmem:[#allocation5 + $0xb98] sm:$0xff]
    %v3200 = vld [vmem:[#allocation5 + $0xba0] sm:$0xff]
    %v3201 = vld [vmem:[#allocation5 + $0xba8] sm:$0xff]
    %v3202 = vld [vmem:[#allocation5 + $0xbb0] sm:$0xf]
    %v3203 = vld [vmem:[#allocation5 + $0xbb4] sm:$0xff]
    %v3204 = vld [vmem:[#allocation5 + $0xbbc] sm:$0xff]
    %v3205 = vld [vmem:[#allocation5 + $0xbc4] sm:$0xff]
    %v3206 = vld [vmem:[#allocation5 + $0xbcc] sm:$0xf]
    %v3207 = vld [vmem:[#allocation5 + $0xbd0] sm:$0xff]
    %v3208 = vld [vmem:[#allocation5 + $0xbd8] sm:$0xff]
    %v3209 = vld [vmem:[#allocation5 + $0xbe0] sm:$0xff]
    %v3210 = vld [vmem:[#allocation5 + $0xbe8] sm:$0xf]
    %v3211 = vld [vmem:[#allocation5 + $0xbec] sm:$0xff]
    %v3212 = vld [vmem:[#allocation5 + $0xbf4] sm:$0xff]
    %v3213 = vld [vmem:[#allocation5 + $0xbfc] sm:$0xff]
    %v3214 = vld [vmem:[#allocation5 + $0xc04] sm:$0xf]
    %v3215 = vld [vmem:[#allocation5 + $0xc08] sm:$0xff]
    %v3216 = vld [vmem:[#allocation5 + $0xc10] sm:$0xff]
    %v3217 = vld [vmem:[#allocation5 + $0xc18] sm:$0xff]
    %v3218 = vld [vmem:[#allocation5 + $0xc20] sm:$0xf]
    %v3219 = vld [vmem:[#allocation5 + $0xc24] sm:$0xff]
    %v3220 = vld [vmem:[#allocation5 + $0xc2c] sm:$0xff]
    %v3221 = vld [vmem:[#allocation5 + $0xc34] sm:$0xff]
    %v3222 = vld [vmem:[#allocation5 + $0xc3c] sm:$0xf]
    %v3223 = vld [vmem:[#allocation5 + $0xc40] sm:$0xff]
    %v3224 = vld [vmem:[#allocation5 + $0xc48] sm:$0xff]
    %v3225 = vld [vmem:[#allocation5 + $0xc50] sm:$0xff]
    %v3226 = vld [vmem:[#allocation5 + $0xc58] sm:$0xf]
    %v3227 = vld [vmem:[#allocation5 + $0xc5c] sm:$0xff]
    %v3228 = vld [vmem:[#allocation5 + $0xc64] sm:$0xff]
    %v3229 = vld [vmem:[#allocation5 + $0xc6c] sm:$0xff]
    %v3230 = vld [vmem:[#allocation5 + $0xc74] sm:$0xf]
    %v3231 = vld [vmem:[#allocation5 + $0xc78] sm:$0xff]
    %v3232 = vld [vmem:[#allocation5 + $0xc80] sm:$0xff]
    %v3233 = vld [vmem:[#allocation5 + $0xc88] sm:$0xff]
    %v3234 = vld [vmem:[#allocation5 + $0xc90] sm:$0xf]
    %v3235 = vld [vmem:[#allocation5 + $0xc94] sm:$0xff]
    %v3236 = vld [vmem:[#allocation5 + $0xc9c] sm:$0xff]
    %v3237 = vld [vmem:[#allocation5 + $0xca4] sm:$0xff]
    %v3238 = vld [vmem:[#allocation5 + $0xcac] sm:$0xf]
    %v3239 = vld [vmem:[#allocation5 + $0xcb0] sm:$0xff]
    %v3240 = vld [vmem:[#allocation5 + $0xcb8] sm:$0xff]
    %v3241 = vld [vmem:[#allocation5 + $0xcc0] sm:$0xff]
    %v3242 = vld [vmem:[#allocation5 + $0xcc8] sm:$0xf]
    %v3243 = vld [vmem:[#allocation5 + $0xccc] sm:$0xff]
    %v3244 = vld [vmem:[#allocation5 + $0xcd4] sm:$0xff]
    %v3245 = vld [vmem:[#allocation5 + $0xcdc] sm:$0xff]
    %v3246 = vld [vmem:[#allocation5 + $0xce4] sm:$0xf]
    %v3247 = vld [vmem:[#allocation5 + $0xce8] sm:$0xff]
    %v3248 = vld [vmem:[#allocation5 + $0xcf0] sm:$0xff]
    %v3249 = vld [vmem:[#allocation5 + $0xcf8] sm:$0xff]
    %v3250 = vld [vmem:[#allocation5 + $0xd00] sm:$0xf]
    %v3251 = vld [vmem:[#allocation5 + $0xd04] sm:$0xff]
    %v3252 = vld [vmem:[#allocation5 + $0xd0c] sm:$0xff]
    %v3253 = vld [vmem:[#allocation5 + $0xd14] sm:$0xff]
    %v3254 = vld [vmem:[#allocation5 + $0xd1c] sm:$0xf]
    %v3255 = vld [vmem:[#allocation5 + $0xd20] sm:$0xff]
    %v3256 = vld [vmem:[#allocation5 + $0xd28] sm:$0xff]
    %v3257 = vld [vmem:[#allocation5 + $0xd30] sm:$0xff]
    %v3258 = vld [vmem:[#allocation5 + $0xd38] sm:$0xf]
    %v3259 = vld [vmem:[#allocation5 + $0xd3c] sm:$0xff]
    %v3260 = vld [vmem:[#allocation5 + $0xd44] sm:$0xff]
    %v3261 = vld [vmem:[#allocation5 + $0xd4c] sm:$0xff]
    %v3262 = vld [vmem:[#allocation5 + $0xd54] sm:$0xf]
    %v3263 = vld [vmem:[#allocation5 + $0xd58] sm:$0xff]
    %v3264 = vld [vmem:[#allocation5 + $0xd60] sm:$0xff]
    %v3265 = vld [vmem:[#allocation5 + $0xd68] sm:$0xff]
    %v3266 = vld [vmem:[#allocation5 + $0xd70] sm:$0xf]
    %v3267 = vld [vmem:[#allocation5 + $0xd74] sm:$0xff]
    %v3268 = vld [vmem:[#allocation5 + $0xd7c] sm:$0xff]
    %v3269 = vld [vmem:[#allocation5 + $0xd84] sm:$0xff]
    %v3270 = vld [vmem:[#allocation5 + $0xd8c] sm:$0xf]
    %v3271 = vld [vmem:[#allocation5 + $0xd90] sm:$0xff]
    %v3272 = vld [vmem:[#allocation5 + $0xd98] sm:$0xff]
    %v3273 = vld [vmem:[#allocation5 + $0xda0] sm:$0xff]
    %v3274 = vld [vmem:[#allocation5 + $0xda8] sm:$0xf]
    %v3275 = vld [vmem:[#allocation5 + $0xdac] sm:$0xff]
    %v3276 = vld [vmem:[#allocation5 + $0xdb4] sm:$0xff]
    %v3277 = vld [vmem:[#allocation5 + $0xdbc] sm:$0xff]
    %v3278 = vld [vmem:[#allocation5 + $0xdc4] sm:$0xf]
    %v3279 = vld [vmem:[#allocation5 + $0xdc8] sm:$0xff]
    %v3280 = vld [vmem:[#allocation5 + $0xdd0] sm:$0xff]
    %v3281 = vld [vmem:[#allocation5 + $0xdd8] sm:$0xff]
    %v3282 = vld [vmem:[#allocation5 + $0xde0] sm:$0xf]
    %v3283 = vld [vmem:[#allocation5 + $0xde4] sm:$0xff]
    %v3284 = vld [vmem:[#allocation5 + $0xdec] sm:$0xff]
    %v3285 = vld [vmem:[#allocation5 + $0xdf4] sm:$0xff]
    %v3286 = vld [vmem:[#allocation5 + $0xdfc] sm:$0xf]
    %v3287 = vld [vmem:[#allocation12] sm:$0xff]
    %v3289 = vperm.slane %v3287, 0
    %v3290 = vperm.slane %v3287, 1
    %v3291 = vperm.slane %v3287, 2
    %v3292 = vperm.slane %v3287, 3
    %v3293 = vperm.slane %v3287, 4
    %v3294 = vperm.slane %v3287, 5
    %v3295 = vperm.slane %v3287, 6
    %v3815 = vunpack.c.l.b16 %v2775
    %v3816 = vunpack.c.h.b16 %v2775
    %v3817 = vunpack.c.l.b16 %v2776
    %v3818 = vunpack.c.h.b16 %v2776
    %v3819 = vunpack.c.l.b16 %v2777
    %v3820 = vunpack.c.h.b16 %v2777
    %v3821 = vunpack.c.l.b16 %v2778
    %v3822 = vunpack.c.l.b16 %v2779
    %v3823 = vunpack.c.h.b16 %v2779
    %v3824 = vunpack.c.l.b16 %v2780
    %v3825 = vunpack.c.h.b16 %v2780
    %v3826 = vunpack.c.l.b16 %v2781
    %v3827 = vunpack.c.h.b16 %v2781
    %v3828 = vunpack.c.l.b16 %v2782
    %v3829 = vunpack.c.l.b16 %v2783
    %v3830 = vunpack.c.h.b16 %v2783
    %v3831 = vunpack.c.l.b16 %v2784
    %v3832 = vunpack.c.h.b16 %v2784
    %v3833 = vunpack.c.l.b16 %v2785
    %v3834 = vunpack.c.h.b16 %v2785
    %v3835 = vunpack.c.l.b16 %v2786
    %v3836 = vunpack.c.l.b16 %v2787
    %v3837 = vunpack.c.h.b16 %v2787
    %v3838 = vunpack.c.l.b16 %v2788
    %v3839 = vunpack.c.h.b16 %v2788
    %v3840 = vunpack.c.l.b16 %v2789
    %v3841 = vunpack.c.h.b16 %v2789
    %v3842 = vunpack.c.l.b16 %v2790
    %v3843 = vunpack.c.l.b16 %v2791
    %v3844 = vunpack.c.h.b16 %v2791
    %v3845 = vunpack.c.l.b16 %v2792
    %v3846 = vunpack.c.h.b16 %v2792
    %v3847 = vunpack.c.l.b16 %v2793
    %v3848 = vunpack.c.h.b16 %v2793
    %v3849 = vunpack.c.l.b16 %v2794
    %v3850 = vunpack.c.l.b16 %v2795
    %v3851 = vunpack.c.h.b16 %v2795
    %v3852 = vunpack.c.l.b16 %v2796
    %v3853 = vunpack.c.h.b16 %v2796
    %v3854 = vunpack.c.l.b16 %v2797
    %v3855 = vunpack.c.h.b16 %v2797
    %v3856 = vunpack.c.l.b16 %v2798
    %v3857 = vunpack.c.l.b16 %v2799
    %v3858 = vunpack.c.h.b16 %v2799
    %v3859 = vunpack.c.l.b16 %v2800
    %v3860 = vunpack.c.h.b16 %v2800
    %v3861 = vunpack.c.l.b16 %v2801
    %v3862 = vunpack.c.h.b16 %v2801
    %v3863 = vunpack.c.l.b16 %v2802
    %v3864 = vunpack.c.l.b16 %v2803
    %v3865 = vunpack.c.h.b16 %v2803
    %v3866 = vunpack.c.l.b16 %v2804
    %v3867 = vunpack.c.h.b16 %v2804
    %v3868 = vunpack.c.l.b16 %v2805
    %v3869 = vunpack.c.h.b16 %v2805
    %v3870 = vunpack.c.l.b16 %v2806
    %v3871 = vunpack.c.l.b16 %v2807
    %v3872 = vunpack.c.h.b16 %v2807
    %v3873 = vunpack.c.l.b16 %v2808
    %v3874 = vunpack.c.h.b16 %v2808
    %v3875 = vunpack.c.l.b16 %v2809
    %v3876 = vunpack.c.h.b16 %v2809
    %v3877 = vunpack.c.l.b16 %v2810
    %v3878 = vunpack.c.l.b16 %v2811
    %v3879 = vunpack.c.h.b16 %v2811
    %v3880 = vunpack.c.l.b16 %v2812
    %v3881 = vunpack.c.h.b16 %v2812
    %v3882 = vunpack.c.l.b16 %v2813
    %v3883 = vunpack.c.h.b16 %v2813
    %v3884 = vunpack.c.l.b16 %v2814
    %v3885 = vunpack.c.l.b16 %v2815
    %v3886 = vunpack.c.h.b16 %v2815
    %v3887 = vunpack.c.l.b16 %v2816
    %v3888 = vunpack.c.h.b16 %v2816
    %v3889 = vunpack.c.l.b16 %v2817
    %v3890 = vunpack.c.h.b16 %v2817
    %v3891 = vunpack.c.l.b16 %v2818
    %v3892 = vunpack.c.l.b16 %v2819
    %v3893 = vunpack.c.h.b16 %v2819
    %v3894 = vunpack.c.l.b16 %v2820
    %v3895 = vunpack.c.h.b16 %v2820
    %v3896 = vunpack.c.l.b16 %v2821
    %v3897 = vunpack.c.h.b16 %v2821
    %v3898 = vunpack.c.l.b16 %v2822
    %v3899 = vunpack.c.l.b16 %v2823
    %v3900 = vunpack.c.h.b16 %v2823
    %v3901 = vunpack.c.l.b16 %v2824
    %v3902 = vunpack.c.h.b16 %v2824
    %v3903 = vunpack.c.l.b16 %v2825
    %v3904 = vunpack.c.h.b16 %v2825
    %v3905 = vunpack.c.l.b16 %v2826
    %v3906 = vunpack.c.l.b16 %v2827
    %v3907 = vunpack.c.h.b16 %v2827
    %v3908 = vunpack.c.l.b16 %v2828
    %v3909 = vunpack.c.h.b16 %v2828
    %v3910 = vunpack.c.l.b16 %v2829
    %v3911 = vunpack.c.h.b16 %v2829
    %v3912 = vunpack.c.l.b16 %v2830
    %v3913 = vunpack.c.l.b16 %v2831
    %v3914 = vunpack.c.h.b16 %v2831
    %v3915 = vunpack.c.l.b16 %v2832
    %v3916 = vunpack.c.h.b16 %v2832
    %v3917 = vunpack.c.l.b16 %v2833
    %v3918 = vunpack.c.h.b16 %v2833
    %v3919 = vunpack.c.l.b16 %v2834
    %v3920 = vunpack.c.l.b16 %v2835
    %v3921 = vunpack.c.h.b16 %v2835
    %v3922 = vunpack.c.l.b16 %v2836
    %v3923 = vunpack.c.h.b16 %v2836
    %v3924 = vunpack.c.l.b16 %v2837
    %v3925 = vunpack.c.h.b16 %v2837
    %v3926 = vunpack.c.l.b16 %v2838
    %v3927 = vunpack.c.l.b16 %v2839
    %v3928 = vunpack.c.h.b16 %v2839
    %v3929 = vunpack.c.l.b16 %v2840
    %v3930 = vunpack.c.h.b16 %v2840
    %v3931 = vunpack.c.l.b16 %v2841
    %v3932 = vunpack.c.h.b16 %v2841
    %v3933 = vunpack.c.l.b16 %v2842
    %v3934 = vunpack.c.l.b16 %v2843
    %v3935 = vunpack.c.h.b16 %v2843
    %v3936 = vunpack.c.l.b16 %v2844
    %v3937 = vunpack.c.h.b16 %v2844
    %v3938 = vunpack.c.l.b16 %v2845
    %v3939 = vunpack.c.h.b16 %v2845
    %v3940 = vunpack.c.l.b16 %v2846
    %v3941 = vunpack.c.l.b16 %v2847
    %v3942 = vunpack.c.h.b16 %v2847
    %v3943 = vunpack.c.l.b16 %v2848
    %v3944 = vunpack.c.h.b16 %v2848
    %v3945 = vunpack.c.l.b16 %v2849
    %v3946 = vunpack.c.h.b16 %v2849
    %v3947 = vunpack.c.l.b16 %v2850
    %v3948 = vunpack.c.l.b16 %v2851
    %v3949 = vunpack.c.h.b16 %v2851
    %v3950 = vunpack.c.l.b16 %v2852
    %v3951 = vunpack.c.h.b16 %v2852
    %v3952 = vunpack.c.l.b16 %v2853
    %v3953 = vunpack.c.h.b16 %v2853
    %v3954 = vunpack.c.l.b16 %v2854
    %v3955 = vunpack.c.l.b16 %v2855
    %v3956 = vunpack.c.h.b16 %v2855
    %v3957 = vunpack.c.l.b16 %v2856
    %v3958 = vunpack.c.h.b16 %v2856
    %v3959 = vunpack.c.l.b16 %v2857
    %v3960 = vunpack.c.h.b16 %v2857
    %v3961 = vunpack.c.l.b16 %v2858
    %v3962 = vunpack.c.l.b16 %v2859
    %v3963 = vunpack.c.h.b16 %v2859
    %v3964 = vunpack.c.l.b16 %v2860
    %v3965 = vunpack.c.h.b16 %v2860
    %v3966 = vunpack.c.l.b16 %v2861
    %v3967 = vunpack.c.h.b16 %v2861
    %v3968 = vunpack.c.l.b16 %v2862
    %v3969 = vunpack.c.l.b16 %v2863
    %v3970 = vunpack.c.h.b16 %v2863
    %v3971 = vunpack.c.l.b16 %v2864
    %v3972 = vunpack.c.h.b16 %v2864
    %v3973 = vunpack.c.l.b16 %v2865
    %v3974 = vunpack.c.h.b16 %v2865
    %v3975 = vunpack.c.l.b16 %v2866
    %v3976 = vunpack.c.l.b16 %v2867
    %v3977 = vunpack.c.h.b16 %v2867
    %v3978 = vunpack.c.l.b16 %v2868
    %v3979 = vunpack.c.h.b16 %v2868
    %v3980 = vunpack.c.l.b16 %v2869
    %v3981 = vunpack.c.h.b16 %v2869
    %v3982 = vunpack.c.l.b16 %v2870
    %v3983 = vunpack.c.l.b16 %v2871
    %v3984 = vunpack.c.h.b16 %v2871
    %v3985 = vunpack.c.l.b16 %v2872
    %v3986 = vunpack.c.h.b16 %v2872
    %v3987 = vunpack.c.l.b16 %v2873
    %v3988 = vunpack.c.h.b16 %v2873
    %v3989 = vunpack.c.l.b16 %v2874
    %v3990 = vunpack.c.l.b16 %v2875
    %v3991 = vunpack.c.h.b16 %v2875
    %v3992 = vunpack.c.l.b16 %v2876
    %v3993 = vunpack.c.h.b16 %v2876
    %v3994 = vunpack.c.l.b16 %v2877
    %v3995 = vunpack.c.h.b16 %v2877
    %v3996 = vunpack.c.l.b16 %v2878
    %v3997 = vunpack.c.l.b16 %v2879
    %v3998 = vunpack.c.h.b16 %v2879
    %v3999 = vunpack.c.l.b16 %v2880
    %v4000 = vunpack.c.h.b16 %v2880
    %v4001 = vunpack.c.l.b16 %v2881
    %v4002 = vunpack.c.h.b16 %v2881
    %v4003 = vunpack.c.l.b16 %v2882
    %v4004 = vunpack.c.l.b16 %v2883
    %v4005 = vunpack.c.h.b16 %v2883
    %v4006 = vunpack.c.l.b16 %v2884
    %v4007 = vunpack.c.h.b16 %v2884
    %v4008 = vunpack.c.l.b16 %v2885
    %v4009 = vunpack.c.h.b16 %v2885
    %v4010 = vunpack.c.l.b16 %v2886
    %v4011 = vunpack.c.l.b16 %v2887
    %v4012 = vunpack.c.h.b16 %v2887
    %v4013 = vunpack.c.l.b16 %v2888
    %v4014 = vunpack.c.h.b16 %v2888
    %v4015 = vunpack.c.l.b16 %v2889
    %v4016 = vunpack.c.h.b16 %v2889
    %v4017 = vunpack.c.l.b16 %v2890
    %v4018 = vunpack.c.l.b16 %v2891
    %v4019 = vunpack.c.h.b16 %v2891
    %v4020 = vunpack.c.l.b16 %v2892
    %v4021 = vunpack.c.h.b16 %v2892
    %v4022 = vunpack.c.l.b16 %v2893
    %v4023 = vunpack.c.h.b16 %v2893
    %v4024 = vunpack.c.l.b16 %v2894
    %v4025 = vunpack.c.l.b16 %v2895
    %v4026 = vunpack.c.h.b16 %v2895
    %v4027 = vunpack.c.l.b16 %v2896
    %v4028 = vunpack.c.h.b16 %v2896
    %v4029 = vunpack.c.l.b16 %v2897
    %v4030 = vunpack.c.h.b16 %v2897
    %v4031 = vunpack.c.l.b16 %v2898
    %v4032 = vunpack.c.l.b16 %v2899
    %v4033 = vunpack.c.h.b16 %v2899
    %v4034 = vunpack.c.l.b16 %v2900
    %v4035 = vunpack.c.h.b16 %v2900
    %v4036 = vunpack.c.l.b16 %v2901
    %v4037 = vunpack.c.h.b16 %v2901
    %v4038 = vunpack.c.l.b16 %v2902
    %v4039 = vunpack.c.l.b16 %v2903
    %v4040 = vunpack.c.h.b16 %v2903
    %v4041 = vunpack.c.l.b16 %v2904
    %v4042 = vunpack.c.h.b16 %v2904
    %v4043 = vunpack.c.l.b16 %v2905
    %v4044 = vunpack.c.h.b16 %v2905
    %v4045 = vunpack.c.l.b16 %v2906
    %v4046 = vunpack.c.l.b16 %v2907
    %v4047 = vunpack.c.h.b16 %v2907
    %v4048 = vunpack.c.l.b16 %v2908
    %v4049 = vunpack.c.h.b16 %v2908
    %v4050 = vunpack.c.l.b16 %v2909
    %v4051 = vunpack.c.h.b16 %v2909
    %v4052 = vunpack.c.l.b16 %v2910
    %v4053 = vunpack.c.l.b16 %v2911
    %v4054 = vunpack.c.h.b16 %v2911
    %v4055 = vunpack.c.l.b16 %v2912
    %v4056 = vunpack.c.h.b16 %v2912
    %v4057 = vunpack.c.l.b16 %v2913
    %v4058 = vunpack.c.h.b16 %v2913
    %v4059 = vunpack.c.l.b16 %v2914
    %v4060 = vunpack.c.l.b16 %v2915
    %v4061 = vunpack.c.h.b16 %v2915
    %v4062 = vunpack.c.l.b16 %v2916
    %v4063 = vunpack.c.h.b16 %v2916
    %v4064 = vunpack.c.l.b16 %v2917
    %v4065 = vunpack.c.h.b16 %v2917
    %v4066 = vunpack.c.l.b16 %v2918
    %v4067 = vunpack.c.l.b16 %v2919
    %v4068 = vunpack.c.h.b16 %v2919
    %v4069 = vunpack.c.l.b16 %v2920
    %v4070 = vunpack.c.h.b16 %v2920
    %v4071 = vunpack.c.l.b16 %v2921
    %v4072 = vunpack.c.h.b16 %v2921
    %v4073 = vunpack.c.l.b16 %v2922
    %v4074 = vunpack.c.l.b16 %v2923
    %v4075 = vunpack.c.h.b16 %v2923
    %v4076 = vunpack.c.l.b16 %v2924
    %v4077 = vunpack.c.h.b16 %v2924
    %v4078 = vunpack.c.l.b16 %v2925
    %v4079 = vunpack.c.h.b16 %v2925
    %v4080 = vunpack.c.l.b16 %v2926
    %v4081 = vunpack.c.l.b16 %v2927
    %v4082 = vunpack.c.h.b16 %v2927
    %v4083 = vunpack.c.l.b16 %v2928
    %v4084 = vunpack.c.h.b16 %v2928
    %v4085 = vunpack.c.l.b16 %v2929
    %v4086 = vunpack.c.h.b16 %v2929
    %v4087 = vunpack.c.l.b16 %v2930
    %v4088 = vunpack.c.l.b16 %v2931
    %v4089 = vunpack.c.h.b16 %v2931
    %v4090 = vunpack.c.l.b16 %v2932
    %v4091 = vunpack.c.h.b16 %v2932
    %v4092 = vunpack.c.l.b16 %v2933
    %v4093 = vunpack.c.h.b16 %v2933
    %v4094 = vunpack.c.l.b16 %v2934
    %v4095 = vunpack.c.l.b16 %v2935
    %v4096 = vunpack.c.h.b16 %v2935
    %v4097 = vunpack.c.l.b16 %v2936
    %v4098 = vunpack.c.h.b16 %v2936
    %v4099 = vunpack.c.l.b16 %v2937
    %v4100 = vunpack.c.h.b16 %v2937
    %v4101 = vunpack.c.l.b16 %v2938
    %v4102 = vunpack.c.l.b16 %v2939
    %v4103 = vunpack.c.h.b16 %v2939
    %v4104 = vunpack.c.l.b16 %v2940
    %v4105 = vunpack.c.h.b16 %v2940
    %v4106 = vunpack.c.l.b16 %v2941
    %v4107 = vunpack.c.h.b16 %v2941
    %v4108 = vunpack.c.l.b16 %v2942
    %v4109 = vunpack.c.l.b16 %v2943
    %v4110 = vunpack.c.h.b16 %v2943
    %v4111 = vunpack.c.l.b16 %v2944
    %v4112 = vunpack.c.h.b16 %v2944
    %v4113 = vunpack.c.l.b16 %v2945
    %v4114 = vunpack.c.h.b16 %v2945
    %v4115 = vunpack.c.l.b16 %v2946
    %v4116 = vunpack.c.l.b16 %v2947
    %v4117 = vunpack.c.h.b16 %v2947
    %v4118 = vunpack.c.l.b16 %v2948
    %v4119 = vunpack.c.h.b16 %v2948
    %v4120 = vunpack.c.l.b16 %v2949
    %v4121 = vunpack.c.h.b16 %v2949
    %v4122 = vunpack.c.l.b16 %v2950
    %v4123 = vunpack.c.l.b16 %v2951
    %v4124 = vunpack.c.h.b16 %v2951
    %v4125 = vunpack.c.l.b16 %v2952
    %v4126 = vunpack.c.h.b16 %v2952
    %v4127 = vunpack.c.l.b16 %v2953
    %v4128 = vunpack.c.h.b16 %v2953
    %v4129 = vunpack.c.l.b16 %v2954
    %v4130 = vunpack.c.l.b16 %v2955
    %v4131 = vunpack.c.h.b16 %v2955
    %v4132 = vunpack.c.l.b16 %v2956
    %v4133 = vunpack.c.h.b16 %v2956
    %v4134 = vunpack.c.l.b16 %v2957
    %v4135 = vunpack.c.h.b16 %v2957
    %v4136 = vunpack.c.l.b16 %v2958
    %v4137 = vunpack.c.l.b16 %v2959
    %v4138 = vunpack.c.h.b16 %v2959
    %v4139 = vunpack.c.l.b16 %v2960
    %v4140 = vunpack.c.h.b16 %v2960
    %v4141 = vunpack.c.l.b16 %v2961
    %v4142 = vunpack.c.h.b16 %v2961
    %v4143 = vunpack.c.l.b16 %v2962
    %v4144 = vunpack.c.l.b16 %v2963
    %v4145 = vunpack.c.h.b16 %v2963
    %v4146 = vunpack.c.l.b16 %v2964
    %v4147 = vunpack.c.h.b16 %v2964
    %v4148 = vunpack.c.l.b16 %v2965
    %v4149 = vunpack.c.h.b16 %v2965
    %v4150 = vunpack.c.l.b16 %v2966
    %v4151 = vunpack.c.l.b16 %v2967
    %v4152 = vunpack.c.h.b16 %v2967
    %v4153 = vunpack.c.l.b16 %v2968
    %v4154 = vunpack.c.h.b16 %v2968
    %v4155 = vunpack.c.l.b16 %v2969
    %v4156 = vunpack.c.h.b16 %v2969
    %v4157 = vunpack.c.l.b16 %v2970
    %v4158 = vunpack.c.l.b16 %v2971
    %v4159 = vunpack.c.h.b16 %v2971
    %v4160 = vunpack.c.l.b16 %v2972
    %v4161 = vunpack.c.h.b16 %v2972
    %v4162 = vunpack.c.l.b16 %v2973
    %v4163 = vunpack.c.h.b16 %v2973
    %v4164 = vunpack.c.l.b16 %v2974
    %v4165 = vunpack.c.l.b16 %v2975
    %v4166 = vunpack.c.h.b16 %v2975
    %v4167 = vunpack.c.l.b16 %v2976
    %v4168 = vunpack.c.h.b16 %v2976
    %v4169 = vunpack.c.l.b16 %v2977
    %v4170 = vunpack.c.h.b16 %v2977
    %v4171 = vunpack.c.l.b16 %v2978
    %v4172 = vunpack.c.l.b16 %v2979
    %v4173 = vunpack.c.h.b16 %v2979
    %v4174 = vunpack.c.l.b16 %v2980
    %v4175 = vunpack.c.h.b16 %v2980
    %v4176 = vunpack.c.l.b16 %v2981
    %v4177 = vunpack.c.h.b16 %v2981
    %v4178 = vunpack.c.l.b16 %v2982
    %v4179 = vunpack.c.l.b16 %v2983
    %v4180 = vunpack.c.h.b16 %v2983
    %v4181 = vunpack.c.l.b16 %v2984
    %v4182 = vunpack.c.h.b16 %v2984
    %v4183 = vunpack.c.l.b16 %v2985
    %v4184 = vunpack.c.h.b16 %v2985
    %v4185 = vunpack.c.l.b16 %v2986
    %v4186 = vunpack.c.l.b16 %v2987
    %v4187 = vunpack.c.h.b16 %v2987
    %v4188 = vunpack.c.l.b16 %v2988
    %v4189 = vunpack.c.h.b16 %v2988
    %v4190 = vunpack.c.l.b16 %v2989
    %v4191 = vunpack.c.h.b16 %v2989
    %v4192 = vunpack.c.l.b16 %v2990
    %v4193 = vunpack.c.l.b16 %v2991
    %v4194 = vunpack.c.h.b16 %v2991
    %v4195 = vunpack.c.l.b16 %v2992
    %v4196 = vunpack.c.h.b16 %v2992
    %v4197 = vunpack.c.l.b16 %v2993
    %v4198 = vunpack.c.h.b16 %v2993
    %v4199 = vunpack.c.l.b16 %v2994
    %v4200 = vunpack.c.l.b16 %v2995
    %v4201 = vunpack.c.h.b16 %v2995
    %v4202 = vunpack.c.l.b16 %v2996
    %v4203 = vunpack.c.h.b16 %v2996
    %v4204 = vunpack.c.l.b16 %v2997
    %v4205 = vunpack.c.h.b16 %v2997
    %v4206 = vunpack.c.l.b16 %v2998
    %v4207 = vunpack.c.l.b16 %v2999
    %v4208 = vunpack.c.h.b16 %v2999
    %v4209 = vunpack.c.l.b16 %v3000
    %v4210 = vunpack.c.h.b16 %v3000
    %v4211 = vunpack.c.l.b16 %v3001
    %v4212 = vunpack.c.h.b16 %v3001
    %v4213 = vunpack.c.l.b16 %v3002
    %v4214 = vunpack.c.l.b16 %v3003
    %v4215 = vunpack.c.h.b16 %v3003
    %v4216 = vunpack.c.l.b16 %v3004
    %v4217 = vunpack.c.h.b16 %v3004
    %v4218 = vunpack.c.l.b16 %v3005
    %v4219 = vunpack.c.h.b16 %v3005
    %v4220 = vunpack.c.l.b16 %v3006
    %v4221 = vunpack.c.l.b16 %v3007
    %v4222 = vunpack.c.h.b16 %v3007
    %v4223 = vunpack.c.l.b16 %v3008
    %v4224 = vunpack.c.h.b16 %v3008
    %v4225 = vunpack.c.l.b16 %v3009
    %v4226 = vunpack.c.h.b16 %v3009
    %v4227 = vunpack.c.l.b16 %v3010
    %v4228 = vunpack.c.l.b16 %v3011
    %v4229 = vunpack.c.h.b16 %v3011
    %v4230 = vunpack.c.l.b16 %v3012
    %v4231 = vunpack.c.h.b16 %v3012
    %v4232 = vunpack.c.l.b16 %v3013
    %v4233 = vunpack.c.h.b16 %v3013
    %v4234 = vunpack.c.l.b16 %v3014
    %v4235 = vunpack.c.l.b16 %v3015
    %v4236 = vunpack.c.h.b16 %v3015
    %v4237 = vunpack.c.l.b16 %v3016
    %v4238 = vunpack.c.h.b16 %v3016
    %v4239 = vunpack.c.l.b16 %v3017
    %v4240 = vunpack.c.h.b16 %v3017
    %v4241 = vunpack.c.l.b16 %v3018
    %v4242 = vunpack.c.l.b16 %v3019
    %v4243 = vunpack.c.h.b16 %v3019
    %v4244 = vunpack.c.l.b16 %v3020
    %v4245 = vunpack.c.h.b16 %v3020
    %v4246 = vunpack.c.l.b16 %v3021
    %v4247 = vunpack.c.h.b16 %v3021
    %v4248 = vunpack.c.l.b16 %v3022
    %v4249 = vunpack.c.l.b16 %v3023
    %v4250 = vunpack.c.h.b16 %v3023
    %v4251 = vunpack.c.l.b16 %v3024
    %v4252 = vunpack.c.h.b16 %v3024
    %v4253 = vunpack.c.l.b16 %v3025
    %v4254 = vunpack.c.h.b16 %v3025
    %v4255 = vunpack.c.l.b16 %v3026
    %v4256 = vunpack.c.l.b16 %v3027
    %v4257 = vunpack.c.h.b16 %v3027
    %v4258 = vunpack.c.l.b16 %v3028
    %v4259 = vunpack.c.h.b16 %v3028
    %v4260 = vunpack.c.l.b16 %v3029
    %v4261 = vunpack.c.h.b16 %v3029
    %v4262 = vunpack.c.l.b16 %v3030
    %v4263 = vunpack.c.l.b16 %v3031
    %v4264 = vunpack.c.h.b16 %v3031
    %v4265 = vunpack.c.l.b16 %v3032
    %v4266 = vunpack.c.h.b16 %v3032
    %v4267 = vunpack.c.l.b16 %v3033
    %v4268 = vunpack.c.h.b16 %v3033
    %v4269 = vunpack.c.l.b16 %v3034
    %v4270 = vunpack.c.l.b16 %v3035
    %v4271 = vunpack.c.h.b16 %v3035
    %v4272 = vunpack.c.l.b16 %v3036
    %v4273 = vunpack.c.h.b16 %v3036
    %v4274 = vunpack.c.l.b16 %v3037
    %v4275 = vunpack.c.h.b16 %v3037
    %v4276 = vunpack.c.l.b16 %v3038
    %v4277 = vunpack.c.l.b16 %v3039
    %v4278 = vunpack.c.h.b16 %v3039
    %v4279 = vunpack.c.l.b16 %v3040
    %v4280 = vunpack.c.h.b16 %v3040
    %v4281 = vunpack.c.l.b16 %v3041
    %v4282 = vunpack.c.h.b16 %v3041
    %v4283 = vunpack.c.l.b16 %v3042
    %v4284 = vunpack.c.l.b16 %v3043
    %v4285 = vunpack.c.h.b16 %v3043
    %v4286 = vunpack.c.l.b16 %v3044
    %v4287 = vunpack.c.h.b16 %v3044
    %v4288 = vunpack.c.l.b16 %v3045
    %v4289 = vunpack.c.h.b16 %v3045
    %v4290 = vunpack.c.l.b16 %v3046
    %v4291 = vunpack.c.l.b16 %v3047
    %v4292 = vunpack.c.h.b16 %v3047
    %v4293 = vunpack.c.l.b16 %v3048
    %v4294 = vunpack.c.h.b16 %v3048
    %v4295 = vunpack.c.l.b16 %v3049
    %v4296 = vunpack.c.h.b16 %v3049
    %v4297 = vunpack.c.l.b16 %v3050
    %v4298 = vunpack.c.l.b16 %v3051
    %v4299 = vunpack.c.h.b16 %v3051
    %v4300 = vunpack.c.l.b16 %v3052
    %v4301 = vunpack.c.h.b16 %v3052
    %v4302 = vunpack.c.l.b16 %v3053
    %v4303 = vunpack.c.h.b16 %v3053
    %v4304 = vunpack.c.l.b16 %v3054
    %v4305 = vunpack.c.l.b16 %v3055
    %v4306 = vunpack.c.h.b16 %v3055
    %v4307 = vunpack.c.l.b16 %v3056
    %v4308 = vunpack.c.h.b16 %v3056
    %v4309 = vunpack.c.l.b16 %v3057
    %v4310 = vunpack.c.h.b16 %v3057
    %v4311 = vunpack.c.l.b16 %v3058
    %v4312 = vunpack.c.l.b16 %v3059
    %v4313 = vunpack.c.h.b16 %v3059
    %v4314 = vunpack.c.l.b16 %v3060
    %v4315 = vunpack.c.h.b16 %v3060
    %v4316 = vunpack.c.l.b16 %v3061
    %v4317 = vunpack.c.h.b16 %v3061
    %v4318 = vunpack.c.l.b16 %v3062
    %v4319 = vunpack.c.l.b16 %v3063
    %v4320 = vunpack.c.h.b16 %v3063
    %v4321 = vunpack.c.l.b16 %v3064
    %v4322 = vunpack.c.h.b16 %v3064
    %v4323 = vunpack.c.l.b16 %v3065
    %v4324 = vunpack.c.h.b16 %v3065
    %v4325 = vunpack.c.l.b16 %v3066
    %v4326 = vunpack.c.l.b16 %v3067
    %v4327 = vunpack.c.h.b16 %v3067
    %v4328 = vunpack.c.l.b16 %v3068
    %v4329 = vunpack.c.h.b16 %v3068
    %v4330 = vunpack.c.l.b16 %v3069
    %v4331 = vunpack.c.h.b16 %v3069
    %v4332 = vunpack.c.l.b16 %v3070
    %v4333 = vunpack.c.l.b16 %v3071
    %v4334 = vunpack.c.h.b16 %v3071
    %v4335 = vunpack.c.l.b16 %v3072
    %v4336 = vunpack.c.h.b16 %v3072
    %v4337 = vunpack.c.l.b16 %v3073
    %v4338 = vunpack.c.h.b16 %v3073
    %v4339 = vunpack.c.l.b16 %v3074
    %v4340 = vunpack.c.l.b16 %v3075
    %v4341 = vunpack.c.h.b16 %v3075
    %v4342 = vunpack.c.l.b16 %v3076
    %v4343 = vunpack.c.h.b16 %v3076
    %v4344 = vunpack.c.l.b16 %v3077
    %v4345 = vunpack.c.h.b16 %v3077
    %v4346 = vunpack.c.l.b16 %v3078
    %v4347 = vunpack.c.l.b16 %v3079
    %v4348 = vunpack.c.h.b16 %v3079
    %v4349 = vunpack.c.l.b16 %v3080
    %v4350 = vunpack.c.h.b16 %v3080
    %v4351 = vunpack.c.l.b16 %v3081
    %v4352 = vunpack.c.h.b16 %v3081
    %v4353 = vunpack.c.l.b16 %v3082
    %v4354 = vunpack.c.l.b16 %v3083
    %v4355 = vunpack.c.h.b16 %v3083
    %v4356 = vunpack.c.l.b16 %v3084
    %v4357 = vunpack.c.h.b16 %v3084
    %v4358 = vunpack.c.l.b16 %v3085
    %v4359 = vunpack.c.h.b16 %v3085
    %v4360 = vunpack.c.l.b16 %v3086
    %v4361 = vunpack.c.l.b16 %v3087
    %v4362 = vunpack.c.h.b16 %v3087
    %v4363 = vunpack.c.l.b16 %v3088
    %v4364 = vunpack.c.h.b16 %v3088
    %v4365 = vunpack.c.l.b16 %v3089
    %v4366 = vunpack.c.h.b16 %v3089
    %v4367 = vunpack.c.l.b16 %v3090
    %v4368 = vunpack.c.l.b16 %v3091
    %v4369 = vunpack.c.h.b16 %v3091
    %v4370 = vunpack.c.l.b16 %v3092
    %v4371 = vunpack.c.h.b16 %v3092
    %v4372 = vunpack.c.l.b16 %v3093
    %v4373 = vunpack.c.h.b16 %v3093
    %v4374 = vunpack.c.l.b16 %v3094
    %v4375 = vunpack.c.l.b16 %v3095
    %v4376 = vunpack.c.h.b16 %v3095
    %v4377 = vunpack.c.l.b16 %v3096
    %v4378 = vunpack.c.h.b16 %v3096
    %v4379 = vunpack.c.l.b16 %v3097
    %v4380 = vunpack.c.h.b16 %v3097
    %v4381 = vunpack.c.l.b16 %v3098
    %v4382 = vunpack.c.l.b16 %v3099
    %v4383 = vunpack.c.h.b16 %v3099
    %v4384 = vunpack.c.l.b16 %v3100
    %v4385 = vunpack.c.h.b16 %v3100
    %v4386 = vunpack.c.l.b16 %v3101
    %v4387 = vunpack.c.h.b16 %v3101
    %v4388 = vunpack.c.l.b16 %v3102
    %v4389 = vunpack.c.l.b16 %v3103
    %v4390 = vunpack.c.h.b16 %v3103
    %v4391 = vunpack.c.l.b16 %v3104
    %v4392 = vunpack.c.h.b16 %v3104
    %v4393 = vunpack.c.l.b16 %v3105
    %v4394 = vunpack.c.h.b16 %v3105
    %v4395 = vunpack.c.l.b16 %v3106
    %v4396 = vunpack.c.l.b16 %v3107
    %v4397 = vunpack.c.h.b16 %v3107
    %v4398 = vunpack.c.l.b16 %v3108
    %v4399 = vunpack.c.h.b16 %v3108
    %v4400 = vunpack.c.l.b16 %v3109
    %v4401 = vunpack.c.h.b16 %v3109
    %v4402 = vunpack.c.l.b16 %v3110
    %v4403 = vunpack.c.l.b16 %v3111
    %v4404 = vunpack.c.h.b16 %v3111
    %v4405 = vunpack.c.l.b16 %v3112
    %v4406 = vunpack.c.h.b16 %v3112
    %v4407 = vunpack.c.l.b16 %v3113
    %v4408 = vunpack.c.h.b16 %v3113
    %v4409 = vunpack.c.l.b16 %v3114
    %v4410 = vunpack.c.l.b16 %v3115
    %v4411 = vunpack.c.h.b16 %v3115
    %v4412 = vunpack.c.l.b16 %v3116
    %v4413 = vunpack.c.h.b16 %v3116
    %v4414 = vunpack.c.l.b16 %v3117
    %v4415 = vunpack.c.h.b16 %v3117
    %v4416 = vunpack.c.l.b16 %v3118
    %v4417 = vunpack.c.l.b16 %v3119
    %v4418 = vunpack.c.h.b16 %v3119
    %v4419 = vunpack.c.l.b16 %v3120
    %v4420 = vunpack.c.h.b16 %v3120
    %v4421 = vunpack.c.l.b16 %v3121
    %v4422 = vunpack.c.h.b16 %v3121
    %v4423 = vunpack.c.l.b16 %v3122
    %v4424 = vunpack.c.l.b16 %v3123
    %v4425 = vunpack.c.h.b16 %v3123
    %v4426 = vunpack.c.l.b16 %v3124
    %v4427 = vunpack.c.h.b16 %v3124
    %v4428 = vunpack.c.l.b16 %v3125
    %v4429 = vunpack.c.h.b16 %v3125
    %v4430 = vunpack.c.l.b16 %v3126
    %v4431 = vunpack.c.l.b16 %v3127
    %v4432 = vunpack.c.h.b16 %v3127
    %v4433 = vunpack.c.l.b16 %v3128
    %v4434 = vunpack.c.h.b16 %v3128
    %v4435 = vunpack.c.l.b16 %v3129
    %v4436 = vunpack.c.h.b16 %v3129
    %v4437 = vunpack.c.l.b16 %v3130
    %v4438 = vunpack.c.l.b16 %v3131
    %v4439 = vunpack.c.h.b16 %v3131
    %v4440 = vunpack.c.l.b16 %v3132
    %v4441 = vunpack.c.h.b16 %v3132
    %v4442 = vunpack.c.l.b16 %v3133
    %v4443 = vunpack.c.h.b16 %v3133
    %v4444 = vunpack.c.l.b16 %v3134
    %v4445 = vunpack.c.l.b16 %v3135
    %v4446 = vunpack.c.h.b16 %v3135
    %v4447 = vunpack.c.l.b16 %v3136
    %v4448 = vunpack.c.h.b16 %v3136
    %v4449 = vunpack.c.l.b16 %v3137
    %v4450 = vunpack.c.h.b16 %v3137
    %v4451 = vunpack.c.l.b16 %v3138
    %v4452 = vunpack.c.l.b16 %v3139
    %v4453 = vunpack.c.h.b16 %v3139
    %v4454 = vunpack.c.l.b16 %v3140
    %v4455 = vunpack.c.h.b16 %v3140
    %v4456 = vunpack.c.l.b16 %v3141
    %v4457 = vunpack.c.h.b16 %v3141
    %v4458 = vunpack.c.l.b16 %v3142
    %v4459 = vunpack.c.l.b16 %v3143
    %v4460 = vunpack.c.h.b16 %v3143
    %v4461 = vunpack.c.l.b16 %v3144
    %v4462 = vunpack.c.h.b16 %v3144
    %v4463 = vunpack.c.l.b16 %v3145
    %v4464 = vunpack.c.h.b16 %v3145
    %v4465 = vunpack.c.l.b16 %v3146
    %v4466 = vunpack.c.l.b16 %v3147
    %v4467 = vunpack.c.h.b16 %v3147
    %v4468 = vunpack.c.l.b16 %v3148
    %v4469 = vunpack.c.h.b16 %v3148
    %v4470 = vunpack.c.l.b16 %v3149
    %v4471 = vunpack.c.h.b16 %v3149
    %v4472 = vunpack.c.l.b16 %v3150
    %v4473 = vunpack.c.l.b16 %v3151
    %v4474 = vunpack.c.h.b16 %v3151
    %v4475 = vunpack.c.l.b16 %v3152
    %v4476 = vunpack.c.h.b16 %v3152
    %v4477 = vunpack.c.l.b16 %v3153
    %v4478 = vunpack.c.h.b16 %v3153
    %v4479 = vunpack.c.l.b16 %v3154
    %v4480 = vunpack.c.l.b16 %v3155
    %v4481 = vunpack.c.h.b16 %v3155
    %v4482 = vunpack.c.l.b16 %v3156
    %v4483 = vunpack.c.h.b16 %v3156
    %v4484 = vunpack.c.l.b16 %v3157
    %v4485 = vunpack.c.h.b16 %v3157
    %v4486 = vunpack.c.l.b16 %v3158
    %v4487 = vunpack.c.l.b16 %v3159
    %v4488 = vunpack.c.h.b16 %v3159
    %v4489 = vunpack.c.l.b16 %v3160
    %v4490 = vunpack.c.h.b16 %v3160
    %v4491 = vunpack.c.l.b16 %v3161
    %v4492 = vunpack.c.h.b16 %v3161
    %v4493 = vunpack.c.l.b16 %v3162
    %v4494 = vunpack.c.l.b16 %v3163
    %v4495 = vunpack.c.h.b16 %v3163
    %v4496 = vunpack.c.l.b16 %v3164
    %v4497 = vunpack.c.h.b16 %v3164
    %v4498 = vunpack.c.l.b16 %v3165
    %v4499 = vunpack.c.h.b16 %v3165
    %v4500 = vunpack.c.l.b16 %v3166
    %v4501 = vunpack.c.l.b16 %v3167
    %v4502 = vunpack.c.h.b16 %v3167
    %v4503 = vunpack.c.l.b16 %v3168
    %v4504 = vunpack.c.h.b16 %v3168
    %v4505 = vunpack.c.l.b16 %v3169
    %v4506 = vunpack.c.h.b16 %v3169
    %v4507 = vunpack.c.l.b16 %v3170
    %v4508 = vunpack.c.l.b16 %v3171
    %v4509 = vunpack.c.h.b16 %v3171
    %v4510 = vunpack.c.l.b16 %v3172
    %v4511 = vunpack.c.h.b16 %v3172
    %v4512 = vunpack.c.l.b16 %v3173
    %v4513 = vunpack.c.h.b16 %v3173
    %v4514 = vunpack.c.l.b16 %v3174
    %v4515 = vunpack.c.l.b16 %v3175
    %v4516 = vunpack.c.h.b16 %v3175
    %v4517 = vunpack.c.l.b16 %v3176
    %v4518 = vunpack.c.h.b16 %v3176
    %v4519 = vunpack.c.l.b16 %v3177
    %v4520 = vunpack.c.h.b16 %v3177
    %v4521 = vunpack.c.l.b16 %v3178
    %v4522 = vunpack.c.l.b16 %v3179
    %v4523 = vunpack.c.h.b16 %v3179
    %v4524 = vunpack.c.l.b16 %v3180
    %v4525 = vunpack.c.h.b16 %v3180
    %v4526 = vunpack.c.l.b16 %v3181
    %v4527 = vunpack.c.h.b16 %v3181
    %v4528 = vunpack.c.l.b16 %v3182
    %v4529 = vunpack.c.l.b16 %v3183
    %v4530 = vunpack.c.h.b16 %v3183
    %v4531 = vunpack.c.l.b16 %v3184
    %v4532 = vunpack.c.h.b16 %v3184
    %v4533 = vunpack.c.l.b16 %v3185
    %v4534 = vunpack.c.h.b16 %v3185
    %v4535 = vunpack.c.l.b16 %v3186
    %v4536 = vunpack.c.l.b16 %v3187
    %v4537 = vunpack.c.h.b16 %v3187
    %v4538 = vunpack.c.l.b16 %v3188
    %v4539 = vunpack.c.h.b16 %v3188
    %v4540 = vunpack.c.l.b16 %v3189
    %v4541 = vunpack.c.h.b16 %v3189
    %v4542 = vunpack.c.l.b16 %v3190
    %v4543 = vunpack.c.l.b16 %v3191
    %v4544 = vunpack.c.h.b16 %v3191
    %v4545 = vunpack.c.l.b16 %v3192
    %v4546 = vunpack.c.h.b16 %v3192
    %v4547 = vunpack.c.l.b16 %v3193
    %v4548 = vunpack.c.h.b16 %v3193
    %v4549 = vunpack.c.l.b16 %v3194
    %v4550 = vunpack.c.l.b16 %v3195
    %v4551 = vunpack.c.h.b16 %v3195
    %v4552 = vunpack.c.l.b16 %v3196
    %v4553 = vunpack.c.h.b16 %v3196
    %v4554 = vunpack.c.l.b16 %v3197
    %v4555 = vunpack.c.h.b16 %v3197
    %v4556 = vunpack.c.l.b16 %v3198
    %v4557 = vunpack.c.l.b16 %v3199
    %v4558 = vunpack.c.h.b16 %v3199
    %v4559 = vunpack.c.l.b16 %v3200
    %v4560 = vunpack.c.h.b16 %v3200
    %v4561 = vunpack.c.l.b16 %v3201
    %v4562 = vunpack.c.h.b16 %v3201
    %v4563 = vunpack.c.l.b16 %v3202
    %v4564 = vunpack.c.l.b16 %v3203
    %v4565 = vunpack.c.h.b16 %v3203
    %v4566 = vunpack.c.l.b16 %v3204
    %v4567 = vunpack.c.h.b16 %v3204
    %v4568 = vunpack.c.l.b16 %v3205
    %v4569 = vunpack.c.h.b16 %v3205
    %v4570 = vunpack.c.l.b16 %v3206
    %v4571 = vunpack.c.l.b16 %v3207
    %v4572 = vunpack.c.h.b16 %v3207
    %v4573 = vunpack.c.l.b16 %v3208
    %v4574 = vunpack.c.h.b16 %v3208
    %v4575 = vunpack.c.l.b16 %v3209
    %v4576 = vunpack.c.h.b16 %v3209
    %v4577 = vunpack.c.l.b16 %v3210
    %v4578 = vunpack.c.l.b16 %v3211
    %v4579 = vunpack.c.h.b16 %v3211
    %v4580 = vunpack.c.l.b16 %v3212
    %v4581 = vunpack.c.h.b16 %v3212
    %v4582 = vunpack.c.l.b16 %v3213
    %v4583 = vunpack.c.h.b16 %v3213
    %v4584 = vunpack.c.l.b16 %v3214
    %v4585 = vunpack.c.l.b16 %v3215
    %v4586 = vunpack.c.h.b16 %v3215
    %v4587 = vunpack.c.l.b16 %v3216
    %v4588 = vunpack.c.h.b16 %v3216
    %v4589 = vunpack.c.l.b16 %v3217
    %v4590 = vunpack.c.h.b16 %v3217
    %v4591 = vunpack.c.l.b16 %v3218
    %v4592 = vunpack.c.l.b16 %v3219
    %v4593 = vunpack.c.h.b16 %v3219
    %v4594 = vunpack.c.l.b16 %v3220
    %v4595 = vunpack.c.h.b16 %v3220
    %v4596 = vunpack.c.l.b16 %v3221
    %v4597 = vunpack.c.h.b16 %v3221
    %v4598 = vunpack.c.l.b16 %v3222
    %v4599 = vunpack.c.l.b16 %v3223
    %v4600 = vunpack.c.h.b16 %v3223
    %v4601 = vunpack.c.l.b16 %v3224
    %v4602 = vunpack.c.h.b16 %v3224
    %v4603 = vunpack.c.l.b16 %v3225
    %v4604 = vunpack.c.h.b16 %v3225
    %v4605 = vunpack.c.l.b16 %v3226
    %v4606 = vunpack.c.l.b16 %v3227
    %v4607 = vunpack.c.h.b16 %v3227
    %v4608 = vunpack.c.l.b16 %v3228
    %v4609 = vunpack.c.h.b16 %v3228
    %v4610 = vunpack.c.l.b16 %v3229
    %v4611 = vunpack.c.h.b16 %v3229
    %v4612 = vunpack.c.l.b16 %v3230
    %v4613 = vunpack.c.l.b16 %v3231
    %v4614 = vunpack.c.h.b16 %v3231
    %v4615 = vunpack.c.l.b16 %v3232
    %v4616 = vunpack.c.h.b16 %v3232
    %v4617 = vunpack.c.l.b16 %v3233
    %v4618 = vunpack.c.h.b16 %v3233
    %v4619 = vunpack.c.l.b16 %v3234
    %v4620 = vunpack.c.l.b16 %v3235
    %v4621 = vunpack.c.h.b16 %v3235
    %v4622 = vunpack.c.l.b16 %v3236
    %v4623 = vunpack.c.h.b16 %v3236
    %v4624 = vunpack.c.l.b16 %v3237
    %v4625 = vunpack.c.h.b16 %v3237
    %v4626 = vunpack.c.l.b16 %v3238
    %v4627 = vunpack.c.l.b16 %v3239
    %v4628 = vunpack.c.h.b16 %v3239
    %v4629 = vunpack.c.l.b16 %v3240
    %v4630 = vunpack.c.h.b16 %v3240
    %v4631 = vunpack.c.l.b16 %v3241
    %v4632 = vunpack.c.h.b16 %v3241
    %v4633 = vunpack.c.l.b16 %v3242
    %v4634 = vunpack.c.l.b16 %v3243
    %v4635 = vunpack.c.h.b16 %v3243
    %v4636 = vunpack.c.l.b16 %v3244
    %v4637 = vunpack.c.h.b16 %v3244
    %v4638 = vunpack.c.l.b16 %v3245
    %v4639 = vunpack.c.h.b16 %v3245
    %v4640 = vunpack.c.l.b16 %v3246
    %v4641 = vunpack.c.l.b16 %v3247
    %v4642 = vunpack.c.h.b16 %v3247
    %v4643 = vunpack.c.l.b16 %v3248
    %v4644 = vunpack.c.h.b16 %v3248
    %v4645 = vunpack.c.l.b16 %v3249
    %v4646 = vunpack.c.h.b16 %v3249
    %v4647 = vunpack.c.l.b16 %v3250
    %v4648 = vunpack.c.l.b16 %v3251
    %v4649 = vunpack.c.h.b16 %v3251
    %v4650 = vunpack.c.l.b16 %v3252
    %v4651 = vunpack.c.h.b16 %v3252
    %v4652 = vunpack.c.l.b16 %v3253
    %v4653 = vunpack.c.h.b16 %v3253
    %v4654 = vunpack.c.l.b16 %v3254
    %v4655 = vunpack.c.l.b16 %v3255
    %v4656 = vunpack.c.h.b16 %v3255
    %v4657 = vunpack.c.l.b16 %v3256
    %v4658 = vunpack.c.h.b16 %v3256
    %v4659 = vunpack.c.l.b16 %v3257
    %v4660 = vunpack.c.h.b16 %v3257
    %v4661 = vunpack.c.l.b16 %v3258
    %v4662 = vunpack.c.l.b16 %v3259
    %v4663 = vunpack.c.h.b16 %v3259
    %v4664 = vunpack.c.l.b16 %v3260
    %v4665 = vunpack.c.h.b16 %v3260
    %v4666 = vunpack.c.l.b16 %v3261
    %v4667 = vunpack.c.h.b16 %v3261
    %v4668 = vunpack.c.l.b16 %v3262
    %v4669 = vunpack.c.l.b16 %v3263
    %v4670 = vunpack.c.h.b16 %v3263
    %v4671 = vunpack.c.l.b16 %v3264
    %v4672 = vunpack.c.h.b16 %v3264
    %v4673 = vunpack.c.l.b16 %v3265
    %v4674 = vunpack.c.h.b16 %v3265
    %v4675 = vunpack.c.l.b16 %v3266
    %v4676 = vunpack.c.l.b16 %v3267
    %v4677 = vunpack.c.h.b16 %v3267
    %v4678 = vunpack.c.l.b16 %v3268
    %v4679 = vunpack.c.h.b16 %v3268
    %v4680 = vunpack.c.l.b16 %v3269
    %v4681 = vunpack.c.h.b16 %v3269
    %v4682 = vunpack.c.l.b16 %v3270
    %v4683 = vunpack.c.l.b16 %v3271
    %v4684 = vunpack.c.h.b16 %v3271
    %v4685 = vunpack.c.l.b16 %v3272
    %v4686 = vunpack.c.h.b16 %v3272
    %v4687 = vunpack.c.l.b16 %v3273
    %v4688 = vunpack.c.h.b16 %v3273
    %v4689 = vunpack.c.l.b16 %v3274
    %v4690 = vunpack.c.l.b16 %v3275
    %v4691 = vunpack.c.h.b16 %v3275
    %v4692 = vunpack.c.l.b16 %v3276
    %v4693 = vunpack.c.h.b16 %v3276
    %v4694 = vunpack.c.l.b16 %v3277
    %v4695 = vunpack.c.h.b16 %v3277
    %v4696 = vunpack.c.l.b16 %v3278
    %v4697 = vunpack.c.l.b16 %v3279
    %v4698 = vunpack.c.h.b16 %v3279
    %v4699 = vunpack.c.l.b16 %v3280
    %v4700 = vunpack.c.h.b16 %v3280
    %v4701 = vunpack.c.l.b16 %v3281
    %v4702 = vunpack.c.h.b16 %v3281
    %v4703 = vunpack.c.l.b16 %v3282
    %v4704 = vunpack.c.l.b16 %v3283
    %v4705 = vunpack.c.h.b16 %v3283
    %v4706 = vunpack.c.l.b16 %v3284
    %v4707 = vunpack.c.h.b16 %v3284
    %v4708 = vunpack.c.l.b16 %v3285
    %v4709 = vunpack.c.h.b16 %v3285
    %v4710 = vunpack.c.l.b16 %v3286
    %v4711 = vpack.c.b16 %v3822, %v3815
    %v4712 = vpack.c.b16 %v3823, %v3816
    %v4713 = vpack.c.b16 %v3824, %v3817
    %v4714 = vpack.c.b16 %v3825, %v3818
    %v4715 = vpack.c.b16 %v3826, %v3819
    %v4716 = vpack.c.b16 %v3827, %v3820
    %v4717 = vpack.c.b16 %v3828, %v3821
    %v4718 = vpack.c.b16 %v3836, %v3829
    %v4719 = vpack.c.b16 %v3837, %v3830
    %v4720 = vpack.c.b16 %v3838, %v3831
    %v4721 = vpack.c.b16 %v3839, %v3832
    %v4722 = vpack.c.b16 %v3840, %v3833
    %v4723 = vpack.c.b16 %v3841, %v3834
    %v4724 = vpack.c.b16 %v3842, %v3835
    %v4725 = vpack.c.b16 %v3850, %v3843
    %v4726 = vpack.c.b16 %v3851, %v3844
    %v4727 = vpack.c.b16 %v3852, %v3845
    %v4728 = vpack.c.b16 %v3853, %v3846
    %v4729 = vpack.c.b16 %v3854, %v3847
    %v4730 = vpack.c.b16 %v3855, %v3848
    %v4731 = vpack.c.b16 %v3856, %v3849
    %v4732 = vpack.c.b16 %v3864, %v3857
    %v4733 = vpack.c.b16 %v3865, %v3858
    %v4734 = vpack.c.b16 %v3866, %v3859
    %v4735 = vpack.c.b16 %v3867, %v3860
    %v4736 = vpack.c.b16 %v3868, %v3861
    %v4737 = vpack.c.b16 %v3869, %v3862
    %v4738 = vpack.c.b16 %v3870, %v3863
    %v4739 = vpack.c.b16 %v3878, %v3871
    %v4740 = vpack.c.b16 %v3879, %v3872
    %v4741 = vpack.c.b16 %v3880, %v3873
    %v4742 = vpack.c.b16 %v3881, %v3874
    %v4743 = vpack.c.b16 %v3882, %v3875
    %v4744 = vpack.c.b16 %v3883, %v3876
    %v4745 = vpack.c.b16 %v3884, %v3877
    %v4746 = vpack.c.b16 %v3892, %v3885
    %v4747 = vpack.c.b16 %v3893, %v3886
    %v4748 = vpack.c.b16 %v3894, %v3887
    %v4749 = vpack.c.b16 %v3895, %v3888
    %v4750 = vpack.c.b16 %v3896, %v3889
    %v4751 = vpack.c.b16 %v3897, %v3890
    %v4752 = vpack.c.b16 %v3898, %v3891
    %v4753 = vpack.c.b16 %v3906, %v3899
    %v4754 = vpack.c.b16 %v3907, %v3900
    %v4755 = vpack.c.b16 %v3908, %v3901
    %v4756 = vpack.c.b16 %v3909, %v3902
    %v4757 = vpack.c.b16 %v3910, %v3903
    %v4758 = vpack.c.b16 %v3911, %v3904
    %v4759 = vpack.c.b16 %v3912, %v3905
    %v4760 = vpack.c.b16 %v3920, %v3913
    %v4761 = vpack.c.b16 %v3921, %v3914
    %v4762 = vpack.c.b16 %v3922, %v3915
    %v4763 = vpack.c.b16 %v3923, %v3916
    %v4764 = vpack.c.b16 %v3924, %v3917
    %v4765 = vpack.c.b16 %v3925, %v3918
    %v4766 = vpack.c.b16 %v3926, %v3919
    %v4767 = vpack.c.b16 %v3934, %v3927
    %v4768 = vpack.c.b16 %v3935, %v3928
    %v4769 = vpack.c.b16 %v3936, %v3929
    %v4770 = vpack.c.b16 %v3937, %v3930
    %v4771 = vpack.c.b16 %v3938, %v3931
    %v4772 = vpack.c.b16 %v3939, %v3932
    %v4773 = vpack.c.b16 %v3940, %v3933
    %v4774 = vpack.c.b16 %v3948, %v3941
    %v4775 = vpack.c.b16 %v3949, %v3942
    %v4776 = vpack.c.b16 %v3950, %v3943
    %v4777 = vpack.c.b16 %v3951, %v3944
    %v4778 = vpack.c.b16 %v3952, %v3945
    %v4779 = vpack.c.b16 %v3953, %v3946
    %v4780 = vpack.c.b16 %v3954, %v3947
    %v4781 = vpack.c.b16 %v3962, %v3955
    %v4782 = vpack.c.b16 %v3963, %v3956
    %v4783 = vpack.c.b16 %v3964, %v3957
    %v4784 = vpack.c.b16 %v3965, %v3958
    %v4785 = vpack.c.b16 %v3966, %v3959
    %v4786 = vpack.c.b16 %v3967, %v3960
    %v4787 = vpack.c.b16 %v3968, %v3961
    %v4788 = vpack.c.b16 %v3976, %v3969
    %v4789 = vpack.c.b16 %v3977, %v3970
    %v4790 = vpack.c.b16 %v3978, %v3971
    %v4791 = vpack.c.b16 %v3979, %v3972
    %v4792 = vpack.c.b16 %v3980, %v3973
    %v4793 = vpack.c.b16 %v3981, %v3974
    %v4794 = vpack.c.b16 %v3982, %v3975
    %v4795 = vpack.c.b16 %v3990, %v3983
    %v4796 = vpack.c.b16 %v3991, %v3984
    %v4797 = vpack.c.b16 %v3992, %v3985
    %v4798 = vpack.c.b16 %v3993, %v3986
    %v4799 = vpack.c.b16 %v3994, %v3987
    %v4800 = vpack.c.b16 %v3995, %v3988
    %v4801 = vpack.c.b16 %v3996, %v3989
    %v4802 = vpack.c.b16 %v4004, %v3997
    %v4803 = vpack.c.b16 %v4005, %v3998
    %v4804 = vpack.c.b16 %v4006, %v3999
    %v4805 = vpack.c.b16 %v4007, %v4000
    %v4806 = vpack.c.b16 %v4008, %v4001
    %v4807 = vpack.c.b16 %v4009, %v4002
    %v4808 = vpack.c.b16 %v4010, %v4003
    %v4809 = vpack.c.b16 %v4018, %v4011
    %v4810 = vpack.c.b16 %v4019, %v4012
    %v4811 = vpack.c.b16 %v4020, %v4013
    %v4812 = vpack.c.b16 %v4021, %v4014
    %v4813 = vpack.c.b16 %v4022, %v4015
    %v4814 = vpack.c.b16 %v4023, %v4016
    %v4815 = vpack.c.b16 %v4024, %v4017
    %v4816 = vpack.c.b16 %v4032, %v4025
    %v4817 = vpack.c.b16 %v4033, %v4026
    %v4818 = vpack.c.b16 %v4034, %v4027
    %v4819 = vpack.c.b16 %v4035, %v4028
    %v4820 = vpack.c.b16 %v4036, %v4029
    %v4821 = vpack.c.b16 %v4037, %v4030
    %v4822 = vpack.c.b16 %v4038, %v4031
    %v4823 = vpack.c.b16 %v4046, %v4039
    %v4824 = vpack.c.b16 %v4047, %v4040
    %v4825 = vpack.c.b16 %v4048, %v4041
    %v4826 = vpack.c.b16 %v4049, %v4042
    %v4827 = vpack.c.b16 %v4050, %v4043
    %v4828 = vpack.c.b16 %v4051, %v4044
    %v4829 = vpack.c.b16 %v4052, %v4045
    %v4830 = vpack.c.b16 %v4060, %v4053
    %v4831 = vpack.c.b16 %v4061, %v4054
    %v4832 = vpack.c.b16 %v4062, %v4055
    %v4833 = vpack.c.b16 %v4063, %v4056
    %v4834 = vpack.c.b16 %v4064, %v4057
    %v4835 = vpack.c.b16 %v4065, %v4058
    %v4836 = vpack.c.b16 %v4066, %v4059
    %v4837 = vpack.c.b16 %v4074, %v4067
    %v4838 = vpack.c.b16 %v4075, %v4068
    %v4839 = vpack.c.b16 %v4076, %v4069
    %v4840 = vpack.c.b16 %v4077, %v4070
    %v4841 = vpack.c.b16 %v4078, %v4071
    %v4842 = vpack.c.b16 %v4079, %v4072
    %v4843 = vpack.c.b16 %v4080, %v4073
    %v4844 = vpack.c.b16 %v4088, %v4081
    %v4845 = vpack.c.b16 %v4089, %v4082
    %v4846 = vpack.c.b16 %v4090, %v4083
    %v4847 = vpack.c.b16 %v4091, %v4084
    %v4848 = vpack.c.b16 %v4092, %v4085
    %v4849 = vpack.c.b16 %v4093, %v4086
    %v4850 = vpack.c.b16 %v4094, %v4087
    %v4851 = vpack.c.b16 %v4102, %v4095
    %v4852 = vpack.c.b16 %v4103, %v4096
    %v4853 = vpack.c.b16 %v4104, %v4097
    %v4854 = vpack.c.b16 %v4105, %v4098
    %v4855 = vpack.c.b16 %v4106, %v4099
    %v4856 = vpack.c.b16 %v4107, %v4100
    %v4857 = vpack.c.b16 %v4108, %v4101
    %v4858 = vpack.c.b16 %v4116, %v4109
    %v4859 = vpack.c.b16 %v4117, %v4110
    %v4860 = vpack.c.b16 %v4118, %v4111
    %v4861 = vpack.c.b16 %v4119, %v4112
    %v4862 = vpack.c.b16 %v4120, %v4113
    %v4863 = vpack.c.b16 %v4121, %v4114
    %v4864 = vpack.c.b16 %v4122, %v4115
    %v4865 = vpack.c.b16 %v4130, %v4123
    %v4866 = vpack.c.b16 %v4131, %v4124
    %v4867 = vpack.c.b16 %v4132, %v4125
    %v4868 = vpack.c.b16 %v4133, %v4126
    %v4869 = vpack.c.b16 %v4134, %v4127
    %v4870 = vpack.c.b16 %v4135, %v4128
    %v4871 = vpack.c.b16 %v4136, %v4129
    %v4872 = vpack.c.b16 %v4144, %v4137
    %v4873 = vpack.c.b16 %v4145, %v4138
    %v4874 = vpack.c.b16 %v4146, %v4139
    %v4875 = vpack.c.b16 %v4147, %v4140
    %v4876 = vpack.c.b16 %v4148, %v4141
    %v4877 = vpack.c.b16 %v4149, %v4142
    %v4878 = vpack.c.b16 %v4150, %v4143
    %v4879 = vpack.c.b16 %v4158, %v4151
    %v4880 = vpack.c.b16 %v4159, %v4152
    %v4881 = vpack.c.b16 %v4160, %v4153
    %v4882 = vpack.c.b16 %v4161, %v4154
    %v4883 = vpack.c.b16 %v4162, %v4155
    %v4884 = vpack.c.b16 %v4163, %v4156
    %v4885 = vpack.c.b16 %v4164, %v4157
    %v4886 = vpack.c.b16 %v4172, %v4165
    %v4887 = vpack.c.b16 %v4173, %v4166
    %v4888 = vpack.c.b16 %v4174, %v4167
    %v4889 = vpack.c.b16 %v4175, %v4168
    %v4890 = vpack.c.b16 %v4176, %v4169
    %v4891 = vpack.c.b16 %v4177, %v4170
    %v4892 = vpack.c.b16 %v4178, %v4171
    %v4893 = vpack.c.b16 %v4186, %v4179
    %v4894 = vpack.c.b16 %v4187, %v4180
    %v4895 = vpack.c.b16 %v4188, %v4181
    %v4896 = vpack.c.b16 %v4189, %v4182
    %v4897 = vpack.c.b16 %v4190, %v4183
    %v4898 = vpack.c.b16 %v4191, %v4184
    %v4899 = vpack.c.b16 %v4192, %v4185
    %v4900 = vpack.c.b16 %v4200, %v4193
    %v4901 = vpack.c.b16 %v4201, %v4194
    %v4902 = vpack.c.b16 %v4202, %v4195
    %v4903 = vpack.c.b16 %v4203, %v4196
    %v4904 = vpack.c.b16 %v4204, %v4197
    %v4905 = vpack.c.b16 %v4205, %v4198
    %v4906 = vpack.c.b16 %v4206, %v4199
    %v4907 = vpack.c.b16 %v4214, %v4207
    %v4908 = vpack.c.b16 %v4215, %v4208
    %v4909 = vpack.c.b16 %v4216, %v4209
    %v4910 = vpack.c.b16 %v4217, %v4210
    %v4911 = vpack.c.b16 %v4218, %v4211
    %v4912 = vpack.c.b16 %v4219, %v4212
    %v4913 = vpack.c.b16 %v4220, %v4213
    %v4914 = vpack.c.b16 %v4228, %v4221
    %v4915 = vpack.c.b16 %v4229, %v4222
    %v4916 = vpack.c.b16 %v4230, %v4223
    %v4917 = vpack.c.b16 %v4231, %v4224
    %v4918 = vpack.c.b16 %v4232, %v4225
    %v4919 = vpack.c.b16 %v4233, %v4226
    %v4920 = vpack.c.b16 %v4234, %v4227
    %v4921 = vpack.c.b16 %v4242, %v4235
    %v4922 = vpack.c.b16 %v4243, %v4236
    %v4923 = vpack.c.b16 %v4244, %v4237
    %v4924 = vpack.c.b16 %v4245, %v4238
    %v4925 = vpack.c.b16 %v4246, %v4239
    %v4926 = vpack.c.b16 %v4247, %v4240
    %v4927 = vpack.c.b16 %v4248, %v4241
    %v4928 = vpack.c.b16 %v4256, %v4249
    %v4929 = vpack.c.b16 %v4257, %v4250
    %v4930 = vpack.c.b16 %v4258, %v4251
    %v4931 = vpack.c.b16 %v4259, %v4252
    %v4932 = vpack.c.b16 %v4260, %v4253
    %v4933 = vpack.c.b16 %v4261, %v4254
    %v4934 = vpack.c.b16 %v4262, %v4255
    %v4935 = vpack.c.b16 %v4270, %v4263
    %v4936 = vpack.c.b16 %v4271, %v4264
    %v4937 = vpack.c.b16 %v4272, %v4265
    %v4938 = vpack.c.b16 %v4273, %v4266
    %v4939 = vpack.c.b16 %v4274, %v4267
    %v4940 = vpack.c.b16 %v4275, %v4268
    %v4941 = vpack.c.b16 %v4276, %v4269
    %v4942 = vpack.c.b16 %v4284, %v4277
    %v4943 = vpack.c.b16 %v4285, %v4278
    %v4944 = vpack.c.b16 %v4286, %v4279
    %v4945 = vpack.c.b16 %v4287, %v4280
    %v4946 = vpack.c.b16 %v4288, %v4281
    %v4947 = vpack.c.b16 %v4289, %v4282
    %v4948 = vpack.c.b16 %v4290, %v4283
    %v4949 = vpack.c.b16 %v4298, %v4291
    %v4950 = vpack.c.b16 %v4299, %v4292
    %v4951 = vpack.c.b16 %v4300, %v4293
    %v4952 = vpack.c.b16 %v4301, %v4294
    %v4953 = vpack.c.b16 %v4302, %v4295
    %v4954 = vpack.c.b16 %v4303, %v4296
    %v4955 = vpack.c.b16 %v4304, %v4297
    %v4956 = vpack.c.b16 %v4312, %v4305
    %v4957 = vpack.c.b16 %v4313, %v4306
    %v4958 = vpack.c.b16 %v4314, %v4307
    %v4959 = vpack.c.b16 %v4315, %v4308
    %v4960 = vpack.c.b16 %v4316, %v4309
    %v4961 = vpack.c.b16 %v4317, %v4310
    %v4962 = vpack.c.b16 %v4318, %v4311
    %v4963 = vpack.c.b16 %v4326, %v4319
    %v4964 = vpack.c.b16 %v4327, %v4320
    %v4965 = vpack.c.b16 %v4328, %v4321
    %v4966 = vpack.c.b16 %v4329, %v4322
    %v4967 = vpack.c.b16 %v4330, %v4323
    %v4968 = vpack.c.b16 %v4331, %v4324
    %v4969 = vpack.c.b16 %v4332, %v4325
    %v4970 = vpack.c.b16 %v4340, %v4333
    %v4971 = vpack.c.b16 %v4341, %v4334
    %v4972 = vpack.c.b16 %v4342, %v4335
    %v4973 = vpack.c.b16 %v4343, %v4336
    %v4974 = vpack.c.b16 %v4344, %v4337
    %v4975 = vpack.c.b16 %v4345, %v4338
    %v4976 = vpack.c.b16 %v4346, %v4339
    %v4977 = vpack.c.b16 %v4354, %v4347
    %v4978 = vpack.c.b16 %v4355, %v4348
    %v4979 = vpack.c.b16 %v4356, %v4349
    %v4980 = vpack.c.b16 %v4357, %v4350
    %v4981 = vpack.c.b16 %v4358, %v4351
    %v4982 = vpack.c.b16 %v4359, %v4352
    %v4983 = vpack.c.b16 %v4360, %v4353
    %v4984 = vpack.c.b16 %v4368, %v4361
    %v4985 = vpack.c.b16 %v4369, %v4362
    %v4986 = vpack.c.b16 %v4370, %v4363
    %v4987 = vpack.c.b16 %v4371, %v4364
    %v4988 = vpack.c.b16 %v4372, %v4365
    %v4989 = vpack.c.b16 %v4373, %v4366
    %v4990 = vpack.c.b16 %v4374, %v4367
    %v4991 = vpack.c.b16 %v4382, %v4375
    %v4992 = vpack.c.b16 %v4383, %v4376
    %v4993 = vpack.c.b16 %v4384, %v4377
    %v4994 = vpack.c.b16 %v4385, %v4378
    %v4995 = vpack.c.b16 %v4386, %v4379
    %v4996 = vpack.c.b16 %v4387, %v4380
    %v4997 = vpack.c.b16 %v4388, %v4381
    %v4998 = vpack.c.b16 %v4396, %v4389
    %v4999 = vpack.c.b16 %v4397, %v4390
    %v5000 = vpack.c.b16 %v4398, %v4391
    %v5001 = vpack.c.b16 %v4399, %v4392
    %v5002 = vpack.c.b16 %v4400, %v4393
    %v5003 = vpack.c.b16 %v4401, %v4394
    %v5004 = vpack.c.b16 %v4402, %v4395
    %v5005 = vpack.c.b16 %v4410, %v4403
    %v5006 = vpack.c.b16 %v4411, %v4404
    %v5007 = vpack.c.b16 %v4412, %v4405
    %v5008 = vpack.c.b16 %v4413, %v4406
    %v5009 = vpack.c.b16 %v4414, %v4407
    %v5010 = vpack.c.b16 %v4415, %v4408
    %v5011 = vpack.c.b16 %v4416, %v4409
    %v5012 = vpack.c.b16 %v4424, %v4417
    %v5013 = vpack.c.b16 %v4425, %v4418
    %v5014 = vpack.c.b16 %v4426, %v4419
    %v5015 = vpack.c.b16 %v4427, %v4420
    %v5016 = vpack.c.b16 %v4428, %v4421
    %v5017 = vpack.c.b16 %v4429, %v4422
    %v5018 = vpack.c.b16 %v4430, %v4423
    %v5019 = vpack.c.b16 %v4438, %v4431
    %v5020 = vpack.c.b16 %v4439, %v4432
    %v5021 = vpack.c.b16 %v4440, %v4433
    %v5022 = vpack.c.b16 %v4441, %v4434
    %v5023 = vpack.c.b16 %v4442, %v4435
    %v5024 = vpack.c.b16 %v4443, %v4436
    %v5025 = vpack.c.b16 %v4444, %v4437
    %v5026 = vpack.c.b16 %v4452, %v4445
    %v5027 = vpack.c.b16 %v4453, %v4446
    %v5028 = vpack.c.b16 %v4454, %v4447
    %v5029 = vpack.c.b16 %v4455, %v4448
    %v5030 = vpack.c.b16 %v4456, %v4449
    %v5031 = vpack.c.b16 %v4457, %v4450
    %v5032 = vpack.c.b16 %v4458, %v4451
    %v5033 = vpack.c.b16 %v4466, %v4459
    %v5034 = vpack.c.b16 %v4467, %v4460
    %v5035 = vpack.c.b16 %v4468, %v4461
    %v5036 = vpack.c.b16 %v4469, %v4462
    %v5037 = vpack.c.b16 %v4470, %v4463
    %v5038 = vpack.c.b16 %v4471, %v4464
    %v5039 = vpack.c.b16 %v4472, %v4465
    %v5040 = vpack.c.b16 %v4480, %v4473
    %v5041 = vpack.c.b16 %v4481, %v4474
    %v5042 = vpack.c.b16 %v4482, %v4475
    %v5043 = vpack.c.b16 %v4483, %v4476
    %v5044 = vpack.c.b16 %v4484, %v4477
    %v5045 = vpack.c.b16 %v4485, %v4478
    %v5046 = vpack.c.b16 %v4486, %v4479
    %v5047 = vpack.c.b16 %v4494, %v4487
    %v5048 = vpack.c.b16 %v4495, %v4488
    %v5049 = vpack.c.b16 %v4496, %v4489
    %v5050 = vpack.c.b16 %v4497, %v4490
    %v5051 = vpack.c.b16 %v4498, %v4491
    %v5052 = vpack.c.b16 %v4499, %v4492
    %v5053 = vpack.c.b16 %v4500, %v4493
    %v5054 = vpack.c.b16 %v4508, %v4501
    %v5055 = vpack.c.b16 %v4509, %v4502
    %v5056 = vpack.c.b16 %v4510, %v4503
    %v5057 = vpack.c.b16 %v4511, %v4504
    %v5058 = vpack.c.b16 %v4512, %v4505
    %v5059 = vpack.c.b16 %v4513, %v4506
    %v5060 = vpack.c.b16 %v4514, %v4507
    %v5061 = vpack.c.b16 %v4522, %v4515
    %v5062 = vpack.c.b16 %v4523, %v4516
    %v5063 = vpack.c.b16 %v4524, %v4517
    %v5064 = vpack.c.b16 %v4525, %v4518
    %v5065 = vpack.c.b16 %v4526, %v4519
    %v5066 = vpack.c.b16 %v4527, %v4520
    %v5067 = vpack.c.b16 %v4528, %v4521
    %v5068 = vpack.c.b16 %v4536, %v4529
    %v5069 = vpack.c.b16 %v4537, %v4530
    %v5070 = vpack.c.b16 %v4538, %v4531
    %v5071 = vpack.c.b16 %v4539, %v4532
    %v5072 = vpack.c.b16 %v4540, %v4533
    %v5073 = vpack.c.b16 %v4541, %v4534
    %v5074 = vpack.c.b16 %v4542, %v4535
    %v5075 = vpack.c.b16 %v4550, %v4543
    %v5076 = vpack.c.b16 %v4551, %v4544
    %v5077 = vpack.c.b16 %v4552, %v4545
    %v5078 = vpack.c.b16 %v4553, %v4546
    %v5079 = vpack.c.b16 %v4554, %v4547
    %v5080 = vpack.c.b16 %v4555, %v4548
    %v5081 = vpack.c.b16 %v4556, %v4549
    %v5082 = vpack.c.b16 %v4564, %v4557
    %v5083 = vpack.c.b16 %v4565, %v4558
    %v5084 = vpack.c.b16 %v4566, %v4559
    %v5085 = vpack.c.b16 %v4567, %v4560
    %v5086 = vpack.c.b16 %v4568, %v4561
    %v5087 = vpack.c.b16 %v4569, %v4562
    %v5088 = vpack.c.b16 %v4570, %v4563
    %v5089 = vpack.c.b16 %v4578, %v4571
    %v5090 = vpack.c.b16 %v4579, %v4572
    %v5091 = vpack.c.b16 %v4580, %v4573
    %v5092 = vpack.c.b16 %v4581, %v4574
    %v5093 = vpack.c.b16 %v4582, %v4575
    %v5094 = vpack.c.b16 %v4583, %v4576
    %v5095 = vpack.c.b16 %v4584, %v4577
    %v5096 = vpack.c.b16 %v4592, %v4585
    %v5097 = vpack.c.b16 %v4593, %v4586
    %v5098 = vpack.c.b16 %v4594, %v4587
    %v5099 = vpack.c.b16 %v4595, %v4588
    %v5100 = vpack.c.b16 %v4596, %v4589
    %v5101 = vpack.c.b16 %v4597, %v4590
    %v5102 = vpack.c.b16 %v4598, %v4591
    %v5103 = vpack.c.b16 %v4606, %v4599
    %v5104 = vpack.c.b16 %v4607, %v4600
    %v5105 = vpack.c.b16 %v4608, %v4601
    %v5106 = vpack.c.b16 %v4609, %v4602
    %v5107 = vpack.c.b16 %v4610, %v4603
    %v5108 = vpack.c.b16 %v4611, %v4604
    %v5109 = vpack.c.b16 %v4612, %v4605
    %v5110 = vpack.c.b16 %v4620, %v4613
    %v5111 = vpack.c.b16 %v4621, %v4614
    %v5112 = vpack.c.b16 %v4622, %v4615
    %v5113 = vpack.c.b16 %v4623, %v4616
    %v5114 = vpack.c.b16 %v4624, %v4617
    %v5115 = vpack.c.b16 %v4625, %v4618
    %v5116 = vpack.c.b16 %v4626, %v4619
    %v5117 = vpack.c.b16 %v4634, %v4627
    %v5118 = vpack.c.b16 %v4635, %v4628
    %v5119 = vpack.c.b16 %v4636, %v4629
    %v5120 = vpack.c.b16 %v4637, %v4630
    %v5121 = vpack.c.b16 %v4638, %v4631
    %v5122 = vpack.c.b16 %v4639, %v4632
    %v5123 = vpack.c.b16 %v4640, %v4633
    %v5124 = vpack.c.b16 %v4648, %v4641
    %v5125 = vpack.c.b16 %v4649, %v4642
    %v5126 = vpack.c.b16 %v4650, %v4643
    %v5127 = vpack.c.b16 %v4651, %v4644
    %v5128 = vpack.c.b16 %v4652, %v4645
    %v5129 = vpack.c.b16 %v4653, %v4646
    %v5130 = vpack.c.b16 %v4654, %v4647
    %v5131 = vpack.c.b16 %v4662, %v4655
    %v5132 = vpack.c.b16 %v4663, %v4656
    %v5133 = vpack.c.b16 %v4664, %v4657
    %v5134 = vpack.c.b16 %v4665, %v4658
    %v5135 = vpack.c.b16 %v4666, %v4659
    %v5136 = vpack.c.b16 %v4667, %v4660
    %v5137 = vpack.c.b16 %v4668, %v4661
    %v5138 = vpack.c.b16 %v4676, %v4669
    %v5139 = vpack.c.b16 %v4677, %v4670
    %v5140 = vpack.c.b16 %v4678, %v4671
    %v5141 = vpack.c.b16 %v4679, %v4672
    %v5142 = vpack.c.b16 %v4680, %v4673
    %v5143 = vpack.c.b16 %v4681, %v4674
    %v5144 = vpack.c.b16 %v4682, %v4675
    %v5145 = vpack.c.b16 %v4690, %v4683
    %v5146 = vpack.c.b16 %v4691, %v4684
    %v5147 = vpack.c.b16 %v4692, %v4685
    %v5148 = vpack.c.b16 %v4693, %v4686
    %v5149 = vpack.c.b16 %v4694, %v4687
    %v5150 = vpack.c.b16 %v4695, %v4688
    %v5151 = vpack.c.b16 %v4696, %v4689
    %v5152 = vpack.c.b16 %v4704, %v4697
    %v5153 = vpack.c.b16 %v4705, %v4698
    %v5154 = vpack.c.b16 %v4706, %v4699
    %v5155 = vpack.c.b16 %v4707, %v4700
    %v5156 = vpack.c.b16 %v4708, %v4701
    %v5157 = vpack.c.b16 %v4709, %v4702
    %v5158 = vpack.c.b16 %v4710, %v4703
    %5607 = vmatpush.bf16.msra.mxu0 %v4760
    %5608 = vmatpush.bf16.msra.mxu0 %v4753
    %5609 = vmatpush.bf16.msra.mxu0 %v4746
    %5610 = vmatpush.bf16.msra.mxu0 %v4739
    %5611 = vmatpush.bf16.msra.mxu0 %v4732
    %5612 = vmatpush.bf16.msra.mxu0 %v4725
    %5613 = vmatpush.bf16.msra.mxu0 %v4718
    %5614 = vmatpush.bf16.msra.mxu0 %v4711
    %5615 = vmatmul.bf16.gmra.mxu0 %v2767
    %v5616 = vpop.f32.mrf.mxu0
    %v5617 = vadd.f32 %v3289, %v5616
    %v5618 = vpop.f32.mrf.mxu0
    %5619 = vdwg.mxu0
    %5620 = vmatpush.bf16.msra.mxu0 %v4816
    %5621 = vmatpush.bf16.msra.mxu0 %v4809
    %5622 = vmatpush.bf16.msra.mxu0 %v4802
    %5623 = vmatpush.bf16.msra.mxu0 %v4795
    %5624 = vmatpush.bf16.msra.mxu0 %v4788
    %5625 = vmatpush.bf16.msra.mxu0 %v4781
    %5626 = vmatpush.bf16.msra.mxu0 %v4774
    %5627 = vmatpush.bf16.msra.mxu0 %v4767
    %5628 = vmatmul.bf16.gmra.mxu0 %v2768
    %v5629 = vpop.f32.mrf.mxu0
    %v5630 = vadd.f32 %v5617, %v5629
    %v5631 = vpop.f32.mrf.mxu0
    %5632 = vdwg.mxu0
    %5633 = vmatpush.bf16.msra.mxu0 %v4872
    %5634 = vmatpush.bf16.msra.mxu0 %v4865
    %5635 = vmatpush.bf16.msra.mxu0 %v4858
    %5636 = vmatpush.bf16.msra.mxu0 %v4851
    %5637 = vmatpush.bf16.msra.mxu0 %v4844
    %5638 = vmatpush.bf16.msra.mxu0 %v4837
    %5639 = vmatpush.bf16.msra.mxu0 %v4830
    %5640 = vmatpush.bf16.msra.mxu0 %v4823
    %5641 = vmatmul.bf16.gmra.mxu0 %v2769
    %v5642 = vpop.f32.mrf.mxu0
    %v5643 = vadd.f32 %v5630, %v5642
    %v5644 = vpop.f32.mrf.mxu0
    %5645 = vdwg.mxu0
    %5646 = vmatpush.bf16.msra.mxu0 %v4928
    %5647 = vmatpush.bf16.msra.mxu0 %v4921
    %5648 = vmatpush.bf16.msra.mxu0 %v4914
    %5649 = vmatpush.bf16.msra.mxu0 %v4907
    %5650 = vmatpush.bf16.msra.mxu0 %v4900
    %5651 = vmatpush.bf16.msra.mxu0 %v4893
    %5652 = vmatpush.bf16.msra.mxu0 %v4886
    %5653 = vmatpush.bf16.msra.mxu0 %v4879
    %5654 = vmatmul.bf16.gmra.mxu0 %v2770
    %v5655 = vpop.f32.mrf.mxu0
    %v5656 = vadd.f32 %v5643, %v5655
    %v5657 = vpop.f32.mrf.mxu0
    %5658 = vdwg.mxu0
    %5659 = vmatpush.bf16.msra.mxu0 %v4984
    %5660 = vmatpush.bf16.msra.mxu0 %v4977
    %5661 = vmatpush.bf16.msra.mxu0 %v4970
    %5662 = vmatpush.bf16.msra.mxu0 %v4963
    %5663 = vmatpush.bf16.msra.mxu0 %v4956
    %5664 = vmatpush.bf16.msra.mxu0 %v4949
    %5665 = vmatpush.bf16.msra.mxu0 %v4942
    %5666 = vmatpush.bf16.msra.mxu0 %v4935
    %5667 = vmatmul.bf16.gmra.mxu0 %v2771
    %v5668 = vpop.f32.mrf.mxu0
    %v5669 = vadd.f32 %v5656, %v5668
    %v5670 = vpop.f32.mrf.mxu0
    %5671 = vdwg.mxu0
    %5672 = vmatpush.bf16.msra.mxu0 %v5040
    %5673 = vmatpush.bf16.msra.mxu0 %v5033
    %5674 = vmatpush.bf16.msra.mxu0 %v5026
    %5675 = vmatpush.bf16.msra.mxu0 %v5019
    %5676 = vmatpush.bf16.msra.mxu0 %v5012
    %5677 = vmatpush.bf16.msra.mxu0 %v5005
    %5678 = vmatpush.bf16.msra.mxu0 %v4998
    %5679 = vmatpush.bf16.msra.mxu0 %v4991
    %5680 = vmatmul.bf16.gmra.mxu0 %v2772
    %v5681 = vpop.f32.mrf.mxu0
    %v5682 = vadd.f32 %v5669, %v5681
    %v5683 = vpop.f32.mrf.mxu0
    %5684 = vdwg.mxu0
    %5685 = vmatpush.bf16.msra.mxu0 %v5096
    %5686 = vmatpush.bf16.msra.mxu0 %v5089
    %5687 = vmatpush.bf16.msra.mxu0 %v5082
    %5688 = vmatpush.bf16.msra.mxu0 %v5075
    %5689 = vmatpush.bf16.msra.mxu0 %v5068
    %5690 = vmatpush.bf16.msra.mxu0 %v5061
    %5691 = vmatpush.bf16.msra.mxu0 %v5054
    %5692 = vmatpush.bf16.msra.mxu0 %v5047
    %5693 = vmatmul.bf16.gmra.mxu0 %v2773
    %v5694 = vpop.f32.mrf.mxu0
    %v5695 = vadd.f32 %v5682, %v5694
    %v5696 = vpop.f32.mrf.mxu0
    %5697 = vdwg.mxu0
    %5698 = vmatpush.bf16.msra.mxu0 %v5152
    %5699 = vmatpush.bf16.msra.mxu0 %v5145
    %5700 = vmatpush.bf16.msra.mxu0 %v5138
    %5701 = vmatpush.bf16.msra.mxu0 %v5131
    %5702 = vmatpush.bf16.msra.mxu0 %v5124
    %5703 = vmatpush.bf16.msra.mxu0 %v5117
    %5704 = vmatpush.bf16.msra.mxu0 %v5110
    %5705 = vmatpush.bf16.msra.mxu0 %v5103
    %5706 = vmatmul.bf16.gmra.mxu0 %v2774
    %v5707 = vpop.f32.mrf.mxu0
    %v5708 = vadd.f32 %v5695, %v5707
    %v5709 = vpop.f32.mrf.mxu0
    %5710 = vdwg.mxu0
    %5711 = vmatpush.bf16.msra.mxu0 %v4761
    %5712 = vmatpush.bf16.msra.mxu0 %v4754
    %5713 = vmatpush.bf16.msra.mxu0 %v4747
    %5714 = vmatpush.bf16.msra.mxu0 %v4740
    %5715 = vmatpush.bf16.msra.mxu0 %v4733
    %5716 = vmatpush.bf16.msra.mxu0 %v4726
    %5717 = vmatpush.bf16.msra.mxu0 %v4719
    %5718 = vmatpush.bf16.msra.mxu0 %v4712
    %5719 = vmatmul.bf16.gmra.mxu0 %v2767
    %v5720 = vpop.f32.mrf.mxu0
    %v5721 = vadd.f32 %v3290, %v5720
    %v5722 = vpop.f32.mrf.mxu0
    %5723 = vdwg.mxu0
    %5724 = vmatpush.bf16.msra.mxu0 %v4817
    %5725 = vmatpush.bf16.msra.mxu0 %v4810
    %5726 = vmatpush.bf16.msra.mxu0 %v4803
    %5727 = vmatpush.bf16.msra.mxu0 %v4796
    %5728 = vmatpush.bf16.msra.mxu0 %v4789
    %5729 = vmatpush.bf16.msra.mxu0 %v4782
    %5730 = vmatpush.bf16.msra.mxu0 %v4775
    %5731 = vmatpush.bf16.msra.mxu0 %v4768
    %5732 = vmatmul.bf16.gmra.mxu0 %v2768
    %v5733 = vpop.f32.mrf.mxu0
    %v5734 = vadd.f32 %v5721, %v5733
    %v5735 = vpop.f32.mrf.mxu0
    %5736 = vdwg.mxu0
    %5737 = vmatpush.bf16.msra.mxu0 %v4873
    %5738 = vmatpush.bf16.msra.mxu0 %v4866
    %5739 = vmatpush.bf16.msra.mxu0 %v4859
    %5740 = vmatpush.bf16.msra.mxu0 %v4852
    %5741 = vmatpush.bf16.msra.mxu0 %v4845
    %5742 = vmatpush.bf16.msra.mxu0 %v4838
    %5743 = vmatpush.bf16.msra.mxu0 %v4831
    %5744 = vmatpush.bf16.msra.mxu0 %v4824
    %5745 = vmatmul.bf16.gmra.mxu0 %v2769
    %v5746 = vpop.f32.mrf.mxu0
    %v5747 = vadd.f32 %v5734, %v5746
    %v5748 = vpop.f32.mrf.mxu0
    %5749 = vdwg.mxu0
    %5750 = vmatpush.bf16.msra.mxu0 %v4929
    %5751 = vmatpush.bf16.msra.mxu0 %v4922
    %5752 = vmatpush.bf16.msra.mxu0 %v4915
    %5753 = vmatpush.bf16.msra.mxu0 %v4908
    %5754 = vmatpush.bf16.msra.mxu0 %v4901
    %5755 = vmatpush.bf16.msra.mxu0 %v4894
    %5756 = vmatpush.bf16.msra.mxu0 %v4887
    %5757 = vmatpush.bf16.msra.mxu0 %v4880
    %5758 = vmatmul.bf16.gmra.mxu0 %v2770
    %v5759 = vpop.f32.mrf.mxu0
    %v5760 = vadd.f32 %v5747, %v5759
    %v5761 = vpop.f32.mrf.mxu0
    %5762 = vdwg.mxu0
    %5763 = vmatpush.bf16.msra.mxu0 %v4985
    %5764 = vmatpush.bf16.msra.mxu0 %v4978
    %5765 = vmatpush.bf16.msra.mxu0 %v4971
    %5766 = vmatpush.bf16.msra.mxu0 %v4964
    %5767 = vmatpush.bf16.msra.mxu0 %v4957
    %5768 = vmatpush.bf16.msra.mxu0 %v4950
    %5769 = vmatpush.bf16.msra.mxu0 %v4943
    %5770 = vmatpush.bf16.msra.mxu0 %v4936
    %5771 = vmatmul.bf16.gmra.mxu0 %v2771
    %v5772 = vpop.f32.mrf.mxu0
    %v5773 = vadd.f32 %v5760, %v5772
    %v5774 = vpop.f32.mrf.mxu0
    %5775 = vdwg.mxu0
    %5776 = vmatpush.bf16.msra.mxu0 %v5041
    %5777 = vmatpush.bf16.msra.mxu0 %v5034
    %5778 = vmatpush.bf16.msra.mxu0 %v5027
    %5779 = vmatpush.bf16.msra.mxu0 %v5020
    %5780 = vmatpush.bf16.msra.mxu0 %v5013
    %5781 = vmatpush.bf16.msra.mxu0 %v5006
    %5782 = vmatpush.bf16.msra.mxu0 %v4999
    %5783 = vmatpush.bf16.msra.mxu0 %v4992
    %5784 = vmatmul.bf16.gmra.mxu0 %v2772
    %v5785 = vpop.f32.mrf.mxu0
    %v5786 = vadd.f32 %v5773, %v5785
    %v5787 = vpop.f32.mrf.mxu0
    %5788 = vdwg.mxu0
    %5789 = vmatpush.bf16.msra.mxu0 %v5097
    %5790 = vmatpush.bf16.msra.mxu0 %v5090
    %5791 = vmatpush.bf16.msra.mxu0 %v5083
    %5792 = vmatpush.bf16.msra.mxu0 %v5076
    %5793 = vmatpush.bf16.msra.mxu0 %v5069
    %5794 = vmatpush.bf16.msra.mxu0 %v5062
    %5795 = vmatpush.bf16.msra.mxu0 %v5055
    %5796 = vmatpush.bf16.msra.mxu0 %v5048
    %5797 = vmatmul.bf16.gmra.mxu0 %v2773
    %v5798 = vpop.f32.mrf.mxu0
    %v5799 = vadd.f32 %v5786, %v5798
    %v5800 = vpop.f32.mrf.mxu0
    %5801 = vdwg.mxu0
    %5802 = vmatpush.bf16.msra.mxu0 %v5153
    %5803 = vmatpush.bf16.msra.mxu0 %v5146
    %5804 = vmatpush.bf16.msra.mxu0 %v5139
    %5805 = vmatpush.bf16.msra.mxu0 %v5132
    %5806 = vmatpush.bf16.msra.mxu0 %v5125
    %5807 = vmatpush.bf16.msra.mxu0 %v5118
    %5808 = vmatpush.bf16.msra.mxu0 %v5111
    %5809 = vmatpush.bf16.msra.mxu0 %v5104
    %5810 = vmatmul.bf16.gmra.mxu0 %v2774
    %v5811 = vpop.f32.mrf.mxu0
    %v5812 = vadd.f32 %v5799, %v5811
    %v5813 = vpop.f32.mrf.mxu0
    %5814 = vdwg.mxu0
    %5815 = vmatpush.bf16.msra.mxu0 %v4762
    %5816 = vmatpush.bf16.msra.mxu0 %v4755
    %5817 = vmatpush.bf16.msra.mxu0 %v4748
    %5818 = vmatpush.bf16.msra.mxu0 %v4741
    %5819 = vmatpush.bf16.msra.mxu0 %v4734
    %5820 = vmatpush.bf16.msra.mxu0 %v4727
    %5821 = vmatpush.bf16.msra.mxu0 %v4720
    %5822 = vmatpush.bf16.msra.mxu0 %v4713
    %5823 = vmatmul.bf16.gmra.mxu0 %v2767
    %v5824 = vpop.f32.mrf.mxu0
    %v5825 = vadd.f32 %v3291, %v5824
    %v5826 = vpop.f32.mrf.mxu0
    %5827 = vdwg.mxu0
    %5828 = vmatpush.bf16.msra.mxu0 %v4818
    %5829 = vmatpush.bf16.msra.mxu0 %v4811
    %5830 = vmatpush.bf16.msra.mxu0 %v4804
    %5831 = vmatpush.bf16.msra.mxu0 %v4797
    %5832 = vmatpush.bf16.msra.mxu0 %v4790
    %5833 = vmatpush.bf16.msra.mxu0 %v4783
    %5834 = vmatpush.bf16.msra.mxu0 %v4776
    %5835 = vmatpush.bf16.msra.mxu0 %v4769
    %5836 = vmatmul.bf16.gmra.mxu0 %v2768
    %v5837 = vpop.f32.mrf.mxu0
    %v5838 = vadd.f32 %v5825, %v5837
    %v5839 = vpop.f32.mrf.mxu0
    %5840 = vdwg.mxu0
    %5841 = vmatpush.bf16.msra.mxu0 %v4874
    %5842 = vmatpush.bf16.msra.mxu0 %v4867
    %5843 = vmatpush.bf16.msra.mxu0 %v4860
    %5844 = vmatpush.bf16.msra.mxu0 %v4853
    %5845 = vmatpush.bf16.msra.mxu0 %v4846
    %5846 = vmatpush.bf16.msra.mxu0 %v4839
    %5847 = vmatpush.bf16.msra.mxu0 %v4832
    %5848 = vmatpush.bf16.msra.mxu0 %v4825
    %5849 = vmatmul.bf16.gmra.mxu0 %v2769
    %v5850 = vpop.f32.mrf.mxu0
    %v5851 = vadd.f32 %v5838, %v5850
    %v5852 = vpop.f32.mrf.mxu0
    %5853 = vdwg.mxu0
    %5854 = vmatpush.bf16.msra.mxu0 %v4930
    %5855 = vmatpush.bf16.msra.mxu0 %v4923
    %5856 = vmatpush.bf16.msra.mxu0 %v4916
    %5857 = vmatpush.bf16.msra.mxu0 %v4909
    %5858 = vmatpush.bf16.msra.mxu0 %v4902
    %5859 = vmatpush.bf16.msra.mxu0 %v4895
    %5860 = vmatpush.bf16.msra.mxu0 %v4888
    %5861 = vmatpush.bf16.msra.mxu0 %v4881
    %5862 = vmatmul.bf16.gmra.mxu0 %v2770
    %v5863 = vpop.f32.mrf.mxu0
    %v5864 = vadd.f32 %v5851, %v5863
    %v5865 = vpop.f32.mrf.mxu0
    %5866 = vdwg.mxu0
    %5867 = vmatpush.bf16.msra.mxu0 %v4986
    %5868 = vmatpush.bf16.msra.mxu0 %v4979
    %5869 = vmatpush.bf16.msra.mxu0 %v4972
    %5870 = vmatpush.bf16.msra.mxu0 %v4965
    %5871 = vmatpush.bf16.msra.mxu0 %v4958
    %5872 = vmatpush.bf16.msra.mxu0 %v4951
    %5873 = vmatpush.bf16.msra.mxu0 %v4944
    %5874 = vmatpush.bf16.msra.mxu0 %v4937
    %5875 = vmatmul.bf16.gmra.mxu0 %v2771
    %v5876 = vpop.f32.mrf.mxu0
    %v5877 = vadd.f32 %v5864, %v5876
    %v5878 = vpop.f32.mrf.mxu0
    %5879 = vdwg.mxu0
    %5880 = vmatpush.bf16.msra.mxu0 %v5042
    %5881 = vmatpush.bf16.msra.mxu0 %v5035
    %5882 = vmatpush.bf16.msra.mxu0 %v5028
    %5883 = vmatpush.bf16.msra.mxu0 %v5021
    %5884 = vmatpush.bf16.msra.mxu0 %v5014
    %5885 = vmatpush.bf16.msra.mxu0 %v5007
    %5886 = vmatpush.bf16.msra.mxu0 %v5000
    %5887 = vmatpush.bf16.msra.mxu0 %v4993
    %5888 = vmatmul.bf16.gmra.mxu0 %v2772
    %v5889 = vpop.f32.mrf.mxu0
    %v5890 = vadd.f32 %v5877, %v5889
    %v5891 = vpop.f32.mrf.mxu0
    %5892 = vdwg.mxu0
    %5893 = vmatpush.bf16.msra.mxu0 %v5098
    %5894 = vmatpush.bf16.msra.mxu0 %v5091
    %5895 = vmatpush.bf16.msra.mxu0 %v5084
    %5896 = vmatpush.bf16.msra.mxu0 %v5077
    %5897 = vmatpush.bf16.msra.mxu0 %v5070
    %5898 = vmatpush.bf16.msra.mxu0 %v5063
    %5899 = vmatpush.bf16.msra.mxu0 %v5056
    %5900 = vmatpush.bf16.msra.mxu0 %v5049
    %5901 = vmatmul.bf16.gmra.mxu0 %v2773
    %v5902 = vpop.f32.mrf.mxu0
    %v5903 = vadd.f32 %v5890, %v5902
    %v5904 = vpop.f32.mrf.mxu0
    %5905 = vdwg.mxu0
    %5906 = vmatpush.bf16.msra.mxu0 %v5154
    %5907 = vmatpush.bf16.msra.mxu0 %v5147
    %5908 = vmatpush.bf16.msra.mxu0 %v5140
    %5909 = vmatpush.bf16.msra.mxu0 %v5133
    %5910 = vmatpush.bf16.msra.mxu0 %v5126
    %5911 = vmatpush.bf16.msra.mxu0 %v5119
    %5912 = vmatpush.bf16.msra.mxu0 %v5112
    %5913 = vmatpush.bf16.msra.mxu0 %v5105
    %5914 = vmatmul.bf16.gmra.mxu0 %v2774
    %v5915 = vpop.f32.mrf.mxu0
    %v5916 = vadd.f32 %v5903, %v5915
    %v5917 = vpop.f32.mrf.mxu0
    %5918 = vdwg.mxu0
    %5919 = vmatpush.bf16.msra.mxu0 %v4763
    %5920 = vmatpush.bf16.msra.mxu0 %v4756
    %5921 = vmatpush.bf16.msra.mxu0 %v4749
    %5922 = vmatpush.bf16.msra.mxu0 %v4742
    %5923 = vmatpush.bf16.msra.mxu0 %v4735
    %5924 = vmatpush.bf16.msra.mxu0 %v4728
    %5925 = vmatpush.bf16.msra.mxu0 %v4721
    %5926 = vmatpush.bf16.msra.mxu0 %v4714
    %5927 = vmatmul.bf16.gmra.mxu0 %v2767
    %v5928 = vpop.f32.mrf.mxu0
    %v5929 = vadd.f32 %v3292, %v5928
    %v5930 = vpop.f32.mrf.mxu0
    %5931 = vdwg.mxu0
    %5932 = vmatpush.bf16.msra.mxu0 %v4819
    %5933 = vmatpush.bf16.msra.mxu0 %v4812
    %5934 = vmatpush.bf16.msra.mxu0 %v4805
    %5935 = vmatpush.bf16.msra.mxu0 %v4798
    %5936 = vmatpush.bf16.msra.mxu0 %v4791
    %5937 = vmatpush.bf16.msra.mxu0 %v4784
    %5938 = vmatpush.bf16.msra.mxu0 %v4777
    %5939 = vmatpush.bf16.msra.mxu0 %v4770
    %5940 = vmatmul.bf16.gmra.mxu0 %v2768
    %v5941 = vpop.f32.mrf.mxu0
    %v5942 = vadd.f32 %v5929, %v5941
    %v5943 = vpop.f32.mrf.mxu0
    %5944 = vdwg.mxu0
    %5945 = vmatpush.bf16.msra.mxu0 %v4875
    %5946 = vmatpush.bf16.msra.mxu0 %v4868
    %5947 = vmatpush.bf16.msra.mxu0 %v4861
    %5948 = vmatpush.bf16.msra.mxu0 %v4854
    %5949 = vmatpush.bf16.msra.mxu0 %v4847
    %5950 = vmatpush.bf16.msra.mxu0 %v4840
    %5951 = vmatpush.bf16.msra.mxu0 %v4833
    %5952 = vmatpush.bf16.msra.mxu0 %v4826
    %5953 = vmatmul.bf16.gmra.mxu0 %v2769
    %v5954 = vpop.f32.mrf.mxu0
    %v5955 = vadd.f32 %v5942, %v5954
    %v5956 = vpop.f32.mrf.mxu0
    %5957 = vdwg.mxu0
    %5958 = vmatpush.bf16.msra.mxu0 %v4931
    %5959 = vmatpush.bf16.msra.mxu0 %v4924
    %5960 = vmatpush.bf16.msra.mxu0 %v4917
    %5961 = vmatpush.bf16.msra.mxu0 %v4910
    %5962 = vmatpush.bf16.msra.mxu0 %v4903
    %5963 = vmatpush.bf16.msra.mxu0 %v4896
    %5964 = vmatpush.bf16.msra.mxu0 %v4889
    %5965 = vmatpush.bf16.msra.mxu0 %v4882
    %5966 = vmatmul.bf16.gmra.mxu0 %v2770
    %v5967 = vpop.f32.mrf.mxu0
    %v5968 = vadd.f32 %v5955, %v5967
    %v5969 = vpop.f32.mrf.mxu0
    %5970 = vdwg.mxu0
    %5971 = vmatpush.bf16.msra.mxu0 %v4987
    %5972 = vmatpush.bf16.msra.mxu0 %v4980
    %5973 = vmatpush.bf16.msra.mxu0 %v4973
    %5974 = vmatpush.bf16.msra.mxu0 %v4966
    %5975 = vmatpush.bf16.msra.mxu0 %v4959
    %5976 = vmatpush.bf16.msra.mxu0 %v4952
    %5977 = vmatpush.bf16.msra.mxu0 %v4945
    %5978 = vmatpush.bf16.msra.mxu0 %v4938
    %5979 = vmatmul.bf16.gmra.mxu0 %v2771
    %v5980 = vpop.f32.mrf.mxu0
    %v5981 = vadd.f32 %v5968, %v5980
    %v5982 = vpop.f32.mrf.mxu0
    %5983 = vdwg.mxu0
    %5984 = vmatpush.bf16.msra.mxu0 %v5043
    %5985 = vmatpush.bf16.msra.mxu0 %v5036
    %5986 = vmatpush.bf16.msra.mxu0 %v5029
    %5987 = vmatpush.bf16.msra.mxu0 %v5022
    %5988 = vmatpush.bf16.msra.mxu0 %v5015
    %5989 = vmatpush.bf16.msra.mxu0 %v5008
    %5990 = vmatpush.bf16.msra.mxu0 %v5001
    %5991 = vmatpush.bf16.msra.mxu0 %v4994
    %5992 = vmatmul.bf16.gmra.mxu0 %v2772
    %v5993 = vpop.f32.mrf.mxu0
    %v5994 = vadd.f32 %v5981, %v5993
    %v5995 = vpop.f32.mrf.mxu0
    %5996 = vdwg.mxu0
    %5997 = vmatpush.bf16.msra.mxu0 %v5099
    %5998 = vmatpush.bf16.msra.mxu0 %v5092
    %5999 = vmatpush.bf16.msra.mxu0 %v5085
    %6000 = vmatpush.bf16.msra.mxu0 %v5078
    %6001 = vmatpush.bf16.msra.mxu0 %v5071
    %6002 = vmatpush.bf16.msra.mxu0 %v5064
    %6003 = vmatpush.bf16.msra.mxu0 %v5057
    %6004 = vmatpush.bf16.msra.mxu0 %v5050
    %6005 = vmatmul.bf16.gmra.mxu0 %v2773
    %v6006 = vpop.f32.mrf.mxu0
    %v6007 = vadd.f32 %v5994, %v6006
    %v6008 = vpop.f32.mrf.mxu0
    %6009 = vdwg.mxu0
    %6010 = vmatpush.bf16.msra.mxu0 %v5155
    %6011 = vmatpush.bf16.msra.mxu0 %v5148
    %6012 = vmatpush.bf16.msra.mxu0 %v5141
    %6013 = vmatpush.bf16.msra.mxu0 %v5134
    %6014 = vmatpush.bf16.msra.mxu0 %v5127
    %6015 = vmatpush.bf16.msra.mxu0 %v5120
    %6016 = vmatpush.bf16.msra.mxu0 %v5113
    %6017 = vmatpush.bf16.msra.mxu0 %v5106
    %6018 = vmatmul.bf16.gmra.mxu0 %v2774
    %v6019 = vpop.f32.mrf.mxu0
    %v6020 = vadd.f32 %v6007, %v6019
    %v6021 = vpop.f32.mrf.mxu0
    %6022 = vdwg.mxu0
    %6023 = vmatpush.bf16.msra.mxu0 %v4764
    %6024 = vmatpush.bf16.msra.mxu0 %v4757
    %6025 = vmatpush.bf16.msra.mxu0 %v4750
    %6026 = vmatpush.bf16.msra.mxu0 %v4743
    %6027 = vmatpush.bf16.msra.mxu0 %v4736
    %6028 = vmatpush.bf16.msra.mxu0 %v4729
    %6029 = vmatpush.bf16.msra.mxu0 %v4722
    %6030 = vmatpush.bf16.msra.mxu0 %v4715
    %6031 = vmatmul.bf16.gmra.mxu0 %v2767
    %v6032 = vpop.f32.mrf.mxu0
    %v6033 = vadd.f32 %v3293, %v6032
    %v6034 = vpop.f32.mrf.mxu0
    %6035 = vdwg.mxu0
    %6036 = vmatpush.bf16.msra.mxu0 %v4820
    %6037 = vmatpush.bf16.msra.mxu0 %v4813
    %6038 = vmatpush.bf16.msra.mxu0 %v4806
    %6039 = vmatpush.bf16.msra.mxu0 %v4799
    %6040 = vmatpush.bf16.msra.mxu0 %v4792
    %6041 = vmatpush.bf16.msra.mxu0 %v4785
    %6042 = vmatpush.bf16.msra.mxu0 %v4778
    %6043 = vmatpush.bf16.msra.mxu0 %v4771
    %6044 = vmatmul.bf16.gmra.mxu0 %v2768
    %v6045 = vpop.f32.mrf.mxu0
    %v6046 = vadd.f32 %v6033, %v6045
    %v6047 = vpop.f32.mrf.mxu0
    %6048 = vdwg.mxu0
    %6049 = vmatpush.bf16.msra.mxu0 %v4876
    %6050 = vmatpush.bf16.msra.mxu0 %v4869
    %6051 = vmatpush.bf16.msra.mxu0 %v4862
    %6052 = vmatpush.bf16.msra.mxu0 %v4855
    %6053 = vmatpush.bf16.msra.mxu0 %v4848
    %6054 = vmatpush.bf16.msra.mxu0 %v4841
    %6055 = vmatpush.bf16.msra.mxu0 %v4834
    %6056 = vmatpush.bf16.msra.mxu0 %v4827
    %6057 = vmatmul.bf16.gmra.mxu0 %v2769
    %v6058 = vpop.f32.mrf.mxu0
    %v6059 = vadd.f32 %v6046, %v6058
    %v6060 = vpop.f32.mrf.mxu0
    %6061 = vdwg.mxu0
    %6062 = vmatpush.bf16.msra.mxu0 %v4932
    %6063 = vmatpush.bf16.msra.mxu0 %v4925
    %6064 = vmatpush.bf16.msra.mxu0 %v4918
    %6065 = vmatpush.bf16.msra.mxu0 %v4911
    %6066 = vmatpush.bf16.msra.mxu0 %v4904
    %6067 = vmatpush.bf16.msra.mxu0 %v4897
    %6068 = vmatpush.bf16.msra.mxu0 %v4890
    %6069 = vmatpush.bf16.msra.mxu0 %v4883
    %6070 = vmatmul.bf16.gmra.mxu0 %v2770
    %v6071 = vpop.f32.mrf.mxu0
    %v6072 = vadd.f32 %v6059, %v6071
    %v6073 = vpop.f32.mrf.mxu0
    %6074 = vdwg.mxu0
    %6075 = vmatpush.bf16.msra.mxu0 %v4988
    %6076 = vmatpush.bf16.msra.mxu0 %v4981
    %6077 = vmatpush.bf16.msra.mxu0 %v4974
    %6078 = vmatpush.bf16.msra.mxu0 %v4967
    %6079 = vmatpush.bf16.msra.mxu0 %v4960
    %6080 = vmatpush.bf16.msra.mxu0 %v4953
    %6081 = vmatpush.bf16.msra.mxu0 %v4946
    %6082 = vmatpush.bf16.msra.mxu0 %v4939
    %6083 = vmatmul.bf16.gmra.mxu0 %v2771
    %v6084 = vpop.f32.mrf.mxu0
    %v6085 = vadd.f32 %v6072, %v6084
    %v6086 = vpop.f32.mrf.mxu0
    %6087 = vdwg.mxu0
    %6088 = vmatpush.bf16.msra.mxu0 %v5044
    %6089 = vmatpush.bf16.msra.mxu0 %v5037
    %6090 = vmatpush.bf16.msra.mxu0 %v5030
    %6091 = vmatpush.bf16.msra.mxu0 %v5023
    %6092 = vmatpush.bf16.msra.mxu0 %v5016
    %6093 = vmatpush.bf16.msra.mxu0 %v5009
    %6094 = vmatpush.bf16.msra.mxu0 %v5002
    %6095 = vmatpush.bf16.msra.mxu0 %v4995
    %6096 = vmatmul.bf16.gmra.mxu0 %v2772
    %v6097 = vpop.f32.mrf.mxu0
    %v6098 = vadd.f32 %v6085, %v6097
    %v6099 = vpop.f32.mrf.mxu0
    %6100 = vdwg.mxu0
    %6101 = vmatpush.bf16.msra.mxu0 %v5100
    %6102 = vmatpush.bf16.msra.mxu0 %v5093
    %6103 = vmatpush.bf16.msra.mxu0 %v5086
    %6104 = vmatpush.bf16.msra.mxu0 %v5079
    %6105 = vmatpush.bf16.msra.mxu0 %v5072
    %6106 = vmatpush.bf16.msra.mxu0 %v5065
    %6107 = vmatpush.bf16.msra.mxu0 %v5058
    %6108 = vmatpush.bf16.msra.mxu0 %v5051
    %6109 = vmatmul.bf16.gmra.mxu0 %v2773
    %v6110 = vpop.f32.mrf.mxu0
    %v6111 = vadd.f32 %v6098, %v6110
    %v6112 = vpop.f32.mrf.mxu0
    %6113 = vdwg.mxu0
    %6114 = vmatpush.bf16.msra.mxu0 %v5156
    %6115 = vmatpush.bf16.msra.mxu0 %v5149
    %6116 = vmatpush.bf16.msra.mxu0 %v5142
    %6117 = vmatpush.bf16.msra.mxu0 %v5135
    %6118 = vmatpush.bf16.msra.mxu0 %v5128
    %6119 = vmatpush.bf16.msra.mxu0 %v5121
    %6120 = vmatpush.bf16.msra.mxu0 %v5114
    %6121 = vmatpush.bf16.msra.mxu0 %v5107
    %6122 = vmatmul.bf16.gmra.mxu0 %v2774
    %v6123 = vpop.f32.mrf.mxu0
    %v6124 = vadd.f32 %v6111, %v6123
    %v6125 = vpop.f32.mrf.mxu0
    %6126 = vdwg.mxu0
    %6127 = vmatpush.bf16.msra.mxu0 %v4765
    %6128 = vmatpush.bf16.msra.mxu0 %v4758
    %6129 = vmatpush.bf16.msra.mxu0 %v4751
    %6130 = vmatpush.bf16.msra.mxu0 %v4744
    %6131 = vmatpush.bf16.msra.mxu0 %v4737
    %6132 = vmatpush.bf16.msra.mxu0 %v4730
    %6133 = vmatpush.bf16.msra.mxu0 %v4723
    %6134 = vmatpush.bf16.msra.mxu0 %v4716
    %6135 = vmatmul.bf16.gmra.mxu0 %v2767
    %v6136 = vpop.f32.mrf.mxu0
    %v6137 = vadd.f32 %v3294, %v6136
    %v6138 = vpop.f32.mrf.mxu0
    %6139 = vdwg.mxu0
    %6140 = vmatpush.bf16.msra.mxu0 %v4821
    %6141 = vmatpush.bf16.msra.mxu0 %v4814
    %6142 = vmatpush.bf16.msra.mxu0 %v4807
    %6143 = vmatpush.bf16.msra.mxu0 %v4800
    %6144 = vmatpush.bf16.msra.mxu0 %v4793
    %6145 = vmatpush.bf16.msra.mxu0 %v4786
    %6146 = vmatpush.bf16.msra.mxu0 %v4779
    %6147 = vmatpush.bf16.msra.mxu0 %v4772
    %6148 = vmatmul.bf16.gmra.mxu0 %v2768
    %v6149 = vpop.f32.mrf.mxu0
    %v6150 = vadd.f32 %v6137, %v6149
    %v6151 = vpop.f32.mrf.mxu0
    %6152 = vdwg.mxu0
    %6153 = vmatpush.bf16.msra.mxu0 %v4877
    %6154 = vmatpush.bf16.msra.mxu0 %v4870
    %6155 = vmatpush.bf16.msra.mxu0 %v4863
    %6156 = vmatpush.bf16.msra.mxu0 %v4856
    %6157 = vmatpush.bf16.msra.mxu0 %v4849
    %6158 = vmatpush.bf16.msra.mxu0 %v4842
    %6159 = vmatpush.bf16.msra.mxu0 %v4835
    %6160 = vmatpush.bf16.msra.mxu0 %v4828
    %6161 = vmatmul.bf16.gmra.mxu0 %v2769
    %v6162 = vpop.f32.mrf.mxu0
    %v6163 = vadd.f32 %v6150, %v6162
    %v6164 = vpop.f32.mrf.mxu0
    %6165 = vdwg.mxu0
    %6166 = vmatpush.bf16.msra.mxu0 %v4933
    %6167 = vmatpush.bf16.msra.mxu0 %v4926
    %6168 = vmatpush.bf16.msra.mxu0 %v4919
    %6169 = vmatpush.bf16.msra.mxu0 %v4912
    %6170 = vmatpush.bf16.msra.mxu0 %v4905
    %6171 = vmatpush.bf16.msra.mxu0 %v4898
    %6172 = vmatpush.bf16.msra.mxu0 %v4891
    %6173 = vmatpush.bf16.msra.mxu0 %v4884
    %6174 = vmatmul.bf16.gmra.mxu0 %v2770
    %v6175 = vpop.f32.mrf.mxu0
    %v6176 = vadd.f32 %v6163, %v6175
    %v6177 = vpop.f32.mrf.mxu0
    %6178 = vdwg.mxu0
    %6179 = vmatpush.bf16.msra.mxu0 %v4989
    %6180 = vmatpush.bf16.msra.mxu0 %v4982
    %6181 = vmatpush.bf16.msra.mxu0 %v4975
    %6182 = vmatpush.bf16.msra.mxu0 %v4968
    %6183 = vmatpush.bf16.msra.mxu0 %v4961
    %6184 = vmatpush.bf16.msra.mxu0 %v4954
    %6185 = vmatpush.bf16.msra.mxu0 %v4947
    %6186 = vmatpush.bf16.msra.mxu0 %v4940
    %6187 = vmatmul.bf16.gmra.mxu0 %v2771
    %v6188 = vpop.f32.mrf.mxu0
    %v6189 = vadd.f32 %v6176, %v6188
    %v6190 = vpop.f32.mrf.mxu0
    %6191 = vdwg.mxu0
    %6192 = vmatpush.bf16.msra.mxu0 %v5045
    %6193 = vmatpush.bf16.msra.mxu0 %v5038
    %6194 = vmatpush.bf16.msra.mxu0 %v5031
    %6195 = vmatpush.bf16.msra.mxu0 %v5024
    %6196 = vmatpush.bf16.msra.mxu0 %v5017
    %6197 = vmatpush.bf16.msra.mxu0 %v5010
    %6198 = vmatpush.bf16.msra.mxu0 %v5003
    %6199 = vmatpush.bf16.msra.mxu0 %v4996
    %6200 = vmatmul.bf16.gmra.mxu0 %v2772
    %v6201 = vpop.f32.mrf.mxu0
    %v6202 = vadd.f32 %v6189, %v6201
    %v6203 = vpop.f32.mrf.mxu0
    %6204 = vdwg.mxu0
    %6205 = vmatpush.bf16.msra.mxu0 %v5101
    %6206 = vmatpush.bf16.msra.mxu0 %v5094
    %6207 = vmatpush.bf16.msra.mxu0 %v5087
    %6208 = vmatpush.bf16.msra.mxu0 %v5080
    %6209 = vmatpush.bf16.msra.mxu0 %v5073
    %6210 = vmatpush.bf16.msra.mxu0 %v5066
    %6211 = vmatpush.bf16.msra.mxu0 %v5059
    %6212 = vmatpush.bf16.msra.mxu0 %v5052
    %6213 = vmatmul.bf16.gmra.mxu0 %v2773
    %v6214 = vpop.f32.mrf.mxu0
    %v6215 = vadd.f32 %v6202, %v6214
    %v6216 = vpop.f32.mrf.mxu0
    %6217 = vdwg.mxu0
    %6218 = vmatpush.bf16.msra.mxu0 %v5157
    %6219 = vmatpush.bf16.msra.mxu0 %v5150
    %6220 = vmatpush.bf16.msra.mxu0 %v5143
    %6221 = vmatpush.bf16.msra.mxu0 %v5136
    %6222 = vmatpush.bf16.msra.mxu0 %v5129
    %6223 = vmatpush.bf16.msra.mxu0 %v5122
    %6224 = vmatpush.bf16.msra.mxu0 %v5115
    %6225 = vmatpush.bf16.msra.mxu0 %v5108
    %6226 = vmatmul.bf16.gmra.mxu0 %v2774
    %v6227 = vpop.f32.mrf.mxu0
    %v6228 = vadd.f32 %v6215, %v6227
    %v6229 = vpop.f32.mrf.mxu0
    %6230 = vdwg.mxu0
    %6231 = vmatpush.bf16.msra.mxu0 %v4766
    %6232 = vmatpush.bf16.msra.mxu0 %v4759
    %6233 = vmatpush.bf16.msra.mxu0 %v4752
    %6234 = vmatpush.bf16.msra.mxu0 %v4745
    %6235 = vmatpush.bf16.msra.mxu0 %v4738
    %6236 = vmatpush.bf16.msra.mxu0 %v4731
    %6237 = vmatpush.bf16.msra.mxu0 %v4724
    %6238 = vmatpush.bf16.msra.mxu0 %v4717
    %6239 = vmatmul.bf16.gmra.mxu0 %v2767
    %v6240 = vpop.f32.mrf.mxu0
    %v6241 = vadd.f32 %v3295, %v6240
    %v6242 = vpop.f32.mrf.mxu0
    %6243 = vdwg.mxu0
    %6244 = vmatpush.bf16.msra.mxu0 %v4822
    %6245 = vmatpush.bf16.msra.mxu0 %v4815
    %6246 = vmatpush.bf16.msra.mxu0 %v4808
    %6247 = vmatpush.bf16.msra.mxu0 %v4801
    %6248 = vmatpush.bf16.msra.mxu0 %v4794
    %6249 = vmatpush.bf16.msra.mxu0 %v4787
    %6250 = vmatpush.bf16.msra.mxu0 %v4780
    %6251 = vmatpush.bf16.msra.mxu0 %v4773
    %6252 = vmatmul.bf16.gmra.mxu0 %v2768
    %v6253 = vpop.f32.mrf.mxu0
    %v6254 = vadd.f32 %v6241, %v6253
    %v6255 = vpop.f32.mrf.mxu0
    %6256 = vdwg.mxu0
    %6257 = vmatpush.bf16.msra.mxu0 %v4878
    %6258 = vmatpush.bf16.msra.mxu0 %v4871
    %6259 = vmatpush.bf16.msra.mxu0 %v4864
    %6260 = vmatpush.bf16.msra.mxu0 %v4857
    %6261 = vmatpush.bf16.msra.mxu0 %v4850
    %6262 = vmatpush.bf16.msra.mxu0 %v4843
    %6263 = vmatpush.bf16.msra.mxu0 %v4836
    %6264 = vmatpush.bf16.msra.mxu0 %v4829
    %6265 = vmatmul.bf16.gmra.mxu0 %v2769
    %v6266 = vpop.f32.mrf.mxu0
    %v6267 = vadd.f32 %v6254, %v6266
    %v6268 = vpop.f32.mrf.mxu0
    %6269 = vdwg.mxu0
    %6270 = vmatpush.bf16.msra.mxu0 %v4934
    %6271 = vmatpush.bf16.msra.mxu0 %v4927
    %6272 = vmatpush.bf16.msra.mxu0 %v4920
    %6273 = vmatpush.bf16.msra.mxu0 %v4913
    %6274 = vmatpush.bf16.msra.mxu0 %v4906
    %6275 = vmatpush.bf16.msra.mxu0 %v4899
    %6276 = vmatpush.bf16.msra.mxu0 %v4892
    %6277 = vmatpush.bf16.msra.mxu0 %v4885
    %6278 = vmatmul.bf16.gmra.mxu0 %v2770
    %v6279 = vpop.f32.mrf.mxu0
    %v6280 = vadd.f32 %v6267, %v6279
    %v6281 = vpop.f32.mrf.mxu0
    %6282 = vdwg.mxu0
    %6283 = vmatpush.bf16.msra.mxu0 %v4990
    %6284 = vmatpush.bf16.msra.mxu0 %v4983
    %6285 = vmatpush.bf16.msra.mxu0 %v4976
    %6286 = vmatpush.bf16.msra.mxu0 %v4969
    %6287 = vmatpush.bf16.msra.mxu0 %v4962
    %6288 = vmatpush.bf16.msra.mxu0 %v4955
    %6289 = vmatpush.bf16.msra.mxu0 %v4948
    %6290 = vmatpush.bf16.msra.mxu0 %v4941
    %6291 = vmatmul.bf16.gmra.mxu0 %v2771
    %v6292 = vpop.f32.mrf.mxu0
    %v6293 = vadd.f32 %v6280, %v6292
    %v6294 = vpop.f32.mrf.mxu0
    %6295 = vdwg.mxu0
    %6296 = vmatpush.bf16.msra.mxu0 %v5046
    %6297 = vmatpush.bf16.msra.mxu0 %v5039
    %6298 = vmatpush.bf16.msra.mxu0 %v5032
    %6299 = vmatpush.bf16.msra.mxu0 %v5025
    %6300 = vmatpush.bf16.msra.mxu0 %v5018
    %6301 = vmatpush.bf16.msra.mxu0 %v5011
    %6302 = vmatpush.bf16.msra.mxu0 %v5004
    %6303 = vmatpush.bf16.msra.mxu0 %v4997
    %6304 = vmatmul.bf16.gmra.mxu0 %v2772
    %v6305 = vpop.f32.mrf.mxu0
    %v6306 = vadd.f32 %v6293, %v6305
    %v6307 = vpop.f32.mrf.mxu0
    %6308 = vdwg.mxu0
    %6309 = vmatpush.bf16.msra.mxu0 %v5102
    %6310 = vmatpush.bf16.msra.mxu0 %v5095
    %6311 = vmatpush.bf16.msra.mxu0 %v5088
    %6312 = vmatpush.bf16.msra.mxu0 %v5081
    %6313 = vmatpush.bf16.msra.mxu0 %v5074
    %6314 = vmatpush.bf16.msra.mxu0 %v5067
    %6315 = vmatpush.bf16.msra.mxu0 %v5060
    %6316 = vmatpush.bf16.msra.mxu0 %v5053
    %6317 = vmatmul.bf16.gmra.mxu0 %v2773
    %v6318 = vpop.f32.mrf.mxu0
    %v6319 = vadd.f32 %v6306, %v6318
    %v6320 = vpop.f32.mrf.mxu0
    %6321 = vdwg.mxu0
    %6322 = vmatpush.bf16.msra.mxu0 %v5158
    %6323 = vmatpush.bf16.msra.mxu0 %v5151
    %6324 = vmatpush.bf16.msra.mxu0 %v5144
    %6325 = vmatpush.bf16.msra.mxu0 %v5137
    %6326 = vmatpush.bf16.msra.mxu0 %v5130
    %6327 = vmatpush.bf16.msra.mxu0 %v5123
    %6328 = vmatpush.bf16.msra.mxu0 %v5116
    %6329 = vmatpush.bf16.msra.mxu0 %v5109
    %6330 = vmatmul.bf16.gmra.mxu0 %v2774
    %v6331 = vpop.f32.mrf.mxu0
    %v6332 = vadd.f32 %v6319, %v6331
    %v6333 = vpop.f32.mrf.mxu0
    %6334 = vdwg.mxu0
    %v6335 = vtanh.pop %v5708
    %v6336 = vtanh.pop %v5812
    %v6337 = vtanh.pop %v5916
    %v6338 = vtanh.pop %v6020
    %v6339 = vtanh.pop %v6124
    %v6340 = vtanh.pop %v6228
    %v6341 = vtanh.pop %v6332
    %6342 = vst [vmem:[%s9] sm:$0xff] %v6335
    %6343 = vst [vmem:[%s9 + $0x8] sm:$0xff] %v6336
    %6344 = vst [vmem:[%s9 + $0x10] sm:$0xff] %v6337
    %6345 = vst [vmem:[%s9 + $0x18] sm:$0xff] %v6338
    %6346 = vst [vmem:[%s9 + $0x20] sm:$0xff] %v6339
    %6347 = vst [vmem:[%s9 + $0x28] sm:$0xff] %v6340
    %6348 = vst [vmem:[%s9 + $0x30] sm:$0xff] %v6341
    // Predicated region
    $region54: #{generator_forward.1} parent=1 // pred_check
      _
    $region55: #{generator_forward.1} parent=1 // pred_check_branch
      %6350 = sbr.rel (0) target = $region57
    $region56: #{generator_forward.1} parent=1 // pred_region
      _
    $region57: #{generator_forward.1} parent=1 // pred_fallthru
      _
    // Predicated region
    $region58: #{generator_forward.1} parent=1 // pred_check
      _
    $region59: #{generator_forward.1} parent=1 // pred_check_branch
      %6352 = sbr.rel (0) target = $region61
    $region60: #{generator_forward.1} parent=1 // pred_region
      _
    $region61: #{generator_forward.1} parent=1 // pred_fallthru
      _
    %6353 = vsyncpa [#allocation8], 1
    %6354 = vsyncpa [#allocation10], 1
    %6355 = vsyncpa [#allocation13], 1
  %6356 = vsyncmov [#allocation6]
  %s6357 = vpop.sfrf %6356
  %p6358 = scmp.eq.s32.totalorder %s6357, 0
  %p6359 = pneg %p6358
  %6361 = shalt.err (%p6359)
  %s6362 = scalar_lea.sflag [#allocation6], 1
  %6363 = vsyncmov %s6362
  %s6364 = vpop.sfrf %6363
  %p6365 = scmp.eq.s32.totalorder %s6364, 0
  %p6366 = pneg %p6365
  %6368 = shalt.err (%p6366)
  %s6369 = scalar_lea.sflag [#allocation6], 2
  %6370 = vsyncmov %s6369
  %s6371 = vpop.sfrf %6370
  %p6372 = scmp.eq.s32.totalorder %s6371, 0
  %p6373 = pneg %p6372
  %6375 = shalt.err (%p6373)
  %s6376 = scalar_lea.sflag [#allocation6], 3
  %6377 = vsyncmov %s6376
  %s6378 = vpop.sfrf %6377
  %p6379 = scmp.eq.s32.totalorder %s6378, 0
  %p6380 = pneg %p6379
  %6382 = shalt.err (%p6380)

</llo_original>
